<compile_context>
chip_gen: v6e
topology: v6e:2x2x1
jax: 0.10.0
libtpu: 0.0.40
codegen_flags: <defaults>
</compile_context>

<pallas_src>
import functools

import jax
import jax.numpy as jnp
from jax.experimental import pallas as pl
from jax.experimental.pallas import tpu as pltpu


def _round_up(n, m):
    return ((n + m - 1) // m) * m


def _resident_spec(block_shape, index_map):
    """BlockSpec for a grid-invariant input: single-buffered to halve VMEM residency."""
    try:
        return pl.BlockSpec(block_shape, index_map, pipeline_mode=pl.Buffered(1))
    except TypeError:  # jax version without pipeline_mode: fall back to default buffering
        return pl.BlockSpec(block_shape, index_map)


def _vmem_capacity_bytes():
    try:
        return int(pltpu.get_tpu_info().vmem_capacity_bytes)
    except Exception:
        return 64 * 1024 * 1024  # conservative (v7x-sized) fallback


# ----------------------------- tiled linear kernel -----------------------------
def _linear_kernel(x_ref, w_ref, b_ref, o_ref):
    acc = jnp.dot(x_ref[...].astype(jnp.bfloat16), w_ref[...],
                  preferred_element_type=jnp.float32) + b_ref[...]
    o_ref[...] = acc.astype(o_ref.dtype)


def linear(x, w_t, b, *, out_dtype=jnp.float32, tm=256, tn=512):
    """y = x @ w_t + b, tiled over output rows/cols.

    x: (N, K), w_t: (K, V) bf16, b: (1, V) f32 -> (N, V) out_dtype.
    K (= ninp/nhid) stays fully resident per tile; rows/cols are tiled.
    The vocab/output axis is the OUTER grid axis so each weight column-tile is
    DMA'd from HBM exactly once (decoder is HBM-bandwidth bound on v5e).
    Non-divisible N/V are padded up to the tile and sliced afterwards (never the
    "tile = full dimension" fallback, which cannot fit VMEM at real vocab sizes).
    """
    N, K = x.shape
    V = w_t.shape[-1]
    tm_ = max(8, (min(tm, _round_up(N, 8)) // 8) * 8)
    tn_ = max(128, (min(tn, _round_up(V, 128)) // 128) * 128)
    Np, Vp = _round_up(N, tm_), _round_up(V, tn_)
    if Np != N:
        x = jnp.pad(x, ((0, Np - N), (0, 0)))
    if Vp != V:
        w_t = jnp.pad(w_t, ((0, 0), (0, Vp - V)))
        b = jnp.pad(b, ((0, 0), (0, Vp - V)))

    grid = (Vp // tn_, Np // tm_)  # (vocab/cols outer, rows inner)
    out = pl.pallas_call(
        _linear_kernel,
        out_shape=jax.ShapeDtypeStruct((Np, Vp), out_dtype),
        grid_spec=pltpu.PrefetchScalarGridSpec(
            num_scalar_prefetch=0,
            grid=grid,
            in_specs=[
                pl.BlockSpec((tm_, K), lambda j, i: (i, 0)),   # activations (small)
                pl.BlockSpec((K, tn_), lambda j, i: (0, j)),   # weight col-tile: constant
                pl.BlockSpec((1, tn_), lambda j, i: (0, j)),   # over the inner rows axis
            ],
            out_specs=pl.BlockSpec((tm_, tn_), lambda j, i: (i, j)),
        ),
        compiler_params=pltpu.CompilerParams(
            dimension_semantics=("parallel", "parallel")),
    )(x, w_t, b)
    if Np != N or Vp != V:
        out = out[:N, :V]
    return out


# --------------------------- LSTM recurrence kernel -----------------------------
def _lstm_recurrent_kernel(gx_ref, h0_ref, c0_ref, whh_ref,
                           out_ref, hT_ref, cT_ref, *,
                           nhid, tt, t_total, guard_tail):
    s = pl.program_id(1)  # time-chunk index (inner, "arbitrary" axis)

    # hT/cT have an s-invariant index map -> resident across the time grid; they carry
    # the recurrent state ACROSS chunks.  Within a chunk the state lives in registers.
    @pl.when(s == 0)
    def _():
        hT_ref[...] = h0_ref[...]
        cT_ref[...] = c0_ref[...]

    w_hh = whh_ref[...]                       # (H, 4H) bf16, hoisted out of the loop

    h = hT_ref[...].astype(jnp.bfloat16)      # (Btile, H) bf16 register carry
    c = cT_ref[...]                           # (Btile, H) f32  register carry

    def step(t, carry):
        h, c = carry
        # gx already contains x @ W_ih + b (precomputed outside the recurrence).
        gates = gx_ref[t].astype(jnp.float32) + jnp.dot(
            h, w_hh, preferred_element_type=jnp.float32)
        i = jax.nn.sigmoid(gates[:, 0 * nhid:1 * nhid])
        f = jax.nn.sigmoid(gates[:, 1 * nhid:2 * nhid])
        g = jnp.tanh(gates[:, 2 * nhid:3 * nhid])
        o = jax.nn.sigmoid(gates[:, 3 * nhid:4 * nhid])
        c_new = f * c + i * g
        h_new = o * jnp.tanh(c_new)
        out_ref[t] = h_new.astype(out_ref.dtype)      # sequence output (per step)
        h_new = h_new.astype(jnp.bfloat16)
        if guard_tail:  # static flag: only emitted when T was padded up to a chunk
            valid = (s * tt + t) < t_total
            h_new = jnp.where(valid, h_new, h)
            c_new = jnp.where(valid, c_new, c)
        return h_new, c_new

    h, c = jax.lax.fori_loop(0, tt, step, (h, c), unroll=True)
    hT_ref[...] = h.astype(jnp.float32)       # one store per chunk, not per step
    cT_ref[...] = c


def lstm_recurrence(gates_x, h0, c0, w_hh):
    """Serial LSTM recurrence over time, given precomputed input gates.

    gates_x: (T, B, 4H) bf16 (= x @ W_ih + b), h0/c0: (B, H) f32, w_hh: (H, 4H) bf16.
    Returns (out (T, B, H) bf16|f32, hT (B, H) f32, cT (B, H) f32).
    """
    T, B, G = gates_x.shape
    H = h0.shape[-1]

    # Optional batch-tile "parallel" axis: lets v7x's 2 TensorCores split the batch.
    bt = 2 if (B >= 32 and B % 16 == 0) else 1
    tb = B // bt

    # bf16 sequence output only when the per-tile batch gives full packed (16,128)
    # bf16 stores; otherwise keep f32 (avoids per-step masked vst at small B).
    seq_dtype = jnp.bfloat16 if tb % 16 == 0 else jnp.float32

    # Chunked time grid: several timesteps per grid iteration to amortize the
    # ~0.35us/step grid overhead, sized against an explicit VMEM budget
    # (generation-dependent: v7x has 64 MiB physical, v5e/v6e 128 MiB).
    def _vmem_est(chunk):
        gx_b = 2 * chunk * tb * G * gates_x.dtype.itemsize          # double-buffered in
        out_b = 2 * chunk * tb * H * jnp.dtype(seq_dtype).itemsize  # double-buffered out
        whh_b = H * G * w_hh.dtype.itemsize                          # resident weight
        st_b = 8 * tb * H * 4                                        # h0,c0,hT,cT (+slack)
        return gx_b + out_b + whh_b + st_b

    budget = max(16 << 20, int(_vmem_capacity_bytes() * 0.45))
    max_tt = next((c for c in (32, 16, 8, 4, 2) if _vmem_est(c) <= budget), 1)
    max_tt = min(max_tt, T)
    tt = next((d for d in range(max_tt, 0, -1) if T % d == 0), 1)
    if tt < max(1, max_tt // 2):   # only a tiny exact divisor (prime-ish T): pad + mask
        tt = max_tt
    num_chunks = -(-T // tt)
    T_pad = num_chunks * tt
    guard_tail = T_pad != T
    if guard_tail:
        gates_x = jnp.pad(gates_x, ((0, T_pad - T), (0, 0), (0, 0)))

    vmem_limit = int(min(max(2 * _vmem_est(tt), 16 << 20),
                         int(_vmem_capacity_bytes() * 0.9)))

    kernel = functools.partial(_lstm_recurrent_kernel, nhid=H, tt=tt,
                               t_total=T, guard_tail=guard_tail)
    out, hT, cT = pl.pallas_call(
        kernel,
        out_shape=(jax.ShapeDtypeStruct((T_pad, B, H), seq_dtype),
                   jax.ShapeDtypeStruct((B, H), jnp.float32),
                   jax.ShapeDtypeStruct((B, H), jnp.float32)),
        grid_spec=pltpu.PrefetchScalarGridSpec(
            num_scalar_prefetch=0,
            grid=(bt, num_chunks),
            in_specs=[
                pl.BlockSpec((tt, tb, G), lambda b, s: (s, b, 0)),   # gates_x chunk
                pl.BlockSpec((tb, H), lambda b, s: (b, 0)),          # h0
                pl.BlockSpec((tb, H), lambda b, s: (b, 0)),          # c0
                _resident_spec((H, G), lambda b, s: (0, 0)),         # W_hh (bf16, resident)
            ],
            out_specs=[
                pl.BlockSpec((tt, tb, H), lambda b, s: (s, b, 0)),   # hidden sequence
                pl.BlockSpec((tb, H), lambda b, s: (b, 0)),          # h_T (resident over s)
                pl.BlockSpec((tb, H), lambda b, s: (b, 0)),          # c_T (resident over s)
            ],
        ),
        compiler_params=pltpu.CompilerParams(
            dimension_semantics=("parallel", "arbitrary"),  # batch tiles || ; time serial
            vmem_limit_bytes=vmem_limit),
    )(gates_x, h0, c0, w_hh)
    if guard_tail:
        out = out[:T]
    return out, hT, cT


# ------------------------------- Full forward ---------------------------------
def rnn_model_forward(tokens, params, hidden):
    """tokens: (T, B) int32. Returns (logits (T, B, ntoken), (h_new, c_new))."""
    T, B = tokens.shape
    h0_all, c0_all = hidden

    # Layer 0: embedding + input projection fused into one gather of the
    # precomputed bf16 (ntoken, 4H) table (bias folded in).
    gates_x = jnp.take(params["enc_gates_table"], tokens, axis=0)   # (T, B, 4H) bf16

    h_list, c_list = [], []
    x_seq = None
    for l, lp in enumerate(params["lstm"]):
        if l > 0:
            flat = x_seq.reshape(T * B, -1)
            gates_x = linear(flat, lp["w_ih"], lp["b"],
                             out_dtype=jnp.bfloat16).reshape(T, B, -1)
        x_seq, hT, cT = lstm_recurrence(gates_x, h0_all[l], c0_all[l], lp["w_hh"])
        h_list.append(hT)
        c_list.append(cT)

    flat = x_seq.reshape(T * B, -1)
    logits = linear(flat, params["decoder_weight_t"], params["decoder_bias"],
                    out_dtype=jnp.float32)
    ntoken = logits.shape[-1]
    return logits.reshape(T, B, ntoken), (jnp.stack(h_list), jnp.stack(c_list))


# ------------------------------ Parameter init ---------------------------------
def init_params(key, ntoken, ninp, nhid, nlayers):
    initrange = 0.1
    stdv = 1.0 / float(nhid) ** 0.5
    keys = jax.random.split(key, 2 + 4 * nlayers)
    params = {}
    enc = jax.random.uniform(keys[0], (ntoken, ninp), jnp.float32,
                             -initrange, initrange)
    params["encoder_weight"] = enc
    # PyTorch Linear computes x @ W.T + b; store W.T (bf16 for the MXU path).
    dec_w = jax.random.uniform(keys[1], (ntoken, nhid), jnp.float32,
                               -initrange, initrange)
    params["decoder_weight_t"] = dec_w.T.astype(jnp.bfloat16)
    params["decoder_bias"] = jnp.zeros((1, ntoken), jnp.float32)

    lstm = []
    for l in range(nlayers):
        in_sz = ninp if l == 0 else nhid
        k = keys[2 + 4 * l: 2 + 4 * (l + 1)]
        # PyTorch stores (4H, in); store transposed (in, 4H) for x @ W.
        w_ih = jax.random.uniform(k[0], (in_sz, 4 * nhid), jnp.float32, -stdv, stdv)
        w_hh = jax.random.uniform(k[1], (nhid, 4 * nhid), jnp.float32, -stdv, stdv)
        b_ih = jax.random.uniform(k[2], (1, 4 * nhid), jnp.float32, -stdv, stdv)
        b_hh = jax.random.uniform(k[3], (1, 4 * nhid), jnp.float32, -stdv, stdv)
        lstm.append({"w_ih": w_ih.astype(jnp.bfloat16),
                     "w_hh": w_hh.astype(jnp.bfloat16),
                     "b": b_ih + b_hh})
    params["lstm"] = lstm

    # Fuse nn.Embedding with layer-0's input projection: (E @ W_ih0 + b0) precomputed
    # once so the per-forward layer-0 projection becomes a gather.  Stored bf16 to
    # halve the table footprint and the per-token gather bandwidth.
    params["enc_gates_table"] = (
        jnp.dot(enc.astype(jnp.bfloat16), lstm[0]["w_ih"],
                preferred_element_type=jnp.float32) + lstm[0]["b"]
    ).astype(jnp.bfloat16)
    return params


# ------------------------------ Pure-JAX reference ------------------------------
def reference_forward(tokens, params, hidden):
    T, B = tokens.shape
    emb = jnp.take(params["encoder_weight"], tokens, axis=0)   # (T, B, ninp) f32
    h_all, c_all = hidden
    x = emb
    for l, p in enumerate(params["lstm"]):
        H = p["w_hh"].shape[0]
        w_ih, w_hh, b = p["w_ih"], p["w_hh"], p["b"]

        def step(carry, xt, w_ih=w_ih, w_hh=w_hh, b=b, H=H):
            h, c = carry
            gates = (jnp.dot(xt.astype(jnp.bfloat16), w_ih,
                             preferred_element_type=jnp.float32)
                     + jnp.dot(h.astype(jnp.bfloat16), w_hh,
                               preferred_element_type=jnp.float32)
                     + b)
            i = jax.nn.sigmoid(gates[:, 0 * H:1 * H])
            f = jax.nn.sigmoid(gates[:, 1 * H:2 * H])
            g = jnp.tanh(gates[:, 2 * H:3 * H])
            o = jax.nn.sigmoid(gates[:, 3 * H:4 * H])
            c = f * c + i * g
            h = o * jnp.tanh(c)
            return (h, c), h

        (_, _), ys = jax.lax.scan(step, (h_all[l], c_all[l]), x)
        x = ys
    flat = x.reshape(T * B, -1).astype(jnp.bfloat16)
    logits = (jnp.dot(flat, params["decoder_weight_t"],
                      preferred_element_type=jnp.float32)
              + params["decoder_bias"])
    return logits.reshape(T, B, -1)


if __name__ == "__main__":
    # Small but hardware-friendly sizes: batch multiple of 16 (packed bf16 tile),
    # nhid multiple of 128.
    ntoken, ninp, nhid, nlayers, bsz, seq = 256, 128, 128, 2, 16, 8

    key = jax.random.PRNGKey(0)
    pkey, tkey = jax.random.split(key)
    params = init_params(pkey, ntoken, ninp, nhid, nlayers)

    tokens = jax.random.randint(tkey, (seq, bsz), 0, ntoken, dtype=jnp.int32)
    hidden = (jnp.zeros((nlayers, bsz, nhid), jnp.float32),
              jnp.zeros((nlayers, bsz, nhid), jnp.float32))

    forward = jax.jit(rnn_model_forward)
    logits, (h_new, c_new) = forward(tokens, params, hidden)
    logits = jax.block_until_ready(logits)
    jax.block_until_ready((h_new, c_new))

    assert logits.shape == (seq, bsz, ntoken)
    assert h_new.shape == (nlayers, bsz, nhid) and c_new.shape == (nlayers, bsz, nhid)

    # Sanity check against a pure-JAX reference using the same bf16 weights.
    # (Kernel path additionally stores gate pre-activations in bf16 between kernels;
    #  difference stays well inside this bound at these sizes.)
    ref = reference_forward(tokens, params, hidden)
    err = float(jnp.max(jnp.abs(logits - ref)))
    assert err < 2e-2, f"mismatch vs reference: {err}"

    print("KERNEL_OK")
</pallas_src>

<mosaic_0001>
module attributes {stable_mosaic.version = 11 : i64} {
  func.func @_linear_kernel(%arg0: i32, %arg1: i32, %arg2: memref<128x128xbf16, #tpu.memory_space<vmem>>, %arg3: memref<128x512xbf16, #tpu.memory_space<vmem>>, %arg4: memref<1x512xf32, #tpu.memory_space<vmem>>, %arg5: memref<128x512xbf16, #tpu.memory_space<vmem>>) attributes {dimension_semantics = [#tpu.dimension_semantics<parallel>, #tpu.dimension_semantics<parallel>], iteration_bounds = array<i64: 1, 1>, scalar_prefetch = 0 : i64, scratch_operands = 0 : i64, tpu.core_type = #tpu.core_type<tc>, window_params = [{transform_indices = @transform_0, window_bounds = array<i64: 128, 128>}, {transform_indices = @transform_1, window_bounds = array<i64: 128, 512>}, {transform_indices = @transform_2, window_bounds = array<i64: 1, 512>}, {transform_indices = @transform_3, window_bounds = array<i64: 128, 512>}]} {
    %c0 = arith.constant 0 : index
    %c0_0 = arith.constant 0 : index
    %0 = vector.load %arg2[%c0, %c0_0] : memref<128x128xbf16, #tpu.memory_space<vmem>>, vector<128x128xbf16>
    %c0_1 = arith.constant 0 : index
    %c0_2 = arith.constant 0 : index
    %1 = vector.load %arg3[%c0_1, %c0_2] : memref<128x512xbf16, #tpu.memory_space<vmem>>, vector<128x512xbf16>
    %cst = arith.constant dense<0.000000e+00> : vector<128x512xf32>
    %2 = tpu.matmul %0, %1, %cst {dimension_numbers = #tpu.dot_dimension_numbers<[1], [0], [0], [1], [0, 0, 1, 1], [], []>} : vector<128x128xbf16>, vector<128x512xbf16>, vector<128x512xf32> -> vector<128x512xf32>
    %c0_3 = arith.constant 0 : index
    %c0_4 = arith.constant 0 : index
    %3 = vector.load %arg4[%c0_3, %c0_4] : memref<1x512xf32, #tpu.memory_space<vmem>>, vector<1x512xf32>
    %4 = vector.broadcast %3 : vector<1x512xf32> to vector<128x512xf32>
    %5 = arith.addf %2, %4 : vector<128x512xf32>
    %6 = arith.truncf %5 : vector<128x512xf32> to vector<128x512xbf16>
    %c0_5 = arith.constant 0 : index
    %c0_6 = arith.constant 0 : index
    %7 = vector.load %arg5[%c0_5, %c0_6] : memref<128x512xbf16, #tpu.memory_space<vmem>>, vector<128x512xbf16>
    tpu.vector_store %arg5[%c0_5, %c0_6], %6 {strides = array<i32>} : memref<128x512xbf16, #tpu.memory_space<vmem>>, vector<128x512xbf16>,
    return
  }
  func.func @transform_0(%arg0: i32, %arg1: i32) -> (i32, i32) {
    %c0_i32 = arith.constant 0 : i32
    %c0_i32_0 = arith.constant 0 : i32
    return %arg1, %c0_i32 : i32, i32
  }
  func.func @transform_1(%arg0: i32, %arg1: i32) -> (i32, i32) {
    %c0_i32 = arith.constant 0 : i32
    %c0_i32_0 = arith.constant 0 : i32
    return %c0_i32, %arg0 : i32, i32
  }
  func.func @transform_2(%arg0: i32, %arg1: i32) -> (i32, i32) {
    %c0_i32 = arith.constant 0 : i32
    %c0_i32_0 = arith.constant 0 : i32
    return %c0_i32, %arg0 : i32, i32
  }
  func.func @transform_3(%arg0: i32, %arg1: i32) -> (i32, i32) {
    %c0_i32 = arith.constant 0 : i32
    return %arg1, %arg0 : i32, i32
  }
}

module attributes {stable_mosaic.version = 11 : i64} {
  func.func @_linear_kernel(%arg0: i32, %arg1: i32, %arg2: memref<128x128xbf16, #tpu.memory_space<vmem>>, %arg3: memref<128x256xbf16, #tpu.memory_space<vmem>>, %arg4: memref<1x256xf32, #tpu.memory_space<vmem>>, %arg5: memref<128x256xf32, #tpu.memory_space<vmem>>) attributes {dimension_semantics = [#tpu.dimension_semantics<parallel>, #tpu.dimension_semantics<parallel>], iteration_bounds = array<i64: 1, 1>, scalar_prefetch = 0 : i64, scratch_operands = 0 : i64, tpu.core_type = #tpu.core_type<tc>, window_params = [{transform_indices = @transform_0, window_bounds = array<i64: 128, 128>}, {transform_indices = @transform_1, window_bounds = array<i64: 128, 256>}, {transform_indices = @transform_2, window_bounds = array<i64: 1, 256>}, {transform_indices = @transform_3, window_bounds = array<i64: 128, 256>}]} {
    %c0 = arith.constant 0 : index
    %c0_0 = arith.constant 0 : index
    %0 = vector.load %arg2[%c0, %c0_0] : memref<128x128xbf16, #tpu.memory_space<vmem>>, vector<128x128xbf16>
    %c0_1 = arith.constant 0 : index
    %c0_2 = arith.constant 0 : index
    %1 = vector.load %arg3[%c0_1, %c0_2] : memref<128x256xbf16, #tpu.memory_space<vmem>>, vector<128x256xbf16>
    %cst = arith.constant dense<0.000000e+00> : vector<128x256xf32>
    %2 = tpu.matmul %0, %1, %cst {dimension_numbers = #tpu.dot_dimension_numbers<[1], [0], [0], [1], [0, 0, 1, 1], [], []>} : vector<128x128xbf16>, vector<128x256xbf16>, vector<128x256xf32> -> vector<128x256xf32>
    %c0_3 = arith.constant 0 : index
    %c0_4 = arith.constant 0 : index
    %3 = vector.load %arg4[%c0_3, %c0_4] : memref<1x256xf32, #tpu.memory_space<vmem>>, vector<1x256xf32>
    %4 = vector.broadcast %3 : vector<1x256xf32> to vector<128x256xf32>
    %5 = arith.addf %2, %4 : vector<128x256xf32>
    %c0_5 = arith.constant 0 : index
    %c0_6 = arith.constant 0 : index
    %6 = vector.load %arg5[%c0_5, %c0_6] : memref<128x256xf32, #tpu.memory_space<vmem>>, vector<128x256xf32>
    tpu.vector_store %arg5[%c0_5, %c0_6], %5 {strides = array<i32>} : memref<128x256xf32, #tpu.memory_space<vmem>>, vector<128x256xf32>,
    return
  }
  func.func @transform_0(%arg0: i32, %arg1: i32) -> (i32, i32) {
    %c0_i32 = arith.constant 0 : i32
    %c0_i32_0 = arith.constant 0 : i32
    return %arg1, %c0_i32 : i32, i32
  }
  func.func @transform_1(%arg0: i32, %arg1: i32) -> (i32, i32) {
    %c0_i32 = arith.constant 0 : i32
    %c0_i32_0 = arith.constant 0 : i32
    return %c0_i32, %arg0 : i32, i32
  }
  func.func @transform_2(%arg0: i32, %arg1: i32) -> (i32, i32) {
    %c0_i32 = arith.constant 0 : i32
    %c0_i32_0 = arith.constant 0 : i32
    return %c0_i32, %arg0 : i32, i32
  }
  func.func @transform_3(%arg0: i32, %arg1: i32) -> (i32, i32) {
    %c0_i32 = arith.constant 0 : i32
    return %arg1, %arg0 : i32, i32
  }
}

module attributes {stable_mosaic.version = 11 : i64} {
  func.func @_lstm_recurrent_kernel(%arg0: i32, %arg1: i32, %arg2: memref<8x16x512xbf16, #tpu.memory_space<vmem>>, %arg3: memref<16x128xf32, #tpu.memory_space<vmem>>, %arg4: memref<16x128xf32, #tpu.memory_space<vmem>>, %arg5: memref<128x512xbf16, #tpu.memory_space<vmem>>, %arg6: memref<8x16x128xbf16, #tpu.memory_space<vmem>>, %arg7: memref<16x128xf32, #tpu.memory_space<vmem>>, %arg8: memref<16x128xf32, #tpu.memory_space<vmem>>) attributes {dimension_semantics = [#tpu.dimension_semantics<parallel>, #tpu.dimension_semantics<arbitrary>], iteration_bounds = array<i64: 1, 1>, scalar_prefetch = 0 : i64, scratch_operands = 0 : i64, tpu.core_type = #tpu.core_type<tc>, window_params = [{transform_indices = @transform_0, window_bounds = array<i64: 8, 16, 512>}, {transform_indices = @transform_1, window_bounds = array<i64: 16, 128>}, {transform_indices = @transform_2, window_bounds = array<i64: 16, 128>}, {pipeline_mode = #tpu.pipeline_mode<synchronous>, transform_indices = @transform_3, window_bounds = array<i64: 128, 512>}, {transform_indices = @transform_4, window_bounds = array<i64: 8, 16, 128>}, {transform_indices = @transform_5, window_bounds = array<i64: 16, 128>}, {transform_indices = @transform_6, window_bounds = array<i64: 16, 128>}]} {
    %c0_i32 = arith.constant 0 : i32
    %0 = arith.cmpi eq, %arg1, %c0_i32 : i32
    %1 = arith.extui %0 : i1 to i32
    %c0_i32_0 = arith.constant 0 : i32
    %2 = arith.cmpi ne, %1, %c0_i32_0 : i32
    scf.if %2 {
      %c0_74 = arith.constant 0 : index
      %c0_75 = arith.constant 0 : index
      %306 = vector.load %arg3[%c0_74, %c0_75] : memref<16x128xf32, #tpu.memory_space<vmem>>, vector<16x128xf32>
      %c0_76 = arith.constant 0 : index
      %c0_77 = arith.constant 0 : index
      %307 = vector.load %arg7[%c0_76, %c0_77] : memref<16x128xf32, #tpu.memory_space<vmem>>, vector<16x128xf32>
      tpu.vector_store %arg7[%c0_76, %c0_77], %306 {strides = array<i32>} : memref<16x128xf32, #tpu.memory_space<vmem>>, vector<16x128xf32>,
      %c0_78 = arith.constant 0 : index
      %c0_79 = arith.constant 0 : index
      %308 = vector.load %arg4[%c0_78, %c0_79] : memref<16x128xf32, #tpu.memory_space<vmem>>, vector<16x128xf32>
      %c0_80 = arith.constant 0 : index
      %c0_81 = arith.constant 0 : index
      %309 = vector.load %arg8[%c0_80, %c0_81] : memref<16x128xf32, #tpu.memory_space<vmem>>, vector<16x128xf32>
      tpu.vector_store %arg8[%c0_80, %c0_81], %308 {strides = array<i32>} : memref<16x128xf32, #tpu.memory_space<vmem>>, vector<16x128xf32>,
    } else {
    }
    %c0 = arith.constant 0 : index
    %c0_1 = arith.constant 0 : index
    %3 = vector.load %arg5[%c0, %c0_1] : memref<128x512xbf16, #tpu.memory_space<vmem>>, vector<128x512xbf16>
    %c0_2 = arith.constant 0 : index
    %c0_3 = arith.constant 0 : index
    %4 = vector.load %arg7[%c0_2, %c0_3] : memref<16x128xf32, #tpu.memory_space<vmem>>, vector<16x128xf32>
    %5 = arith.truncf %4 : vector<16x128xf32> to vector<16x128xbf16>
    %c0_4 = arith.constant 0 : index
    %c0_5 = arith.constant 0 : index
    %6 = vector.load %arg8[%c0_4, %c0_5] : memref<16x128xf32, #tpu.memory_space<vmem>>, vector<16x128xf32>
    %c0_i32_6 = arith.constant 0 : i32
    %7 = arith.index_cast %c0_i32_6 : i32 to index
    %c0_7 = arith.constant 0 : index
    %c0_8 = arith.constant 0 : index
    %8 = vector.load %arg2[%7, %c0_7, %c0_8] : memref<8x16x512xbf16, #tpu.memory_space<vmem>>, vector<1x16x512xbf16>
    %9 = vector.shape_cast %8 : vector<1x16x512xbf16> to vector<16x512xbf16>
    %10 = arith.extf %9 : vector<16x512xbf16> to vector<16x512xf32>
    %cst = arith.constant dense<0.000000e+00> : vector<16x512xf32>
    %11 = tpu.matmul %5, %3, %cst {dimension_numbers = #tpu.dot_dimension_numbers<[1], [0], [0], [1], [0, 0, 1, 1], [], []>} : vector<16x128xbf16>, vector<128x512xbf16>, vector<16x512xf32> -> vector<16x512xf32>
    %12 = arith.addf %10, %11 : vector<16x512xf32>
    %13 = vector.extract_strided_slice %12 {offsets = [0, 0], sizes = [16, 128], strides = [1, 1]} : vector<16x512xf32> to vector<16x128xf32>
    %14 = arith.negf %13 : vector<16x128xf32>
    %15 = math.exp %14 : vector<16x128xf32>
    %cst_9 = arith.constant 1.000000e+00 : f32
    %16 = vector.broadcast %cst_9 : f32 to vector<16x128xf32>
    %17 = arith.addf %16, %15 : vector<16x128xf32>
    %18 = arith.divf %16, %17 : vector<16x128xf32>
    %19 = vector.extract_strided_slice %12 {offsets = [0, 128], sizes = [16, 128], strides = [1, 1]} : vector<16x512xf32> to vector<16x128xf32>
    %20 = arith.negf %19 : vector<16x128xf32>
    %21 = math.exp %20 : vector<16x128xf32>
    %cst_10 = arith.constant 1.000000e+00 : f32
    %22 = vector.broadcast %cst_10 : f32 to vector<16x128xf32>
    %23 = arith.addf %22, %21 : vector<16x128xf32>
    %24 = arith.divf %22, %23 : vector<16x128xf32>
    %25 = vector.extract_strided_slice %12 {offsets = [0, 256], sizes = [16, 128], strides = [1, 1]} : vector<16x512xf32> to vector<16x128xf32>
    %26 = math.tanh %25 : vector<16x128xf32>
    %27 = vector.extract_strided_slice %12 {offsets = [0, 384], sizes = [16, 128], strides = [1, 1]} : vector<16x512xf32> to vector<16x128xf32>
    %28 = arith.negf %27 : vector<16x128xf32>
    %29 = math.exp %28 : vector<16x128xf32>
    %cst_11 = arith.constant 1.000000e+00 : f32
    %30 = vector.broadcast %cst_11 : f32 to vector<16x128xf32>
    %31 = arith.addf %30, %29 : vector<16x128xf32>
    %32 = arith.divf %30, %31 : vector<16x128xf32>
    %33 = arith.mulf %24, %6 : vector<16x128xf32>
    %34 = arith.mulf %18, %26 : vector<16x128xf32>
    %35 = arith.addf %33, %34 : vector<16x128xf32>
    %36 = math.tanh %35 : vector<16x128xf32>
    %37 = arith.mulf %32, %36 : vector<16x128xf32>
    %38 = arith.truncf %37 : vector<16x128xf32> to vector<16x128xbf16>
    %39 = arith.index_cast %c0_i32_6 : i32 to index
    %c0_12 = arith.constant 0 : index
    %c0_13 = arith.constant 0 : index
    %40 = vector.load %arg6[%39, %c0_12, %c0_13] : memref<8x16x128xbf16, #tpu.memory_space<vmem>>, vector<1x16x128xbf16>
    %41 = vector.shape_cast %40 : vector<1x16x128xbf16> to vector<16x128xbf16>
    %42 = vector.shape_cast %38 : vector<16x128xbf16> to vector<1x16x128xbf16>
    tpu.vector_store %arg6[%39, %c0_12, %c0_13], %42 {strides = array<i32>} : memref<8x16x128xbf16, #tpu.memory_space<vmem>>, vector<1x16x128xbf16>,
    %43 = arith.truncf %37 : vector<16x128xf32> to vector<16x128xbf16>
    %c1_i32 = arith.constant 1 : i32
    %44 = arith.index_cast %c1_i32 : i32 to index
    %c0_14 = arith.constant 0 : index
    %c0_15 = arith.constant 0 : index
    %45 = vector.load %arg2[%44, %c0_14, %c0_15] : memref<8x16x512xbf16, #tpu.memory_space<vmem>>, vector<1x16x512xbf16>
    %46 = vector.shape_cast %45 : vector<1x16x512xbf16> to vector<16x512xbf16>
    %47 = arith.extf %46 : vector<16x512xbf16> to vector<16x512xf32>
    %cst_16 = arith.constant dense<0.000000e+00> : vector<16x512xf32>
    %48 = tpu.matmul %43, %3, %cst_16 {dimension_numbers = #tpu.dot_dimension_numbers<[1], [0], [0], [1], [0, 0, 1, 1], [], []>} : vector<16x128xbf16>, vector<128x512xbf16>, vector<16x512xf32> -> vector<16x512xf32>
    %49 = arith.addf %47, %48 : vector<16x512xf32>
    %50 = vector.extract_strided_slice %49 {offsets = [0, 0], sizes = [16, 128], strides = [1, 1]} : vector<16x512xf32> to vector<16x128xf32>
    %51 = arith.negf %50 : vector<16x128xf32>
    %52 = math.exp %51 : vector<16x128xf32>
    %cst_17 = arith.constant 1.000000e+00 : f32
    %53 = vector.broadcast %cst_17 : f32 to vector<16x128xf32>
    %54 = arith.addf %53, %52 : vector<16x128xf32>
    %55 = arith.divf %53, %54 : vector<16x128xf32>
    %56 = vector.extract_strided_slice %49 {offsets = [0, 128], sizes = [16, 128], strides = [1, 1]} : vector<16x512xf32> to vector<16x128xf32>
    %57 = arith.negf %56 : vector<16x128xf32>
    %58 = math.exp %57 : vector<16x128xf32>
    %cst_18 = arith.constant 1.000000e+00 : f32
    %59 = vector.broadcast %cst_18 : f32 to vector<16x128xf32>
    %60 = arith.addf %59, %58 : vector<16x128xf32>
    %61 = arith.divf %59, %60 : vector<16x128xf32>
    %62 = vector.extract_strided_slice %49 {offsets = [0, 256], sizes = [16, 128], strides = [1, 1]} : vector<16x512xf32> to vector<16x128xf32>
    %63 = math.tanh %62 : vector<16x128xf32>
    %64 = vector.extract_strided_slice %49 {offsets = [0, 384], sizes = [16, 128], strides = [1, 1]} : vector<16x512xf32> to vector<16x128xf32>
    %65 = arith.negf %64 : vector<16x128xf32>
    %66 = math.exp %65 : vector<16x128xf32>
    %cst_19 = arith.constant 1.000000e+00 : f32
    %67 = vector.broadcast %cst_19 : f32 to vector<16x128xf32>
    %68 = arith.addf %67, %66 : vector<16x128xf32>
    %69 = arith.divf %67, %68 : vector<16x128xf32>
    %70 = arith.mulf %61, %35 : vector<16x128xf32>
    %71 = arith.mulf %55, %63 : vector<16x128xf32>
    %72 = arith.addf %70, %71 : vector<16x128xf32>
    %73 = math.tanh %72 : vector<16x128xf32>
    %74 = arith.mulf %69, %73 : vector<16x128xf32>
    %75 = arith.truncf %74 : vector<16x128xf32> to vector<16x128xbf16>
    %76 = arith.index_cast %c1_i32 : i32 to index
    %c0_20 = arith.constant 0 : index
    %c0_21 = arith.constant 0 : index
    %77 = vector.load %arg6[%76, %c0_20, %c0_21] : memref<8x16x128xbf16, #tpu.memory_space<vmem>>, vector<1x16x128xbf16>
    %78 = vector.shape_cast %77 : vector<1x16x128xbf16> to vector<16x128xbf16>
    %79 = vector.shape_cast %75 : vector<16x128xbf16> to vector<1x16x128xbf16>
    tpu.vector_store %arg6[%76, %c0_20, %c0_21], %79 {strides = array<i32>} : memref<8x16x128xbf16, #tpu.memory_space<vmem>>, vector<1x16x128xbf16>,
    %80 = arith.truncf %74 : vector<16x128xf32> to vector<16x128xbf16>
    %c2_i32 = arith.constant 2 : i32
    %81 = arith.index_cast %c2_i32 : i32 to index
    %c0_22 = arith.constant 0 : index
    %c0_23 = arith.constant 0 : index
    %82 = vector.load %arg2[%81, %c0_22, %c0_23] : memref<8x16x512xbf16, #tpu.memory_space<vmem>>, vector<1x16x512xbf16>
    %83 = vector.shape_cast %82 : vector<1x16x512xbf16> to vector<16x512xbf16>
    %84 = arith.extf %83 : vector<16x512xbf16> to vector<16x512xf32>
    %cst_24 = arith.constant dense<0.000000e+00> : vector<16x512xf32>
    %85 = tpu.matmul %80, %3, %cst_24 {dimension_numbers = #tpu.dot_dimension_numbers<[1], [0], [0], [1], [0, 0, 1, 1], [], []>} : vector<16x128xbf16>, vector<128x512xbf16>, vector<16x512xf32> -> vector<16x512xf32>
    %86 = arith.addf %84, %85 : vector<16x512xf32>
    %87 = vector.extract_strided_slice %86 {offsets = [0, 0], sizes = [16, 128], strides = [1, 1]} : vector<16x512xf32> to vector<16x128xf32>
    %88 = arith.negf %87 : vector<16x128xf32>
    %89 = math.exp %88 : vector<16x128xf32>
    %cst_25 = arith.constant 1.000000e+00 : f32
    %90 = vector.broadcast %cst_25 : f32 to vector<16x128xf32>
    %91 = arith.addf %90, %89 : vector<16x128xf32>
    %92 = arith.divf %90, %91 : vector<16x128xf32>
    %93 = vector.extract_strided_slice %86 {offsets = [0, 128], sizes = [16, 128], strides = [1, 1]} : vector<16x512xf32> to vector<16x128xf32>
    %94 = arith.negf %93 : vector<16x128xf32>
    %95 = math.exp %94 : vector<16x128xf32>
    %cst_26 = arith.constant 1.000000e+00 : f32
    %96 = vector.broadcast %cst_26 : f32 to vector<16x128xf32>
    %97 = arith.addf %96, %95 : vector<16x128xf32>
    %98 = arith.divf %96, %97 : vector<16x128xf32>
    %99 = vector.extract_strided_slice %86 {offsets = [0, 256], sizes = [16, 128], strides = [1, 1]} : vector<16x512xf32> to vector<16x128xf32>
    %100 = math.tanh %99 : vector<16x128xf32>
    %101 = vector.extract_strided_slice %86 {offsets = [0, 384], sizes = [16, 128], strides = [1, 1]} : vector<16x512xf32> to vector<16x128xf32>
    %102 = arith.negf %101 : vector<16x128xf32>
    %103 = math.exp %102 : vector<16x128xf32>
    %cst_27 = arith.constant 1.000000e+00 : f32
    %104 = vector.broadcast %cst_27 : f32 to vector<16x128xf32>
    %105 = arith.addf %104, %103 : vector<16x128xf32>
    %106 = arith.divf %104, %105 : vector<16x128xf32>
    %107 = arith.mulf %98, %72 : vector<16x128xf32>
    %108 = arith.mulf %92, %100 : vector<16x128xf32>
    %109 = arith.addf %107, %108 : vector<16x128xf32>
    %110 = math.tanh %109 : vector<16x128xf32>
    %111 = arith.mulf %106, %110 : vector<16x128xf32>
    %112 = arith.truncf %111 : vector<16x128xf32> to vector<16x128xbf16>
    %113 = arith.index_cast %c2_i32 : i32 to index
    %c0_28 = arith.constant 0 : index
    %c0_29 = arith.constant 0 : index
    %114 = vector.load %arg6[%113, %c0_28, %c0_29] : memref<8x16x128xbf16, #tpu.memory_space<vmem>>, vector<1x16x128xbf16>
    %115 = vector.shape_cast %114 : vector<1x16x128xbf16> to vector<16x128xbf16>
    %116 = vector.shape_cast %112 : vector<16x128xbf16> to vector<1x16x128xbf16>
    tpu.vector_store %arg6[%113, %c0_28, %c0_29], %116 {strides = array<i32>} : memref<8x16x128xbf16, #tpu.memory_space<vmem>>, vector<1x16x128xbf16>,
    %117 = arith.truncf %111 : vector<16x128xf32> to vector<16x128xbf16>
    %c3_i32 = arith.constant 3 : i32
    %118 = arith.index_cast %c3_i32 : i32 to index
    %c0_30 = arith.constant 0 : index
    %c0_31 = arith.constant 0 : index
    %119 = vector.load %arg2[%118, %c0_30, %c0_31] : memref<8x16x512xbf16, #tpu.memory_space<vmem>>, vector<1x16x512xbf16>
    %120 = vector.shape_cast %119 : vector<1x16x512xbf16> to vector<16x512xbf16>
    %121 = arith.extf %120 : vector<16x512xbf16> to vector<16x512xf32>
    %cst_32 = arith.constant dense<0.000000e+00> : vector<16x512xf32>
    %122 = tpu.matmul %117, %3, %cst_32 {dimension_numbers = #tpu.dot_dimension_numbers<[1], [0], [0], [1], [0, 0, 1, 1], [], []>} : vector<16x128xbf16>, vector<128x512xbf16>, vector<16x512xf32> -> vector<16x512xf32>
    %123 = arith.addf %121, %122 : vector<16x512xf32>
    %124 = vector.extract_strided_slice %123 {offsets = [0, 0], sizes = [16, 128], strides = [1, 1]} : vector<16x512xf32> to vector<16x128xf32>
    %125 = arith.negf %124 : vector<16x128xf32>
    %126 = math.exp %125 : vector<16x128xf32>
    %cst_33 = arith.constant 1.000000e+00 : f32
    %127 = vector.broadcast %cst_33 : f32 to vector<16x128xf32>
    %128 = arith.addf %127, %126 : vector<16x128xf32>
    %129 = arith.divf %127, %128 : vector<16x128xf32>
    %130 = vector.extract_strided_slice %123 {offsets = [0, 128], sizes = [16, 128], strides = [1, 1]} : vector<16x512xf32> to vector<16x128xf32>
    %131 = arith.negf %130 : vector<16x128xf32>
    %132 = math.exp %131 : vector<16x128xf32>
    %cst_34 = arith.constant 1.000000e+00 : f32
    %133 = vector.broadcast %cst_34 : f32 to vector<16x128xf32>
    %134 = arith.addf %133, %132 : vector<16x128xf32>
    %135 = arith.divf %133, %134 : vector<16x128xf32>
    %136 = vector.extract_strided_slice %123 {offsets = [0, 256], sizes = [16, 128], strides = [1, 1]} : vector<16x512xf32> to vector<16x128xf32>
    %137 = math.tanh %136 : vector<16x128xf32>
    %138 = vector.extract_strided_slice %123 {offsets = [0, 384], sizes = [16, 128], strides = [1, 1]} : vector<16x512xf32> to vector<16x128xf32>
    %139 = arith.negf %138 : vector<16x128xf32>
    %140 = math.exp %139 : vector<16x128xf32>
    %cst_35 = arith.constant 1.000000e+00 : f32
    %141 = vector.broadcast %cst_35 : f32 to vector<16x128xf32>
    %142 = arith.addf %141, %140 : vector<16x128xf32>
    %143 = arith.divf %141, %142 : vector<16x128xf32>
    %144 = arith.mulf %135, %109 : vector<16x128xf32>
    %145 = arith.mulf %129, %137 : vector<16x128xf32>
    %146 = arith.addf %144, %145 : vector<16x128xf32>
    %147 = math.tanh %146 : vector<16x128xf32>
    %148 = arith.mulf %143, %147 : vector<16x128xf32>
    %149 = arith.truncf %148 : vector<16x128xf32> to vector<16x128xbf16>
    %150 = arith.index_cast %c3_i32 : i32 to index
    %c0_36 = arith.constant 0 : index
    %c0_37 = arith.constant 0 : index
    %151 = vector.load %arg6[%150, %c0_36, %c0_37] : memref<8x16x128xbf16, #tpu.memory_space<vmem>>, vector<1x16x128xbf16>
    %152 = vector.shape_cast %151 : vector<1x16x128xbf16> to vector<16x128xbf16>
    %153 = vector.shape_cast %149 : vector<16x128xbf16> to vector<1x16x128xbf16>
    tpu.vector_store %arg6[%150, %c0_36, %c0_37], %153 {strides = array<i32>} : memref<8x16x128xbf16, #tpu.memory_space<vmem>>, vector<1x16x128xbf16>,
    %154 = arith.truncf %148 : vector<16x128xf32> to vector<16x128xbf16>
    %c4_i32 = arith.constant 4 : i32
    %155 = arith.index_cast %c4_i32 : i32 to index
    %c0_38 = arith.constant 0 : index
    %c0_39 = arith.constant 0 : index
    %156 = vector.load %arg2[%155, %c0_38, %c0_39] : memref<8x16x512xbf16, #tpu.memory_space<vmem>>, vector<1x16x512xbf16>
    %157 = vector.shape_cast %156 : vector<1x16x512xbf16> to vector<16x512xbf16>
    %158 = arith.extf %157 : vector<16x512xbf16> to vector<16x512xf32>
    %cst_40 = arith.constant dense<0.000000e+00> : vector<16x512xf32>
    %159 = tpu.matmul %154, %3, %cst_40 {dimension_numbers = #tpu.dot_dimension_numbers<[1], [0], [0], [1], [0, 0, 1, 1], [], []>} : vector<16x128xbf16>, vector<128x512xbf16>, vector<16x512xf32> -> vector<16x512xf32>
    %160 = arith.addf %158, %159 : vector<16x512xf32>
    %161 = vector.extract_strided_slice %160 {offsets = [0, 0], sizes = [16, 128], strides = [1, 1]} : vector<16x512xf32> to vector<16x128xf32>
    %162 = arith.negf %161 : vector<16x128xf32>
    %163 = math.exp %162 : vector<16x128xf32>
    %cst_41 = arith.constant 1.000000e+00 : f32
    %164 = vector.broadcast %cst_41 : f32 to vector<16x128xf32>
    %165 = arith.addf %164, %163 : vector<16x128xf32>
    %166 = arith.divf %164, %165 : vector<16x128xf32>
    %167 = vector.extract_strided_slice %160 {offsets = [0, 128], sizes = [16, 128], strides = [1, 1]} : vector<16x512xf32> to vector<16x128xf32>
    %168 = arith.negf %167 : vector<16x128xf32>
    %169 = math.exp %168 : vector<16x128xf32>
    %cst_42 = arith.constant 1.000000e+00 : f32
    %170 = vector.broadcast %cst_42 : f32 to vector<16x128xf32>
    %171 = arith.addf %170, %169 : vector<16x128xf32>
    %172 = arith.divf %170, %171 : vector<16x128xf32>
    %173 = vector.extract_strided_slice %160 {offsets = [0, 256], sizes = [16, 128], strides = [1, 1]} : vector<16x512xf32> to vector<16x128xf32>
    %174 = math.tanh %173 : vector<16x128xf32>
    %175 = vector.extract_strided_slice %160 {offsets = [0, 384], sizes = [16, 128], strides = [1, 1]} : vector<16x512xf32> to vector<16x128xf32>
    %176 = arith.negf %175 : vector<16x128xf32>
    %177 = math.exp %176 : vector<16x128xf32>
    %cst_43 = arith.constant 1.000000e+00 : f32
    %178 = vector.broadcast %cst_43 : f32 to vector<16x128xf32>
    %179 = arith.addf %178, %177 : vector<16x128xf32>
    %180 = arith.divf %178, %179 : vector<16x128xf32>
    %181 = arith.mulf %172, %146 : vector<16x128xf32>
    %182 = arith.mulf %166, %174 : vector<16x128xf32>
    %183 = arith.addf %181, %182 : vector<16x128xf32>
    %184 = math.tanh %183 : vector<16x128xf32>
    %185 = arith.mulf %180, %184 : vector<16x128xf32>
    %186 = arith.truncf %185 : vector<16x128xf32> to vector<16x128xbf16>
    %187 = arith.index_cast %c4_i32 : i32 to index
    %c0_44 = arith.constant 0 : index
    %c0_45 = arith.constant 0 : index
    %188 = vector.load %arg6[%187, %c0_44, %c0_45] : memref<8x16x128xbf16, #tpu.memory_space<vmem>>, vector<1x16x128xbf16>
    %189 = vector.shape_cast %188 : vector<1x16x128xbf16> to vector<16x128xbf16>
    %190 = vector.shape_cast %186 : vector<16x128xbf16> to vector<1x16x128xbf16>
    tpu.vector_store %arg6[%187, %c0_44, %c0_45], %190 {strides = array<i32>} : memref<8x16x128xbf16, #tpu.memory_space<vmem>>, vector<1x16x128xbf16>,
    %191 = arith.truncf %185 : vector<16x128xf32> to vector<16x128xbf16>
    %c5_i32 = arith.constant 5 : i32
    %192 = arith.index_cast %c5_i32 : i32 to index
    %c0_46 = arith.constant 0 : index
    %c0_47 = arith.constant 0 : index
    %193 = vector.load %arg2[%192, %c0_46, %c0_47] : memref<8x16x512xbf16, #tpu.memory_space<vmem>>, vector<1x16x512xbf16>
    %194 = vector.shape_cast %193 : vector<1x16x512xbf16> to vector<16x512xbf16>
    %195 = arith.extf %194 : vector<16x512xbf16> to vector<16x512xf32>
    %cst_48 = arith.constant dense<0.000000e+00> : vector<16x512xf32>
    %196 = tpu.matmul %191, %3, %cst_48 {dimension_numbers = #tpu.dot_dimension_numbers<[1], [0], [0], [1], [0, 0, 1, 1], [], []>} : vector<16x128xbf16>, vector<128x512xbf16>, vector<16x512xf32> -> vector<16x512xf32>
    %197 = arith.addf %195, %196 : vector<16x512xf32>
    %198 = vector.extract_strided_slice %197 {offsets = [0, 0], sizes = [16, 128], strides = [1, 1]} : vector<16x512xf32> to vector<16x128xf32>
    %199 = arith.negf %198 : vector<16x128xf32>
    %200 = math.exp %199 : vector<16x128xf32>
    %cst_49 = arith.constant 1.000000e+00 : f32
    %201 = vector.broadcast %cst_49 : f32 to vector<16x128xf32>
    %202 = arith.addf %201, %200 : vector<16x128xf32>
    %203 = arith.divf %201, %202 : vector<16x128xf32>
    %204 = vector.extract_strided_slice %197 {offsets = [0, 128], sizes = [16, 128], strides = [1, 1]} : vector<16x512xf32> to vector<16x128xf32>
    %205 = arith.negf %204 : vector<16x128xf32>
    %206 = math.exp %205 : vector<16x128xf32>
    %cst_50 = arith.constant 1.000000e+00 : f32
    %207 = vector.broadcast %cst_50 : f32 to vector<16x128xf32>
    %208 = arith.addf %207, %206 : vector<16x128xf32>
    %209 = arith.divf %207, %208 : vector<16x128xf32>
    %210 = vector.extract_strided_slice %197 {offsets = [0, 256], sizes = [16, 128], strides = [1, 1]} : vector<16x512xf32> to vector<16x128xf32>
    %211 = math.tanh %210 : vector<16x128xf32>
    %212 = vector.extract_strided_slice %197 {offsets = [0, 384], sizes = [16, 128], strides = [1, 1]} : vector<16x512xf32> to vector<16x128xf32>
    %213 = arith.negf %212 : vector<16x128xf32>
    %214 = math.exp %213 : vector<16x128xf32>
    %cst_51 = arith.constant 1.000000e+00 : f32
    %215 = vector.broadcast %cst_51 : f32 to vector<16x128xf32>
    %216 = arith.addf %215, %214 : vector<16x128xf32>
    %217 = arith.divf %215, %216 : vector<16x128xf32>
    %218 = arith.mulf %209, %183 : vector<16x128xf32>
    %219 = arith.mulf %203, %211 : vector<16x128xf32>
    %220 = arith.addf %218, %219 : vector<16x128xf32>
    %221 = math.tanh %220 : vector<16x128xf32>
    %222 = arith.mulf %217, %221 : vector<16x128xf32>
    %223 = arith.truncf %222 : vector<16x128xf32> to vector<16x128xbf16>
    %224 = arith.index_cast %c5_i32 : i32 to index
    %c0_52 = arith.constant 0 : index
    %c0_53 = arith.constant 0 : index
    %225 = vector.load %arg6[%224, %c0_52, %c0_53] : memref<8x16x128xbf16, #tpu.memory_space<vmem>>, vector<1x16x128xbf16>
    %226 = vector.shape_cast %225 : vector<1x16x128xbf16> to vector<16x128xbf16>
    %227 = vector.shape_cast %223 : vector<16x128xbf16> to vector<1x16x128xbf16>
    tpu.vector_store %arg6[%224, %c0_52, %c0_53], %227 {strides = array<i32>} : memref<8x16x128xbf16, #tpu.memory_space<vmem>>, vector<1x16x128xbf16>,
    %228 = arith.truncf %222 : vector<16x128xf32> to vector<16x128xbf16>
    %c6_i32 = arith.constant 6 : i32
    %229 = arith.index_cast %c6_i32 : i32 to index
    %c0_54 = arith.constant 0 : index
    %c0_55 = arith.constant 0 : index
    %230 = vector.load %arg2[%229, %c0_54, %c0_55] : memref<8x16x512xbf16, #tpu.memory_space<vmem>>, vector<1x16x512xbf16>
    %231 = vector.shape_cast %230 : vector<1x16x512xbf16> to vector<16x512xbf16>
    %232 = arith.extf %231 : vector<16x512xbf16> to vector<16x512xf32>
    %cst_56 = arith.constant dense<0.000000e+00> : vector<16x512xf32>
    %233 = tpu.matmul %228, %3, %cst_56 {dimension_numbers = #tpu.dot_dimension_numbers<[1], [0], [0], [1], [0, 0, 1, 1], [], []>} : vector<16x128xbf16>, vector<128x512xbf16>, vector<16x512xf32> -> vector<16x512xf32>
    %234 = arith.addf %232, %233 : vector<16x512xf32>
    %235 = vector.extract_strided_slice %234 {offsets = [0, 0], sizes = [16, 128], strides = [1, 1]} : vector<16x512xf32> to vector<16x128xf32>
    %236 = arith.negf %235 : vector<16x128xf32>
    %237 = math.exp %236 : vector<16x128xf32>
    %cst_57 = arith.constant 1.000000e+00 : f32
    %238 = vector.broadcast %cst_57 : f32 to vector<16x128xf32>
    %239 = arith.addf %238, %237 : vector<16x128xf32>
    %240 = arith.divf %238, %239 : vector<16x128xf32>
    %241 = vector.extract_strided_slice %234 {offsets = [0, 128], sizes = [16, 128], strides = [1, 1]} : vector<16x512xf32> to vector<16x128xf32>
    %242 = arith.negf %241 : vector<16x128xf32>
    %243 = math.exp %242 : vector<16x128xf32>
    %cst_58 = arith.constant 1.000000e+00 : f32
    %244 = vector.broadcast %cst_58 : f32 to vector<16x128xf32>
    %245 = arith.addf %244, %243 : vector<16x128xf32>
    %246 = arith.divf %244, %245 : vector<16x128xf32>
    %247 = vector.extract_strided_slice %234 {offsets = [0, 256], sizes = [16, 128], strides = [1, 1]} : vector<16x512xf32> to vector<16x128xf32>
    %248 = math.tanh %247 : vector<16x128xf32>
    %249 = vector.extract_strided_slice %234 {offsets = [0, 384], sizes = [16, 128], strides = [1, 1]} : vector<16x512xf32> to vector<16x128xf32>
    %250 = arith.negf %249 : vector<16x128xf32>
    %251 = math.exp %250 : vector<16x128xf32>
    %cst_59 = arith.constant 1.000000e+00 : f32
    %252 = vector.broadcast %cst_59 : f32 to vector<16x128xf32>
    %253 = arith.addf %252, %251 : vector<16x128xf32>
    %254 = arith.divf %252, %253 : vector<16x128xf32>
    %255 = arith.mulf %246, %220 : vector<16x128xf32>
    %256 = arith.mulf %240, %248 : vector<16x128xf32>
    %257 = arith.addf %255, %256 : vector<16x128xf32>
    %258 = math.tanh %257 : vector<16x128xf32>
    %259 = arith.mulf %254, %258 : vector<16x128xf32>
    %260 = arith.truncf %259 : vector<16x128xf32> to vector<16x128xbf16>
    %261 = arith.index_cast %c6_i32 : i32 to index
    %c0_60 = arith.constant 0 : index
    %c0_61 = arith.constant 0 : index
    %262 = vector.load %arg6[%261, %c0_60, %c0_61] : memref<8x16x128xbf16, #tpu.memory_space<vmem>>, vector<1x16x128xbf16>
    %263 = vector.shape_cast %262 : vector<1x16x128xbf16> to vector<16x128xbf16>
    %264 = vector.shape_cast %260 : vector<16x128xbf16> to vector<1x16x128xbf16>
    tpu.vector_store %arg6[%261, %c0_60, %c0_61], %264 {strides = array<i32>} : memref<8x16x128xbf16, #tpu.memory_space<vmem>>, vector<1x16x128xbf16>,
    %265 = arith.truncf %259 : vector<16x128xf32> to vector<16x128xbf16>
    %c7_i32 = arith.constant 7 : i32
    %266 = arith.index_cast %c7_i32 : i32 to index
    %c0_62 = arith.constant 0 : index
    %c0_63 = arith.constant 0 : index
    %267 = vector.load %arg2[%266, %c0_62, %c0_63] : memref<8x16x512xbf16, #tpu.memory_space<vmem>>, vector<1x16x512xbf16>
    %268 = vector.shape_cast %267 : vector<1x16x512xbf16> to vector<16x512xbf16>
    %269 = arith.extf %268 : vector<16x512xbf16> to vector<16x512xf32>
    %cst_64 = arith.constant dense<0.000000e+00> : vector<16x512xf32>
    %270 = tpu.matmul %265, %3, %cst_64 {dimension_numbers = #tpu.dot_dimension_numbers<[1], [0], [0], [1], [0, 0, 1, 1], [], []>} : vector<16x128xbf16>, vector<128x512xbf16>, vector<16x512xf32> -> vector<16x512xf32>
    %271 = arith.addf %269, %270 : vector<16x512xf32>
    %272 = vector.extract_strided_slice %271 {offsets = [0, 0], sizes = [16, 128], strides = [1, 1]} : vector<16x512xf32> to vector<16x128xf32>
    %273 = arith.negf %272 : vector<16x128xf32>
    %274 = math.exp %273 : vector<16x128xf32>
    %cst_65 = arith.constant 1.000000e+00 : f32
    %275 = vector.broadcast %cst_65 : f32 to vector<16x128xf32>
    %276 = arith.addf %275, %274 : vector<16x128xf32>
    %277 = arith.divf %275, %276 : vector<16x128xf32>
    %278 = vector.extract_strided_slice %271 {offsets = [0, 128], sizes = [16, 128], strides = [1, 1]} : vector<16x512xf32> to vector<16x128xf32>
    %279 = arith.negf %278 : vector<16x128xf32>
    %280 = math.exp %279 : vector<16x128xf32>
    %cst_66 = arith.constant 1.000000e+00 : f32
    %281 = vector.broadcast %cst_66 : f32 to vector<16x128xf32>
    %282 = arith.addf %281, %280 : vector<16x128xf32>
    %283 = arith.divf %281, %282 : vector<16x128xf32>
    %284 = vector.extract_strided_slice %271 {offsets = [0, 256], sizes = [16, 128], strides = [1, 1]} : vector<16x512xf32> to vector<16x128xf32>
    %285 = math.tanh %284 : vector<16x128xf32>
    %286 = vector.extract_strided_slice %271 {offsets = [0, 384], sizes = [16, 128], strides = [1, 1]} : vector<16x512xf32> to vector<16x128xf32>
    %287 = arith.negf %286 : vector<16x128xf32>
    %288 = math.exp %287 : vector<16x128xf32>
    %cst_67 = arith.constant 1.000000e+00 : f32
    %289 = vector.broadcast %cst_67 : f32 to vector<16x128xf32>
    %290 = arith.addf %289, %288 : vector<16x128xf32>
    %291 = arith.divf %289, %290 : vector<16x128xf32>
    %292 = arith.mulf %283, %257 : vector<16x128xf32>
    %293 = arith.mulf %277, %285 : vector<16x128xf32>
    %294 = arith.addf %292, %293 : vector<16x128xf32>
    %295 = math.tanh %294 : vector<16x128xf32>
    %296 = arith.mulf %291, %295 : vector<16x128xf32>
    %297 = arith.truncf %296 : vector<16x128xf32> to vector<16x128xbf16>
    %298 = arith.index_cast %c7_i32 : i32 to index
    %c0_68 = arith.constant 0 : index
    %c0_69 = arith.constant 0 : index
    %299 = vector.load %arg6[%298, %c0_68, %c0_69] : memref<8x16x128xbf16, #tpu.memory_space<vmem>>, vector<1x16x128xbf16>
    %300 = vector.shape_cast %299 : vector<1x16x128xbf16> to vector<16x128xbf16>
    %301 = vector.shape_cast %297 : vector<16x128xbf16> to vector<1x16x128xbf16>
    tpu.vector_store %arg6[%298, %c0_68, %c0_69], %301 {strides = array<i32>} : memref<8x16x128xbf16, #tpu.memory_space<vmem>>, vector<1x16x128xbf16>,
    %302 = arith.truncf %296 : vector<16x128xf32> to vector<16x128xbf16>
    %c8_i32 = arith.constant 8 : i32
    %303 = arith.extf %302 : vector<16x128xbf16> to vector<16x128xf32>
    %c0_70 = arith.constant 0 : index
    %c0_71 = arith.constant 0 : index
    %304 = vector.load %arg7[%c0_70, %c0_71] : memref<16x128xf32, #tpu.memory_space<vmem>>, vector<16x128xf32>
    tpu.vector_store %arg7[%c0_70, %c0_71], %303 {strides = array<i32>} : memref<16x128xf32, #tpu.memory_space<vmem>>, vector<16x128xf32>,
    %c0_72 = arith.constant 0 : index
    %c0_73 = arith.constant 0 : index
    %305 = vector.load %arg8[%c0_72, %c0_73] : memref<16x128xf32, #tpu.memory_space<vmem>>, vector<16x128xf32>
    tpu.vector_store %arg8[%c0_72, %c0_73], %294 {strides = array<i32>} : memref<16x128xf32, #tpu.memory_space<vmem>>, vector<16x128xf32>,
    return
  }
  func.func @transform_0(%arg0: i32, %arg1: i32) -> (i32, i32, i32) {
    %c0_i32 = arith.constant 0 : i32
    %c0_i32_0 = arith.constant 0 : i32
    return %arg1, %arg0, %c0_i32 : i32, i32, i32
  }
  func.func @transform_1(%arg0: i32, %arg1: i32) -> (i32, i32) {
    %c0_i32 = arith.constant 0 : i32
    %c0_i32_0 = arith.constant 0 : i32
    return %arg0, %c0_i32 : i32, i32
  }
  func.func @transform_2(%arg0: i32, %arg1: i32) -> (i32, i32) {
    %c0_i32 = arith.constant 0 : i32
    %c0_i32_0 = arith.constant 0 : i32
    return %arg0, %c0_i32 : i32, i32
  }
  func.func @transform_3(%arg0: i32, %arg1: i32) -> (i32, i32) {
    %c0_i32 = arith.constant 0 : i32
    %c0_i32_0 = arith.constant 0 : i32
    %c0_i32_1 = arith.constant 0 : i32
    return %c0_i32, %c0_i32_0 : i32, i32
  }
  func.func @transform_4(%arg0: i32, %arg1: i32) -> (i32, i32, i32) {
    %c0_i32 = arith.constant 0 : i32
    %c0_i32_0 = arith.constant 0 : i32
    return %arg1, %arg0, %c0_i32 : i32, i32, i32
  }
  func.func @transform_5(%arg0: i32, %arg1: i32) -> (i32, i32) {
    %c0_i32 = arith.constant 0 : i32
    %c0_i32_0 = arith.constant 0 : i32
    return %arg0, %c0_i32 : i32, i32
  }
  func.func @transform_6(%arg0: i32, %arg1: i32) -> (i32, i32) {
    %c0_i32 = arith.constant 0 : i32
    %c0_i32_0 = arith.constant 0 : i32
    return %arg0, %c0_i32 : i32, i32
  }
}

</mosaic_0001>

<llo_original>
// kernel: rnn_model_forward.7
$region0: #{rnn_model_forward.7}
  #allocation0 [shape = 'u32[]', space=smem, size = 0x4, offset = 0x4, fixed_abs, tag = 'smem constant byte address 0x4 - core index']
  #allocation1 [shape = 'u32[144,128]{1,0:T(1,128)}', space=vmem, size = 0x12000, scoped, tag = 'internal scratch']
  %s0 = inlined_call_operand.vmem [shape: bf16[128,128], index: 0, kind: input, shape index: {}]
  %s1 = inlined_call_operand.vmem [shape: bf16[128,256], index: 1, kind: input, shape index: {}]
  %s2 = inlined_call_operand.vmem [shape: f32[1,256], index: 2, kind: input, shape index: {}]
  %s3 = inlined_call_operand.hbm [shape: f32[128,256], index: 3, kind: output, shape index: {}]
  %s4 = sld [smem:[#allocation0]]
  $region22: #{rnn_model_forward.7} parent=0
    _
  %s6 = ssub.s32 1, %s4
  %s7 = scalar_select 0, %s6, %s4
  $region1: #{rnn_model_forward.7} parent=0
    #allocation2 [shape = 'u8[131072]{0}', space=vmem, size = 0x20000, scoped, tag = 'output window, operand 0, single buffered']
    #allocation3 [shape = 's32[1]{0}', space=sflag, size = 0x4, scoped, tag = 'scoped memory for rnn_model_forward.7']
    %8 = vsyncpa [#allocation3], 0
    // Predicated region
    $region2: #{rnn_model_forward.7} parent=1 // pred_check
      _
    $region3: #{rnn_model_forward.7} parent=1 // pred_check_branch
      %10 = sbr.rel (0) target = $region5
    $region4: #{rnn_model_forward.7} parent=1 // pred_region
      _
    $region5: #{rnn_model_forward.7} parent=1 // pred_fallthru
      _
    // Predicated region
    $region6: #{rnn_model_forward.7} parent=1 // pred_check
      _
    $region7: #{rnn_model_forward.7} parent=1 // pred_check_branch
      %12 = sbr.rel (0) target = $region9
    $region8: #{rnn_model_forward.7} parent=1 // pred_region
      _
    $region9: #{rnn_model_forward.7} parent=1 // pred_fallthru
      _
    // Predicated region
    $region10: #{rnn_model_forward.7} parent=1 // pred_check
      _
    $region11: #{rnn_model_forward.7} parent=1 // pred_check_branch
      %14 = sbr.rel (0) target = $region13
    $region12: #{rnn_model_forward.7} parent=1 // pred_region
      _
    $region13: #{rnn_model_forward.7} parent=1 // pred_fallthru
      _
    %v16 = vld [vmem:[%s0] sm:$0xf]
    %v17 = vld [vmem:[%s0 + $0x4] sm:$0xf]
    %v18 = vld [vmem:[%s0 + $0x8] sm:$0xf]
    %v19 = vld [vmem:[%s0 + $0xc] sm:$0xf]
    %v20 = vld [vmem:[%s0 + $0x10] sm:$0xf]
    %v21 = vld [vmem:[%s0 + $0x14] sm:$0xf]
    %v22 = vld [vmem:[%s0 + $0x18] sm:$0xf]
    %v23 = vld [vmem:[%s0 + $0x1c] sm:$0xf]
    %v24 = vld [vmem:[%s0 + $0x20] sm:$0xf]
    %v25 = vld [vmem:[%s0 + $0x24] sm:$0xf]
    %v26 = vld [vmem:[%s0 + $0x28] sm:$0xf]
    %v27 = vld [vmem:[%s0 + $0x2c] sm:$0xf]
    %v28 = vld [vmem:[%s0 + $0x30] sm:$0xf]
    %v29 = vld [vmem:[%s0 + $0x34] sm:$0xf]
    %v30 = vld [vmem:[%s0 + $0x38] sm:$0xf]
    %v31 = vld [vmem:[%s0 + $0x3c] sm:$0xf]
    %v32 = vld [vmem:[%s1] sm:$0xff]
    %v33 = vld [vmem:[%s1 + $0x8] sm:$0xff]
    %v34 = vld [vmem:[%s1 + $0x10] sm:$0xff]
    %v35 = vld [vmem:[%s1 + $0x18] sm:$0xff]
    %v36 = vld [vmem:[%s1 + $0x20] sm:$0xff]
    %v37 = vld [vmem:[%s1 + $0x28] sm:$0xff]
    %v38 = vld [vmem:[%s1 + $0x30] sm:$0xff]
    %v39 = vld [vmem:[%s1 + $0x38] sm:$0xff]
    %v40 = vld [vmem:[%s1 + $0x40] sm:$0xff]
    %v41 = vld [vmem:[%s1 + $0x48] sm:$0xff]
    %v42 = vld [vmem:[%s1 + $0x50] sm:$0xff]
    %v43 = vld [vmem:[%s1 + $0x58] sm:$0xff]
    %v44 = vld [vmem:[%s1 + $0x60] sm:$0xff]
    %v45 = vld [vmem:[%s1 + $0x68] sm:$0xff]
    %v46 = vld [vmem:[%s1 + $0x70] sm:$0xff]
    %v47 = vld [vmem:[%s1 + $0x78] sm:$0xff]
    %v48 = vld [vmem:[%s2] sm:$0x3]
    %v50 = vlaneseq
    %v51 = vshrl.u32 %v50, 7
    %v52 = vsub.s32 0, %v51
    %v53 = vrot.slane %v48, %v52
    %v54 = vlaneseq
    %v55 = vshrl.u32 %v54, 7
    %v56 = vsub.s32 1, %v55
    %v57 = vrot.slane %v48, %v56
    %v76 = vunpack.c.l.b16 %v16
    %v77 = vunpack.c.l.b16 %v17
    %v78 = vunpack.c.l.b16 %v18
    %v79 = vunpack.c.l.b16 %v19
    %v80 = vunpack.c.l.b16 %v20
    %v81 = vunpack.c.l.b16 %v21
    %v82 = vunpack.c.l.b16 %v22
    %v83 = vunpack.c.l.b16 %v23
    %v84 = vunpack.c.l.b16 %v24
    %v85 = vunpack.c.l.b16 %v25
    %v86 = vunpack.c.l.b16 %v26
    %v87 = vunpack.c.l.b16 %v27
    %v88 = vunpack.c.l.b16 %v28
    %v89 = vunpack.c.l.b16 %v29
    %v90 = vunpack.c.l.b16 %v30
    %v91 = vunpack.c.l.b16 %v31
    %v92 = vpack.c.b16 %v77, %v76
    %v93 = vpack.c.b16 %v79, %v78
    %v94 = vpack.c.b16 %v81, %v80
    %v95 = vpack.c.b16 %v83, %v82
    %v96 = vpack.c.b16 %v85, %v84
    %v97 = vpack.c.b16 %v87, %v86
    %v98 = vpack.c.b16 %v89, %v88
    %v99 = vpack.c.b16 %v91, %v90
    %v124 = vunpack.c.l.b16 %v32
    %v125 = vunpack.c.h.b16 %v32
    %v126 = vunpack.c.l.b16 %v33
    %v127 = vunpack.c.h.b16 %v33
    %v128 = vunpack.c.l.b16 %v34
    %v129 = vunpack.c.h.b16 %v34
    %v130 = vunpack.c.l.b16 %v35
    %v131 = vunpack.c.h.b16 %v35
    %v132 = vunpack.c.l.b16 %v36
    %v133 = vunpack.c.h.b16 %v36
    %v134 = vunpack.c.l.b16 %v37
    %v135 = vunpack.c.h.b16 %v37
    %v136 = vunpack.c.l.b16 %v38
    %v137 = vunpack.c.h.b16 %v38
    %v138 = vunpack.c.l.b16 %v39
    %v139 = vunpack.c.h.b16 %v39
    %v140 = vunpack.c.l.b16 %v40
    %v141 = vunpack.c.h.b16 %v40
    %v142 = vunpack.c.l.b16 %v41
    %v143 = vunpack.c.h.b16 %v41
    %v144 = vunpack.c.l.b16 %v42
    %v145 = vunpack.c.h.b16 %v42
    %v146 = vunpack.c.l.b16 %v43
    %v147 = vunpack.c.h.b16 %v43
    %v148 = vunpack.c.l.b16 %v44
    %v149 = vunpack.c.h.b16 %v44
    %v150 = vunpack.c.l.b16 %v45
    %v151 = vunpack.c.h.b16 %v45
    %v152 = vunpack.c.l.b16 %v46
    %v153 = vunpack.c.h.b16 %v46
    %v154 = vunpack.c.l.b16 %v47
    %v155 = vunpack.c.h.b16 %v47
    %v156 = vpack.c.b16 %v126, %v124
    %v157 = vpack.c.b16 %v127, %v125
    %v158 = vpack.c.b16 %v130, %v128
    %v159 = vpack.c.b16 %v131, %v129
    %v160 = vpack.c.b16 %v134, %v132
    %v161 = vpack.c.b16 %v135, %v133
    %v162 = vpack.c.b16 %v138, %v136
    %v163 = vpack.c.b16 %v139, %v137
    %v164 = vpack.c.b16 %v142, %v140
    %v165 = vpack.c.b16 %v143, %v141
    %v166 = vpack.c.b16 %v146, %v144
    %v167 = vpack.c.b16 %v147, %v145
    %v168 = vpack.c.b16 %v150, %v148
    %v169 = vpack.c.b16 %v151, %v149
    %v170 = vpack.c.b16 %v154, %v152
    %v171 = vpack.c.b16 %v155, %v153
    %188 = vmatprep.subr.bf16.mxu0 %v171
    %189 = vmatpush1.bf16.msra.mxu0 %v170
    %190 = vmatprep.subr.bf16.mxu0 %v169
    %191 = vmatpush1.bf16.msra.mxu0 %v168
    %192 = vmatprep.subr.bf16.mxu0 %v167
    %193 = vmatpush1.bf16.msra.mxu0 %v166
    %194 = vmatprep.subr.bf16.mxu0 %v165
    %195 = vmatpush1.bf16.msra.mxu0 %v164
    %196 = vmatprep.subr.bf16.mxu0 %v163
    %197 = vmatpush1.bf16.msra.mxu0 %v162
    %198 = vmatprep.subr.bf16.mxu0 %v161
    %199 = vmatpush1.bf16.msra.mxu0 %v160
    %200 = vmatprep.subr.bf16.mxu0 %v159
    %201 = vmatpush1.bf16.msra.mxu0 %v158
    %202 = vmatprep.subr.bf16.mxu0 %v157
    %203 = vmatpush1.bf16.msra.mxu0 %v156
    %204 = vmatprep.subr.bf16.mxu0 0
    %205 = vmatpush2.bf16.msra.mxu0 0
    %206 = vmatprep.subr.bf16.mxu0 0
    %207 = vmatpush2.bf16.msra.mxu0 0
    %208 = vmatprep.subr.bf16.mxu0 0
    %209 = vmatpush2.bf16.msra.mxu0 0
    %210 = vmatprep.subr.bf16.mxu0 0
    %211 = vmatpush2.bf16.msra.mxu0 0
    %212 = vmatprep.subr.bf16.mxu0 0
    %213 = vmatpush2.bf16.msra.mxu0 0
    %214 = vmatprep.subr.bf16.mxu0 0
    %215 = vmatpush2.bf16.msra.mxu0 0
    %216 = vmatprep.subr.bf16.mxu0 0
    %217 = vmatpush2.bf16.msra.mxu0 0
    %218 = vmatprep.subr.bf16.mxu0 0
    %219 = vmatpush2.bf16.msra.mxu0 0
    %220 = vmatprep.mubr.bf16.mxu0 0
    %221 = vmatmul.mubr.bf16.gmra.mxu0 %v92
    %v222 = vpop.f32.mrf.mxu0
    %v223 = vadd.f32 %v53, %v222
    %v224 = vpop.f32.mrf.mxu0
    %v225 = vadd.f32 %v57, %v224
    %v226 = vpop.f32.mrf.mxu0
    %v227 = vadd.f32 %v53, %v226
    %v228 = vpop.f32.mrf.mxu0
    %v229 = vadd.f32 %v57, %v228
    %230 = vmatprep.mubr.bf16.mxu0 0
    %231 = vmatmul.mubr.bf16.gmra.mxu0 %v93
    %v232 = vpop.f32.mrf.mxu0
    %v233 = vadd.f32 %v53, %v232
    %v234 = vpop.f32.mrf.mxu0
    %v235 = vadd.f32 %v57, %v234
    %v236 = vpop.f32.mrf.mxu0
    %v237 = vadd.f32 %v53, %v236
    %v238 = vpop.f32.mrf.mxu0
    %v239 = vadd.f32 %v57, %v238
    %240 = vmatprep.mubr.bf16.mxu0 0
    %241 = vmatmul.mubr.bf16.gmra.mxu0 %v94
    %v242 = vpop.f32.mrf.mxu0
    %v243 = vadd.f32 %v53, %v242
    %v244 = vpop.f32.mrf.mxu0
    %v245 = vadd.f32 %v57, %v244
    %v246 = vpop.f32.mrf.mxu0
    %v247 = vadd.f32 %v53, %v246
    %v248 = vpop.f32.mrf.mxu0
    %v249 = vadd.f32 %v57, %v248
    %250 = vmatprep.mubr.bf16.mxu0 0
    %251 = vmatmul.mubr.bf16.gmra.mxu0 %v95
    %v252 = vpop.f32.mrf.mxu0
    %v253 = vadd.f32 %v53, %v252
    %v254 = vpop.f32.mrf.mxu0
    %v255 = vadd.f32 %v57, %v254
    %v256 = vpop.f32.mrf.mxu0
    %v257 = vadd.f32 %v53, %v256
    %v258 = vpop.f32.mrf.mxu0
    %v259 = vadd.f32 %v57, %v258
    %260 = vmatprep.mubr.bf16.mxu0 0
    %261 = vmatmul.mubr.bf16.gmra.mxu0 %v96
    %v262 = vpop.f32.mrf.mxu0
    %v263 = vadd.f32 %v53, %v262
    %v264 = vpop.f32.mrf.mxu0
    %v265 = vadd.f32 %v57, %v264
    %v266 = vpop.f32.mrf.mxu0
    %v267 = vadd.f32 %v53, %v266
    %v268 = vpop.f32.mrf.mxu0
    %v269 = vadd.f32 %v57, %v268
    %270 = vmatprep.mubr.bf16.mxu0 0
    %271 = vmatmul.mubr.bf16.gmra.mxu0 %v97
    %v272 = vpop.f32.mrf.mxu0
    %v273 = vadd.f32 %v53, %v272
    %v274 = vpop.f32.mrf.mxu0
    %v275 = vadd.f32 %v57, %v274
    %v276 = vpop.f32.mrf.mxu0
    %v277 = vadd.f32 %v53, %v276
    %v278 = vpop.f32.mrf.mxu0
    %v279 = vadd.f32 %v57, %v278
    %280 = vmatprep.mubr.bf16.mxu0 0
    %281 = vmatmul.mubr.bf16.gmra.mxu0 %v98
    %v282 = vpop.f32.mrf.mxu0
    %v283 = vadd.f32 %v53, %v282
    %v284 = vpop.f32.mrf.mxu0
    %v285 = vadd.f32 %v57, %v284
    %v286 = vpop.f32.mrf.mxu0
    %v287 = vadd.f32 %v53, %v286
    %v288 = vpop.f32.mrf.mxu0
    %v289 = vadd.f32 %v57, %v288
    %290 = vmatprep.mubr.bf16.mxu0 0
    %291 = vmatmul.mubr.bf16.gmra.mxu0 %v99
    %v292 = vpop.f32.mrf.mxu0
    %v293 = vadd.f32 %v53, %v292
    %v294 = vpop.f32.mrf.mxu0
    %v295 = vadd.f32 %v57, %v294
    %v296 = vpop.f32.mrf.mxu0
    %v297 = vadd.f32 %v53, %v296
    %v298 = vpop.f32.mrf.mxu0
    %v299 = vadd.f32 %v57, %v298
    %300 = vdwg.mxu0
    %301 = vst [vmem:[#allocation2] sm:$0xff] %v223
    %302 = vst [vmem:[#allocation2 + $0x8] sm:$0xff] %v225
    %303 = vst [vmem:[#allocation2 + $0x10] sm:$0xff] %v227
    %304 = vst [vmem:[#allocation2 + $0x18] sm:$0xff] %v229
    %305 = vst [vmem:[#allocation2 + $0x20] sm:$0xff] %v233
    %306 = vst [vmem:[#allocation2 + $0x28] sm:$0xff] %v235
    %307 = vst [vmem:[#allocation2 + $0x30] sm:$0xff] %v237
    %308 = vst [vmem:[#allocation2 + $0x38] sm:$0xff] %v239
    %309 = vst [vmem:[#allocation2 + $0x40] sm:$0xff] %v243
    %310 = vst [vmem:[#allocation2 + $0x48] sm:$0xff] %v245
    %311 = vst [vmem:[#allocation2 + $0x50] sm:$0xff] %v247
    %312 = vst [vmem:[#allocation2 + $0x58] sm:$0xff] %v249
    %313 = vst [vmem:[#allocation2 + $0x60] sm:$0xff] %v253
    %314 = vst [vmem:[#allocation2 + $0x68] sm:$0xff] %v255
    %315 = vst [vmem:[#allocation2 + $0x70] sm:$0xff] %v257
    %316 = vst [vmem:[#allocation2 + $0x78] sm:$0xff] %v259
    %317 = vst [vmem:[#allocation2 + $0x80] sm:$0xff] %v263
    %318 = vst [vmem:[#allocation2 + $0x88] sm:$0xff] %v265
    %319 = vst [vmem:[#allocation2 + $0x90] sm:$0xff] %v267
    %320 = vst [vmem:[#allocation2 + $0x98] sm:$0xff] %v269
    %321 = vst [vmem:[#allocation2 + $0xa0] sm:$0xff] %v273
    %322 = vst [vmem:[#allocation2 + $0xa8] sm:$0xff] %v275
    %323 = vst [vmem:[#allocation2 + $0xb0] sm:$0xff] %v277
    %324 = vst [vmem:[#allocation2 + $0xb8] sm:$0xff] %v279
    %325 = vst [vmem:[#allocation2 + $0xc0] sm:$0xff] %v283
    %326 = vst [vmem:[#allocation2 + $0xc8] sm:$0xff] %v285
    %327 = vst [vmem:[#allocation2 + $0xd0] sm:$0xff] %v287
    %328 = vst [vmem:[#allocation2 + $0xd8] sm:$0xff] %v289
    %329 = vst [vmem:[#allocation2 + $0xe0] sm:$0xff] %v293
    %330 = vst [vmem:[#allocation2 + $0xe8] sm:$0xff] %v295
    %331 = vst [vmem:[#allocation2 + $0xf0] sm:$0xff] %v297
    %332 = vst [vmem:[#allocation2 + $0xf8] sm:$0xff] %v299
    // Predicated region
    $region14: #{rnn_model_forward.7} parent=1 // pred_check
      _
    $region15: #{rnn_model_forward.7} parent=1 // pred_check_branch
      %334 = sbr.rel (0) target = $region17
    $region16: #{rnn_model_forward.7} parent=1 // pred_region
      %s336 = ssub.s32 4096, 4096
      %337 = vsyncadd [#allocation3], %s336
      %s338 = sshll.u32 [#allocation2], 4
      %s339 = int_to_ptr.vmem [resolvable:$true] %s338
      %344 = dma.vmem_to_hbm [thread:$0]  %s339, 4096, %s3, [#allocation3], 256, 256, 16
    $region17: #{rnn_model_forward.7} parent=1 // pred_fallthru
      _
    // Predicated region
    $region18: #{rnn_model_forward.7} parent=1 // pred_check
      _
    $region19: #{rnn_model_forward.7} parent=1 // pred_check_branch
      %346 = sbr.rel (0) target = $region21
    $region20: #{rnn_model_forward.7} parent=1 // pred_region
      %347 = dma.done [#allocation3], 4096
    $region21: #{rnn_model_forward.7} parent=1 // pred_fallthru
      _
    %348 = vsyncpa [#allocation3], 1

// kernel: rnn_model_forward.5
$region0: #{rnn_model_forward.5}
  #allocation0 [shape = 'u32[]', space=smem, size = 0x4, offset = 0x4, fixed_abs, tag = 'smem constant byte address 0x4 - core index']
  #allocation1 [shape = 'u32[144,128]{1,0:T(1,128)}', space=vmem, size = 0x12000, scoped, tag = 'internal scratch']
  %s0 = inlined_call_operand.vmem [shape: bf16[128,128], index: 0, kind: input, shape index: {}]
  %s1 = inlined_call_operand.vmem [shape: bf16[128,512], index: 1, kind: input, shape index: {}]
  %s2 = inlined_call_operand.vmem [shape: f32[1,512], index: 2, kind: input, shape index: {}]
  %s3 = inlined_call_operand.vmem [shape: bf16[128,512], index: 3, kind: output, shape index: {}]
  %s4 = sld [smem:[#allocation0]]
  $region22: #{rnn_model_forward.5} parent=0
    _
  %s6 = ssub.s32 1, %s4
  %s7 = scalar_select 0, %s6, %s4
  // Predicated region
  $region2: #{rnn_model_forward.5} parent=0 // pred_check
    _
  $region3: #{rnn_model_forward.5} parent=0 // pred_check_branch
    %9 = sbr.rel (0) target = $region5
  $region4: #{rnn_model_forward.5} parent=0 // pred_region
    _
  $region5: #{rnn_model_forward.5} parent=0 // pred_fallthru
    _
  // Predicated region
  $region6: #{rnn_model_forward.5} parent=0 // pred_check
    _
  $region7: #{rnn_model_forward.5} parent=0 // pred_check_branch
    %11 = sbr.rel (0) target = $region9
  $region8: #{rnn_model_forward.5} parent=0 // pred_region
    _
  $region9: #{rnn_model_forward.5} parent=0 // pred_fallthru
    _
  // Predicated region
  $region10: #{rnn_model_forward.5} parent=0 // pred_check
    _
  $region11: #{rnn_model_forward.5} parent=0 // pred_check_branch
    %13 = sbr.rel (0) target = $region13
  $region12: #{rnn_model_forward.5} parent=0 // pred_region
    _
  $region13: #{rnn_model_forward.5} parent=0 // pred_fallthru
    _
  %v15 = vld [vmem:[%s0] sm:$0xf]
  %v16 = vld [vmem:[%s0 + $0x4] sm:$0xf]
  %v17 = vld [vmem:[%s0 + $0x8] sm:$0xf]
  %v18 = vld [vmem:[%s0 + $0xc] sm:$0xf]
  %v19 = vld [vmem:[%s0 + $0x10] sm:$0xf]
  %v20 = vld [vmem:[%s0 + $0x14] sm:$0xf]
  %v21 = vld [vmem:[%s0 + $0x18] sm:$0xf]
  %v22 = vld [vmem:[%s0 + $0x1c] sm:$0xf]
  %v23 = vld [vmem:[%s0 + $0x20] sm:$0xf]
  %v24 = vld [vmem:[%s0 + $0x24] sm:$0xf]
  %v25 = vld [vmem:[%s0 + $0x28] sm:$0xf]
  %v26 = vld [vmem:[%s0 + $0x2c] sm:$0xf]
  %v27 = vld [vmem:[%s0 + $0x30] sm:$0xf]
  %v28 = vld [vmem:[%s0 + $0x34] sm:$0xf]
  %v29 = vld [vmem:[%s0 + $0x38] sm:$0xf]
  %v30 = vld [vmem:[%s0 + $0x3c] sm:$0xf]
  %v31 = vld [vmem:[%s1] sm:$0xff]
  %v32 = vld [vmem:[%s1 + $0x8] sm:$0xff]
  %v33 = vld [vmem:[%s1 + $0x10] sm:$0xff]
  %v34 = vld [vmem:[%s1 + $0x18] sm:$0xff]
  %v35 = vld [vmem:[%s1 + $0x20] sm:$0xff]
  %v36 = vld [vmem:[%s1 + $0x28] sm:$0xff]
  %v37 = vld [vmem:[%s1 + $0x30] sm:$0xff]
  %v38 = vld [vmem:[%s1 + $0x38] sm:$0xff]
  %v39 = vld [vmem:[%s1 + $0x40] sm:$0xff]
  %v40 = vld [vmem:[%s1 + $0x48] sm:$0xff]
  %v41 = vld [vmem:[%s1 + $0x50] sm:$0xff]
  %v42 = vld [vmem:[%s1 + $0x58] sm:$0xff]
  %v43 = vld [vmem:[%s1 + $0x60] sm:$0xff]
  %v44 = vld [vmem:[%s1 + $0x68] sm:$0xff]
  %v45 = vld [vmem:[%s1 + $0x70] sm:$0xff]
  %v46 = vld [vmem:[%s1 + $0x78] sm:$0xff]
  %v47 = vld [vmem:[%s1 + $0x80] sm:$0xff]
  %v48 = vld [vmem:[%s1 + $0x88] sm:$0xff]
  %v49 = vld [vmem:[%s1 + $0x90] sm:$0xff]
  %v50 = vld [vmem:[%s1 + $0x98] sm:$0xff]
  %v51 = vld [vmem:[%s1 + $0xa0] sm:$0xff]
  %v52 = vld [vmem:[%s1 + $0xa8] sm:$0xff]
  %v53 = vld [vmem:[%s1 + $0xb0] sm:$0xff]
  %v54 = vld [vmem:[%s1 + $0xb8] sm:$0xff]
  %v55 = vld [vmem:[%s1 + $0xc0] sm:$0xff]
  %v56 = vld [vmem:[%s1 + $0xc8] sm:$0xff]
  %v57 = vld [vmem:[%s1 + $0xd0] sm:$0xff]
  %v58 = vld [vmem:[%s1 + $0xd8] sm:$0xff]
  %v59 = vld [vmem:[%s1 + $0xe0] sm:$0xff]
  %v60 = vld [vmem:[%s1 + $0xe8] sm:$0xff]
  %v61 = vld [vmem:[%s1 + $0xf0] sm:$0xff]
  %v62 = vld [vmem:[%s1 + $0xf8] sm:$0xff]
  %v63 = vld [vmem:[%s2] sm:$0xf]
  %v65 = vlaneseq
  %v66 = vshrl.u32 %v65, 7
  %v67 = vsub.s32 0, %v66
  %v68 = vrot.slane %v63, %v67
  %v69 = vlaneseq
  %v70 = vshrl.u32 %v69, 7
  %v71 = vsub.s32 1, %v70
  %v72 = vrot.slane %v63, %v71
  %v73 = vlaneseq
  %v74 = vshrl.u32 %v73, 7
  %v75 = vsub.s32 2, %v74
  %v76 = vrot.slane %v63, %v75
  %v77 = vlaneseq
  %v78 = vshrl.u32 %v77, 7
  %v79 = vsub.s32 3, %v78
  %v80 = vrot.slane %v63, %v79
  %v101 = vunpack.c.l.b16 %v15
  %v102 = vunpack.c.l.b16 %v16
  %v103 = vunpack.c.l.b16 %v17
  %v104 = vunpack.c.l.b16 %v18
  %v105 = vunpack.c.l.b16 %v19
  %v106 = vunpack.c.l.b16 %v20
  %v107 = vunpack.c.l.b16 %v21
  %v108 = vunpack.c.l.b16 %v22
  %v109 = vunpack.c.l.b16 %v23
  %v110 = vunpack.c.l.b16 %v24
  %v111 = vunpack.c.l.b16 %v25
  %v112 = vunpack.c.l.b16 %v26
  %v113 = vunpack.c.l.b16 %v27
  %v114 = vunpack.c.l.b16 %v28
  %v115 = vunpack.c.l.b16 %v29
  %v116 = vunpack.c.l.b16 %v30
  %v117 = vpack.c.b16 %v102, %v101
  %v118 = vpack.c.b16 %v104, %v103
  %v119 = vpack.c.b16 %v106, %v105
  %v120 = vpack.c.b16 %v108, %v107
  %v121 = vpack.c.b16 %v110, %v109
  %v122 = vpack.c.b16 %v112, %v111
  %v123 = vpack.c.b16 %v114, %v113
  %v124 = vpack.c.b16 %v116, %v115
  %v165 = vunpack.c.l.b16 %v31
  %v166 = vunpack.c.h.b16 %v31
  %v167 = vunpack.c.l.b16 %v32
  %v168 = vunpack.c.h.b16 %v32
  %v169 = vunpack.c.l.b16 %v33
  %v170 = vunpack.c.h.b16 %v33
  %v171 = vunpack.c.l.b16 %v34
  %v172 = vunpack.c.h.b16 %v34
  %v173 = vunpack.c.l.b16 %v35
  %v174 = vunpack.c.h.b16 %v35
  %v175 = vunpack.c.l.b16 %v36
  %v176 = vunpack.c.h.b16 %v36
  %v177 = vunpack.c.l.b16 %v37
  %v178 = vunpack.c.h.b16 %v37
  %v179 = vunpack.c.l.b16 %v38
  %v180 = vunpack.c.h.b16 %v38
  %v181 = vunpack.c.l.b16 %v39
  %v182 = vunpack.c.h.b16 %v39
  %v183 = vunpack.c.l.b16 %v40
  %v184 = vunpack.c.h.b16 %v40
  %v185 = vunpack.c.l.b16 %v41
  %v186 = vunpack.c.h.b16 %v41
  %v187 = vunpack.c.l.b16 %v42
  %v188 = vunpack.c.h.b16 %v42
  %v189 = vunpack.c.l.b16 %v43
  %v190 = vunpack.c.h.b16 %v43
  %v191 = vunpack.c.l.b16 %v44
  %v192 = vunpack.c.h.b16 %v44
  %v193 = vunpack.c.l.b16 %v45
  %v194 = vunpack.c.h.b16 %v45
  %v195 = vunpack.c.l.b16 %v46
  %v196 = vunpack.c.h.b16 %v46
  %v197 = vunpack.c.l.b16 %v47
  %v198 = vunpack.c.h.b16 %v47
  %v199 = vunpack.c.l.b16 %v48
  %v200 = vunpack.c.h.b16 %v48
  %v201 = vunpack.c.l.b16 %v49
  %v202 = vunpack.c.h.b16 %v49
  %v203 = vunpack.c.l.b16 %v50
  %v204 = vunpack.c.h.b16 %v50
  %v205 = vunpack.c.l.b16 %v51
  %v206 = vunpack.c.h.b16 %v51
  %v207 = vunpack.c.l.b16 %v52
  %v208 = vunpack.c.h.b16 %v52
  %v209 = vunpack.c.l.b16 %v53
  %v210 = vunpack.c.h.b16 %v53
  %v211 = vunpack.c.l.b16 %v54
  %v212 = vunpack.c.h.b16 %v54
  %v213 = vunpack.c.l.b16 %v55
  %v214 = vunpack.c.h.b16 %v55
  %v215 = vunpack.c.l.b16 %v56
  %v216 = vunpack.c.h.b16 %v56
  %v217 = vunpack.c.l.b16 %v57
  %v218 = vunpack.c.h.b16 %v57
  %v219 = vunpack.c.l.b16 %v58
  %v220 = vunpack.c.h.b16 %v58
  %v221 = vunpack.c.l.b16 %v59
  %v222 = vunpack.c.h.b16 %v59
  %v223 = vunpack.c.l.b16 %v60
  %v224 = vunpack.c.h.b16 %v60
  %v225 = vunpack.c.l.b16 %v61
  %v226 = vunpack.c.h.b16 %v61
  %v227 = vunpack.c.l.b16 %v62
  %v228 = vunpack.c.h.b16 %v62
  %v229 = vpack.c.b16 %v169, %v165
  %v230 = vpack.c.b16 %v170, %v166
  %v231 = vpack.c.b16 %v171, %v167
  %v232 = vpack.c.b16 %v172, %v168
  %v233 = vpack.c.b16 %v177, %v173
  %v234 = vpack.c.b16 %v178, %v174
  %v235 = vpack.c.b16 %v179, %v175
  %v236 = vpack.c.b16 %v180, %v176
  %v237 = vpack.c.b16 %v185, %v181
  %v238 = vpack.c.b16 %v186, %v182
  %v239 = vpack.c.b16 %v187, %v183
  %v240 = vpack.c.b16 %v188, %v184
  %v241 = vpack.c.b16 %v193, %v189
  %v242 = vpack.c.b16 %v194, %v190
  %v243 = vpack.c.b16 %v195, %v191
  %v244 = vpack.c.b16 %v196, %v192
  %v245 = vpack.c.b16 %v201, %v197
  %v246 = vpack.c.b16 %v202, %v198
  %v247 = vpack.c.b16 %v203, %v199
  %v248 = vpack.c.b16 %v204, %v200
  %v249 = vpack.c.b16 %v209, %v205
  %v250 = vpack.c.b16 %v210, %v206
  %v251 = vpack.c.b16 %v211, %v207
  %v252 = vpack.c.b16 %v212, %v208
  %v253 = vpack.c.b16 %v217, %v213
  %v254 = vpack.c.b16 %v218, %v214
  %v255 = vpack.c.b16 %v219, %v215
  %v256 = vpack.c.b16 %v220, %v216
  %v257 = vpack.c.b16 %v225, %v221
  %v258 = vpack.c.b16 %v226, %v222
  %v259 = vpack.c.b16 %v227, %v223
  %v260 = vpack.c.b16 %v228, %v224
  %293 = vmatprep.subr.bf16.mxu0 %v258
  %294 = vmatpush1.bf16.msra.mxu0 %v257
  %295 = vmatprep.subr.bf16.mxu0 %v254
  %296 = vmatpush1.bf16.msra.mxu0 %v253
  %297 = vmatprep.subr.bf16.mxu0 %v250
  %298 = vmatpush1.bf16.msra.mxu0 %v249
  %299 = vmatprep.subr.bf16.mxu0 %v246
  %300 = vmatpush1.bf16.msra.mxu0 %v245
  %301 = vmatprep.subr.bf16.mxu0 %v242
  %302 = vmatpush1.bf16.msra.mxu0 %v241
  %303 = vmatprep.subr.bf16.mxu0 %v238
  %304 = vmatpush1.bf16.msra.mxu0 %v237
  %305 = vmatprep.subr.bf16.mxu0 %v234
  %306 = vmatpush1.bf16.msra.mxu0 %v233
  %307 = vmatprep.subr.bf16.mxu0 %v230
  %308 = vmatpush1.bf16.msra.mxu0 %v229
  %309 = vmatprep.subr.bf16.mxu0 0
  %310 = vmatpush2.bf16.msra.mxu0 0
  %311 = vmatprep.subr.bf16.mxu0 0
  %312 = vmatpush2.bf16.msra.mxu0 0
  %313 = vmatprep.subr.bf16.mxu0 0
  %314 = vmatpush2.bf16.msra.mxu0 0
  %315 = vmatprep.subr.bf16.mxu0 0
  %316 = vmatpush2.bf16.msra.mxu0 0
  %317 = vmatprep.subr.bf16.mxu0 0
  %318 = vmatpush2.bf16.msra.mxu0 0
  %319 = vmatprep.subr.bf16.mxu0 0
  %320 = vmatpush2.bf16.msra.mxu0 0
  %321 = vmatprep.subr.bf16.mxu0 0
  %322 = vmatpush2.bf16.msra.mxu0 0
  %323 = vmatprep.subr.bf16.mxu0 0
  %324 = vmatpush2.bf16.msra.mxu0 0
  %325 = vmatprep.mubr.bf16.mxu0 0
  %326 = vmatmul.mubr.bf16.gmra.mxu0 %v117
  %v327 = vpop.f32.mrf.mxu0
  %v328 = vadd.f32 %v68, %v327
  %v329 = vpop.f32.mrf.mxu0
  %v330 = vadd.f32 %v72, %v329
  %v331 = vpop.f32.mrf.mxu0
  %v332 = vadd.f32 %v68, %v331
  %v333 = vpop.f32.mrf.mxu0
  %v334 = vadd.f32 %v72, %v333
  %335 = vmatprep.mubr.bf16.mxu0 0
  %336 = vmatmul.mubr.bf16.gmra.mxu0 %v118
  %v337 = vpop.f32.mrf.mxu0
  %v338 = vadd.f32 %v68, %v337
  %v339 = vpop.f32.mrf.mxu0
  %v340 = vadd.f32 %v72, %v339
  %v341 = vpop.f32.mrf.mxu0
  %v342 = vadd.f32 %v68, %v341
  %v343 = vpop.f32.mrf.mxu0
  %v344 = vadd.f32 %v72, %v343
  %345 = vmatprep.mubr.bf16.mxu0 0
  %346 = vmatmul.mubr.bf16.gmra.mxu0 %v119
  %v347 = vpop.f32.mrf.mxu0
  %v348 = vadd.f32 %v68, %v347
  %v349 = vpop.f32.mrf.mxu0
  %v350 = vadd.f32 %v72, %v349
  %v351 = vpop.f32.mrf.mxu0
  %v352 = vadd.f32 %v68, %v351
  %v353 = vpop.f32.mrf.mxu0
  %v354 = vadd.f32 %v72, %v353
  %355 = vmatprep.mubr.bf16.mxu0 0
  %356 = vmatmul.mubr.bf16.gmra.mxu0 %v120
  %v357 = vpop.f32.mrf.mxu0
  %v358 = vadd.f32 %v68, %v357
  %v359 = vpop.f32.mrf.mxu0
  %v360 = vadd.f32 %v72, %v359
  %v361 = vpop.f32.mrf.mxu0
  %v362 = vadd.f32 %v68, %v361
  %v363 = vpop.f32.mrf.mxu0
  %v364 = vadd.f32 %v72, %v363
  %365 = vmatprep.mubr.bf16.mxu0 0
  %366 = vmatmul.mubr.bf16.gmra.mxu0 %v121
  %v367 = vpop.f32.mrf.mxu0
  %v368 = vadd.f32 %v68, %v367
  %v369 = vpop.f32.mrf.mxu0
  %v370 = vadd.f32 %v72, %v369
  %v371 = vpop.f32.mrf.mxu0
  %v372 = vadd.f32 %v68, %v371
  %v373 = vpop.f32.mrf.mxu0
  %v374 = vadd.f32 %v72, %v373
  %375 = vmatprep.mubr.bf16.mxu0 0
  %376 = vmatmul.mubr.bf16.gmra.mxu0 %v122
  %v377 = vpop.f32.mrf.mxu0
  %v378 = vadd.f32 %v68, %v377
  %v379 = vpop.f32.mrf.mxu0
  %v380 = vadd.f32 %v72, %v379
  %v381 = vpop.f32.mrf.mxu0
  %v382 = vadd.f32 %v68, %v381
  %v383 = vpop.f32.mrf.mxu0
  %v384 = vadd.f32 %v72, %v383
  %385 = vmatprep.mubr.bf16.mxu0 0
  %386 = vmatmul.mubr.bf16.gmra.mxu0 %v123
  %v387 = vpop.f32.mrf.mxu0
  %v388 = vadd.f32 %v68, %v387
  %v389 = vpop.f32.mrf.mxu0
  %v390 = vadd.f32 %v72, %v389
  %v391 = vpop.f32.mrf.mxu0
  %v392 = vadd.f32 %v68, %v391
  %v393 = vpop.f32.mrf.mxu0
  %v394 = vadd.f32 %v72, %v393
  %395 = vmatprep.mubr.bf16.mxu0 0
  %396 = vmatmul.mubr.bf16.gmra.mxu0 %v124
  %v397 = vpop.f32.mrf.mxu0
  %v398 = vadd.f32 %v68, %v397
  %v399 = vpop.f32.mrf.mxu0
  %v400 = vadd.f32 %v72, %v399
  %v401 = vpop.f32.mrf.mxu0
  %v402 = vadd.f32 %v68, %v401
  %v403 = vpop.f32.mrf.mxu0
  %v404 = vadd.f32 %v72, %v403
  %405 = vdwg.mxu0
  %406 = vmatprep.subr.bf16.mxu0 %v260
  %407 = vmatpush1.bf16.msra.mxu0 %v259
  %408 = vmatprep.subr.bf16.mxu0 %v256
  %409 = vmatpush1.bf16.msra.mxu0 %v255
  %410 = vmatprep.subr.bf16.mxu0 %v252
  %411 = vmatpush1.bf16.msra.mxu0 %v251
  %412 = vmatprep.subr.bf16.mxu0 %v248
  %413 = vmatpush1.bf16.msra.mxu0 %v247
  %414 = vmatprep.subr.bf16.mxu0 %v244
  %415 = vmatpush1.bf16.msra.mxu0 %v243
  %416 = vmatprep.subr.bf16.mxu0 %v240
  %417 = vmatpush1.bf16.msra.mxu0 %v239
  %418 = vmatprep.subr.bf16.mxu0 %v236
  %419 = vmatpush1.bf16.msra.mxu0 %v235
  %420 = vmatprep.subr.bf16.mxu0 %v232
  %421 = vmatpush1.bf16.msra.mxu0 %v231
  %422 = vmatprep.subr.bf16.mxu0 0
  %423 = vmatpush2.bf16.msra.mxu0 0
  %424 = vmatprep.subr.bf16.mxu0 0
  %425 = vmatpush2.bf16.msra.mxu0 0
  %426 = vmatprep.subr.bf16.mxu0 0
  %427 = vmatpush2.bf16.msra.mxu0 0
  %428 = vmatprep.subr.bf16.mxu0 0
  %429 = vmatpush2.bf16.msra.mxu0 0
  %430 = vmatprep.subr.bf16.mxu0 0
  %431 = vmatpush2.bf16.msra.mxu0 0
  %432 = vmatprep.subr.bf16.mxu0 0
  %433 = vmatpush2.bf16.msra.mxu0 0
  %434 = vmatprep.subr.bf16.mxu0 0
  %435 = vmatpush2.bf16.msra.mxu0 0
  %436 = vmatprep.subr.bf16.mxu0 0
  %437 = vmatpush2.bf16.msra.mxu0 0
  %438 = vmatprep.mubr.bf16.mxu0 0
  %439 = vmatmul.mubr.bf16.gmra.mxu0 %v117
  %v440 = vpop.f32.mrf.mxu0
  %v441 = vadd.f32 %v76, %v440
  %v442 = vpop.f32.mrf.mxu0
  %v443 = vadd.f32 %v80, %v442
  %v444 = vpop.f32.mrf.mxu0
  %v445 = vadd.f32 %v76, %v444
  %v446 = vpop.f32.mrf.mxu0
  %v447 = vadd.f32 %v80, %v446
  %448 = vmatprep.mubr.bf16.mxu0 0
  %449 = vmatmul.mubr.bf16.gmra.mxu0 %v118
  %v450 = vpop.f32.mrf.mxu0
  %v451 = vadd.f32 %v76, %v450
  %v452 = vpop.f32.mrf.mxu0
  %v453 = vadd.f32 %v80, %v452
  %v454 = vpop.f32.mrf.mxu0
  %v455 = vadd.f32 %v76, %v454
  %v456 = vpop.f32.mrf.mxu0
  %v457 = vadd.f32 %v80, %v456
  %458 = vmatprep.mubr.bf16.mxu0 0
  %459 = vmatmul.mubr.bf16.gmra.mxu0 %v119
  %v460 = vpop.f32.mrf.mxu0
  %v461 = vadd.f32 %v76, %v460
  %v462 = vpop.f32.mrf.mxu0
  %v463 = vadd.f32 %v80, %v462
  %v464 = vpop.f32.mrf.mxu0
  %v465 = vadd.f32 %v76, %v464
  %v466 = vpop.f32.mrf.mxu0
  %v467 = vadd.f32 %v80, %v466
  %468 = vmatprep.mubr.bf16.mxu0 0
  %469 = vmatmul.mubr.bf16.gmra.mxu0 %v120
  %v470 = vpop.f32.mrf.mxu0
  %v471 = vadd.f32 %v76, %v470
  %v472 = vpop.f32.mrf.mxu0
  %v473 = vadd.f32 %v80, %v472
  %v474 = vpop.f32.mrf.mxu0
  %v475 = vadd.f32 %v76, %v474
  %v476 = vpop.f32.mrf.mxu0
  %v477 = vadd.f32 %v80, %v476
  %478 = vmatprep.mubr.bf16.mxu0 0
  %479 = vmatmul.mubr.bf16.gmra.mxu0 %v121
  %v480 = vpop.f32.mrf.mxu0
  %v481 = vadd.f32 %v76, %v480
  %v482 = vpop.f32.mrf.mxu0
  %v483 = vadd.f32 %v80, %v482
  %v484 = vpop.f32.mrf.mxu0
  %v485 = vadd.f32 %v76, %v484
  %v486 = vpop.f32.mrf.mxu0
  %v487 = vadd.f32 %v80, %v486
  %488 = vmatprep.mubr.bf16.mxu0 0
  %489 = vmatmul.mubr.bf16.gmra.mxu0 %v122
  %v490 = vpop.f32.mrf.mxu0
  %v491 = vadd.f32 %v76, %v490
  %v492 = vpop.f32.mrf.mxu0
  %v493 = vadd.f32 %v80, %v492
  %v494 = vpop.f32.mrf.mxu0
  %v495 = vadd.f32 %v76, %v494
  %v496 = vpop.f32.mrf.mxu0
  %v497 = vadd.f32 %v80, %v496
  %498 = vmatprep.mubr.bf16.mxu0 0
  %499 = vmatmul.mubr.bf16.gmra.mxu0 %v123
  %v500 = vpop.f32.mrf.mxu0
  %v501 = vadd.f32 %v76, %v500
  %v502 = vpop.f32.mrf.mxu0
  %v503 = vadd.f32 %v80, %v502
  %v504 = vpop.f32.mrf.mxu0
  %v505 = vadd.f32 %v76, %v504
  %v506 = vpop.f32.mrf.mxu0
  %v507 = vadd.f32 %v80, %v506
  %508 = vmatprep.mubr.bf16.mxu0 0
  %509 = vmatmul.mubr.bf16.gmra.mxu0 %v124
  %v510 = vpop.f32.mrf.mxu0
  %v511 = vadd.f32 %v76, %v510
  %v512 = vpop.f32.mrf.mxu0
  %v513 = vadd.f32 %v80, %v512
  %v514 = vpop.f32.mrf.mxu0
  %v515 = vadd.f32 %v76, %v514
  %v516 = vpop.f32.mrf.mxu0
  %v517 = vadd.f32 %v80, %v516
  %518 = vdwg.mxu0
  %v519 = vpack.c.bf16 %v332, %v328
  %v520 = vpack.c.bf16 %v334, %v330
  %v521 = vpack.c.bf16 %v445, %v441
  %v522 = vpack.c.bf16 %v447, %v443
  %v523 = vpack.c.bf16 %v342, %v338
  %v524 = vpack.c.bf16 %v344, %v340
  %v525 = vpack.c.bf16 %v455, %v451
  %v526 = vpack.c.bf16 %v457, %v453
  %v527 = vpack.c.bf16 %v352, %v348
  %v528 = vpack.c.bf16 %v354, %v350
  %v529 = vpack.c.bf16 %v465, %v461
  %v530 = vpack.c.bf16 %v467, %v463
  %v531 = vpack.c.bf16 %v362, %v358
  %v532 = vpack.c.bf16 %v364, %v360
  %v533 = vpack.c.bf16 %v475, %v471
  %v534 = vpack.c.bf16 %v477, %v473
  %v535 = vpack.c.bf16 %v372, %v368
  %v536 = vpack.c.bf16 %v374, %v370
  %v537 = vpack.c.bf16 %v485, %v481
  %v538 = vpack.c.bf16 %v487, %v483
  %v539 = vpack.c.bf16 %v382, %v378
  %v540 = vpack.c.bf16 %v384, %v380
  %v541 = vpack.c.bf16 %v495, %v491
  %v542 = vpack.c.bf16 %v497, %v493
  %v543 = vpack.c.bf16 %v392, %v388
  %v544 = vpack.c.bf16 %v394, %v390
  %v545 = vpack.c.bf16 %v505, %v501
  %v546 = vpack.c.bf16 %v507, %v503
  %v547 = vpack.c.bf16 %v402, %v398
  %v548 = vpack.c.bf16 %v404, %v400
  %v549 = vpack.c.bf16 %v515, %v511
  %v550 = vpack.c.bf16 %v517, %v513
  %v583 = vunpack.c.l.b16 %v519
  %v584 = vunpack.c.l.b16 %v520
  %v585 = vunpack.c.l.b16 %v521
  %v586 = vunpack.c.l.b16 %v522
  %v587 = vunpack.c.h.b16 %v519
  %v588 = vunpack.c.h.b16 %v520
  %v589 = vunpack.c.h.b16 %v521
  %v590 = vunpack.c.h.b16 %v522
  %v591 = vunpack.c.l.b16 %v523
  %v592 = vunpack.c.l.b16 %v524
  %v593 = vunpack.c.l.b16 %v525
  %v594 = vunpack.c.l.b16 %v526
  %v595 = vunpack.c.h.b16 %v523
  %v596 = vunpack.c.h.b16 %v524
  %v597 = vunpack.c.h.b16 %v525
  %v598 = vunpack.c.h.b16 %v526
  %v599 = vunpack.c.l.b16 %v527
  %v600 = vunpack.c.l.b16 %v528
  %v601 = vunpack.c.l.b16 %v529
  %v602 = vunpack.c.l.b16 %v530
  %v603 = vunpack.c.h.b16 %v527
  %v604 = vunpack.c.h.b16 %v528
  %v605 = vunpack.c.h.b16 %v529
  %v606 = vunpack.c.h.b16 %v530
  %v607 = vunpack.c.l.b16 %v531
  %v608 = vunpack.c.l.b16 %v532
  %v609 = vunpack.c.l.b16 %v533
  %v610 = vunpack.c.l.b16 %v534
  %v611 = vunpack.c.h.b16 %v531
  %v612 = vunpack.c.h.b16 %v532
  %v613 = vunpack.c.h.b16 %v533
  %v614 = vunpack.c.h.b16 %v534
  %v615 = vunpack.c.l.b16 %v535
  %v616 = vunpack.c.l.b16 %v536
  %v617 = vunpack.c.l.b16 %v537
  %v618 = vunpack.c.l.b16 %v538
  %v619 = vunpack.c.h.b16 %v535
  %v620 = vunpack.c.h.b16 %v536
  %v621 = vunpack.c.h.b16 %v537
  %v622 = vunpack.c.h.b16 %v538
  %v623 = vunpack.c.l.b16 %v539
  %v624 = vunpack.c.l.b16 %v540
  %v625 = vunpack.c.l.b16 %v541
  %v626 = vunpack.c.l.b16 %v542
  %v627 = vunpack.c.h.b16 %v539
  %v628 = vunpack.c.h.b16 %v540
  %v629 = vunpack.c.h.b16 %v541
  %v630 = vunpack.c.h.b16 %v542
  %v631 = vunpack.c.l.b16 %v543
  %v632 = vunpack.c.l.b16 %v544
  %v633 = vunpack.c.l.b16 %v545
  %v634 = vunpack.c.l.b16 %v546
  %v635 = vunpack.c.h.b16 %v543
  %v636 = vunpack.c.h.b16 %v544
  %v637 = vunpack.c.h.b16 %v545
  %v638 = vunpack.c.h.b16 %v546
  %v639 = vunpack.c.l.b16 %v547
  %v640 = vunpack.c.l.b16 %v548
  %v641 = vunpack.c.l.b16 %v549
  %v642 = vunpack.c.l.b16 %v550
  %v643 = vunpack.c.h.b16 %v547
  %v644 = vunpack.c.h.b16 %v548
  %v645 = vunpack.c.h.b16 %v549
  %v646 = vunpack.c.h.b16 %v550
  %v647 = vpack.c.b16 %v584, %v583
  %v648 = vpack.c.b16 %v586, %v585
  %v649 = vpack.c.b16 %v588, %v587
  %v650 = vpack.c.b16 %v590, %v589
  %v651 = vpack.c.b16 %v592, %v591
  %v652 = vpack.c.b16 %v594, %v593
  %v653 = vpack.c.b16 %v596, %v595
  %v654 = vpack.c.b16 %v598, %v597
  %v655 = vpack.c.b16 %v600, %v599
  %v656 = vpack.c.b16 %v602, %v601
  %v657 = vpack.c.b16 %v604, %v603
  %v658 = vpack.c.b16 %v606, %v605
  %v659 = vpack.c.b16 %v608, %v607
  %v660 = vpack.c.b16 %v610, %v609
  %v661 = vpack.c.b16 %v612, %v611
  %v662 = vpack.c.b16 %v614, %v613
  %v663 = vpack.c.b16 %v616, %v615
  %v664 = vpack.c.b16 %v618, %v617
  %v665 = vpack.c.b16 %v620, %v619
  %v666 = vpack.c.b16 %v622, %v621
  %v667 = vpack.c.b16 %v624, %v623
  %v668 = vpack.c.b16 %v626, %v625
  %v669 = vpack.c.b16 %v628, %v627
  %v670 = vpack.c.b16 %v630, %v629
  %v671 = vpack.c.b16 %v632, %v631
  %v672 = vpack.c.b16 %v634, %v633
  %v673 = vpack.c.b16 %v636, %v635
  %v674 = vpack.c.b16 %v638, %v637
  %v675 = vpack.c.b16 %v640, %v639
  %v676 = vpack.c.b16 %v642, %v641
  %v677 = vpack.c.b16 %v644, %v643
  %v678 = vpack.c.b16 %v646, %v645
  %711 = vst [vmem:[%s3] sm:$0xff] %v647
  %712 = vst [vmem:[%s3 + $0x8] sm:$0xff] %v648
  %713 = vst [vmem:[%s3 + $0x10] sm:$0xff] %v649
  %714 = vst [vmem:[%s3 + $0x18] sm:$0xff] %v650
  %715 = vst [vmem:[%s3 + $0x20] sm:$0xff] %v651
  %716 = vst [vmem:[%s3 + $0x28] sm:$0xff] %v652
  %717 = vst [vmem:[%s3 + $0x30] sm:$0xff] %v653
  %718 = vst [vmem:[%s3 + $0x38] sm:$0xff] %v654
  %719 = vst [vmem:[%s3 + $0x40] sm:$0xff] %v655
  %720 = vst [vmem:[%s3 + $0x48] sm:$0xff] %v656
  %721 = vst [vmem:[%s3 + $0x50] sm:$0xff] %v657
  %722 = vst [vmem:[%s3 + $0x58] sm:$0xff] %v658
  %723 = vst [vmem:[%s3 + $0x60] sm:$0xff] %v659
  %724 = vst [vmem:[%s3 + $0x68] sm:$0xff] %v660
  %725 = vst [vmem:[%s3 + $0x70] sm:$0xff] %v661
  %726 = vst [vmem:[%s3 + $0x78] sm:$0xff] %v662
  %727 = vst [vmem:[%s3 + $0x80] sm:$0xff] %v663
  %728 = vst [vmem:[%s3 + $0x88] sm:$0xff] %v664
  %729 = vst [vmem:[%s3 + $0x90] sm:$0xff] %v665
  %730 = vst [vmem:[%s3 + $0x98] sm:$0xff] %v666
  %731 = vst [vmem:[%s3 + $0xa0] sm:$0xff] %v667
  %732 = vst [vmem:[%s3 + $0xa8] sm:$0xff] %v668
  %733 = vst [vmem:[%s3 + $0xb0] sm:$0xff] %v669
  %734 = vst [vmem:[%s3 + $0xb8] sm:$0xff] %v670
  %735 = vst [vmem:[%s3 + $0xc0] sm:$0xff] %v671
  %736 = vst [vmem:[%s3 + $0xc8] sm:$0xff] %v672
  %737 = vst [vmem:[%s3 + $0xd0] sm:$0xff] %v673
  %738 = vst [vmem:[%s3 + $0xd8] sm:$0xff] %v674
  %739 = vst [vmem:[%s3 + $0xe0] sm:$0xff] %v675
  %740 = vst [vmem:[%s3 + $0xe8] sm:$0xff] %v676
  %741 = vst [vmem:[%s3 + $0xf0] sm:$0xff] %v677
  %742 = vst [vmem:[%s3 + $0xf8] sm:$0xff] %v678
  // Predicated region
  $region14: #{rnn_model_forward.5} parent=0 // pred_check
    _
  $region15: #{rnn_model_forward.5} parent=0 // pred_check_branch
    %744 = sbr.rel (0) target = $region17
  $region16: #{rnn_model_forward.5} parent=0 // pred_region
    _
  $region17: #{rnn_model_forward.5} parent=0 // pred_fallthru
    _
  // Predicated region
  $region18: #{rnn_model_forward.5} parent=0 // pred_check
    _
  $region19: #{rnn_model_forward.5} parent=0 // pred_check_branch
    %746 = sbr.rel (0) target = $region21
  $region20: #{rnn_model_forward.5} parent=0 // pred_region
    _
  $region21: #{rnn_model_forward.5} parent=0 // pred_fallthru
    _

// kernel: rnn_model_forward.4
$region0: #{rnn_model_forward.4}
  #allocation0 [shape = 'u32[]', space=smem, size = 0x4, offset = 0x4, fixed_abs, tag = 'smem constant byte address 0x4 - core index']
  #allocation1 [shape = 'u32[144,128]{1,0:T(1,128)}', space=vmem, size = 0x12000, scoped, tag = 'internal scratch']
  %s0 = inlined_call_operand.vmem [shape: bf16[8,16,512], index: 0, kind: input, shape index: {}]
  %s1 = inlined_call_operand.vmem [shape: f32[16,128], index: 1, kind: input, shape index: {}]
  %s2 = inlined_call_operand.vmem [shape: f32[16,128], index: 2, kind: input, shape index: {}]
  %s3 = inlined_call_operand.vmem [shape: bf16[128,512], index: 3, kind: input, shape index: {}]
  %s4 = inlined_call_operand.vmem [shape: bf16[8,16,128], index: 4, kind: output, shape index: {0}]
  %s5 = inlined_call_operand.vmem [shape: f32[16,128], index: 5, kind: output, shape index: {1}]
  %s6 = inlined_call_operand.vmem [shape: f32[16,128], index: 6, kind: output, shape index: {2}]
  %7 = xla_tuple %s4, %s5, %s6
  %s8 = sld [smem:[#allocation0]]
  $region46: #{rnn_model_forward.4} parent=0
    _
  %s10 = ssub.s32 1, %s8
  %s11 = scalar_select 0, %s10, %s8
  // Predicated region
  $region2: #{rnn_model_forward.4} parent=0 // pred_check
    _
  $region3: #{rnn_model_forward.4} parent=0 // pred_check_branch
    %13 = sbr.rel (0) target = $region5
  $region4: #{rnn_model_forward.4} parent=0 // pred_region
    _
  $region5: #{rnn_model_forward.4} parent=0 // pred_fallthru
    _
  // Predicated region
  $region6: #{rnn_model_forward.4} parent=0 // pred_check
    _
  $region7: #{rnn_model_forward.4} parent=0 // pred_check_branch
    %15 = sbr.rel (0) target = $region9
  $region8: #{rnn_model_forward.4} parent=0 // pred_region
    _
  $region9: #{rnn_model_forward.4} parent=0 // pred_fallthru
    _
  // Predicated region
  $region10: #{rnn_model_forward.4} parent=0 // pred_check
    _
  $region11: #{rnn_model_forward.4} parent=0 // pred_check_branch
    %17 = sbr.rel (0) target = $region13
  $region12: #{rnn_model_forward.4} parent=0 // pred_region
    _
  $region13: #{rnn_model_forward.4} parent=0 // pred_fallthru
    _
  // Predicated region
  $region14: #{rnn_model_forward.4} parent=0 // pred_check
    _
  $region15: #{rnn_model_forward.4} parent=0 // pred_check_branch
    %19 = sbr.rel (0) target = $region17
  $region16: #{rnn_model_forward.4} parent=0 // pred_region
    _
  $region17: #{rnn_model_forward.4} parent=0 // pred_fallthru
    _
  %p21 = scmp.eq.s32.totalorder 0, 0
  // Predicated region
  $region18: #{rnn_model_forward.4} parent=0 // pred_check
    %p22 = pneg %p21
  $region19: #{rnn_model_forward.4} parent=0 // pred_check_branch
    %24 = sbr.rel (%p22) target = $region21
  $region20: #{rnn_model_forward.4} parent=0 // pred_region
    %v25 = vld [vmem:[%s1] sm:$0xff]
    %v26 = vld [vmem:[%s1 + $0x8] sm:$0xff]
    %27 = vst [vmem:[%s5] sm:$0xff] %v25
    %28 = vst [vmem:[%s5 + $0x8] sm:$0xff] %v26
    %v29 = vld [vmem:[%s2] sm:$0xff]
    %v30 = vld [vmem:[%s2 + $0x8] sm:$0xff]
    %31 = vst [vmem:[%s6] sm:$0xff] %v29
    %32 = vst [vmem:[%s6 + $0x8] sm:$0xff] %v30
  $region21: #{rnn_model_forward.4} parent=0 // pred_fallthru
    _
  %v33 = vld [vmem:[%s3] sm:$0xff]
  %v34 = vld [vmem:[%s3 + $0x8] sm:$0xff]
  %v35 = vld [vmem:[%s3 + $0x10] sm:$0xff]
  %v36 = vld [vmem:[%s3 + $0x18] sm:$0xff]
  %v37 = vld [vmem:[%s3 + $0x20] sm:$0xff]
  %v38 = vld [vmem:[%s3 + $0x28] sm:$0xff]
  %v39 = vld [vmem:[%s3 + $0x30] sm:$0xff]
  %v40 = vld [vmem:[%s3 + $0x38] sm:$0xff]
  %v41 = vld [vmem:[%s3 + $0x40] sm:$0xff]
  %v42 = vld [vmem:[%s3 + $0x48] sm:$0xff]
  %v43 = vld [vmem:[%s3 + $0x50] sm:$0xff]
  %v44 = vld [vmem:[%s3 + $0x58] sm:$0xff]
  %v45 = vld [vmem:[%s3 + $0x60] sm:$0xff]
  %v46 = vld [vmem:[%s3 + $0x68] sm:$0xff]
  %v47 = vld [vmem:[%s3 + $0x70] sm:$0xff]
  %v48 = vld [vmem:[%s3 + $0x78] sm:$0xff]
  %v49 = vld [vmem:[%s3 + $0x80] sm:$0xff]
  %v50 = vld [vmem:[%s3 + $0x88] sm:$0xff]
  %v51 = vld [vmem:[%s3 + $0x90] sm:$0xff]
  %v52 = vld [vmem:[%s3 + $0x98] sm:$0xff]
  %v53 = vld [vmem:[%s3 + $0xa0] sm:$0xff]
  %v54 = vld [vmem:[%s3 + $0xa8] sm:$0xff]
  %v55 = vld [vmem:[%s3 + $0xb0] sm:$0xff]
  %v56 = vld [vmem:[%s3 + $0xb8] sm:$0xff]
  %v57 = vld [vmem:[%s3 + $0xc0] sm:$0xff]
  %v58 = vld [vmem:[%s3 + $0xc8] sm:$0xff]
  %v59 = vld [vmem:[%s3 + $0xd0] sm:$0xff]
  %v60 = vld [vmem:[%s3 + $0xd8] sm:$0xff]
  %v61 = vld [vmem:[%s3 + $0xe0] sm:$0xff]
  %v62 = vld [vmem:[%s3 + $0xe8] sm:$0xff]
  %v63 = vld [vmem:[%s3 + $0xf0] sm:$0xff]
  %v64 = vld [vmem:[%s3 + $0xf8] sm:$0xff]
  %v65 = vld [vmem:[%s5] sm:$0xff]
  %v66 = vld [vmem:[%s5 + $0x8] sm:$0xff]
  %v67 = vpack.c.bf16 %v66, %v65
  %v68 = vld [vmem:[%s6] sm:$0xff]
  %v69 = vld [vmem:[%s6 + $0x8] sm:$0xff]
  %v70 = vld [vmem:[%s0] sm:$0xff]
  %v71 = vld [vmem:[%s0 + $0x8] sm:$0xff]
  %v72 = vld [vmem:[%s0 + $0x10] sm:$0xff]
  %v73 = vld [vmem:[%s0 + $0x18] sm:$0xff]
  %v74 = vunpack.c.l.bf16 %v70
  %v75 = vunpack.c.h.bf16 %v70
  %v76 = vunpack.c.l.bf16 %v71
  %v77 = vunpack.c.h.bf16 %v71
  %v78 = vunpack.c.l.bf16 %v72
  %v79 = vunpack.c.h.bf16 %v72
  %v80 = vunpack.c.l.bf16 %v73
  %v81 = vunpack.c.h.bf16 %v73
  %v114 = vunpack.c.l.b16 %v33
  %v115 = vunpack.c.h.b16 %v33
  %v116 = vunpack.c.l.b16 %v34
  %v117 = vunpack.c.h.b16 %v34
  %v118 = vunpack.c.l.b16 %v35
  %v119 = vunpack.c.h.b16 %v35
  %v120 = vunpack.c.l.b16 %v36
  %v121 = vunpack.c.h.b16 %v36
  %v122 = vunpack.c.l.b16 %v37
  %v123 = vunpack.c.h.b16 %v37
  %v124 = vunpack.c.l.b16 %v38
  %v125 = vunpack.c.h.b16 %v38
  %v126 = vunpack.c.l.b16 %v39
  %v127 = vunpack.c.h.b16 %v39
  %v128 = vunpack.c.l.b16 %v40
  %v129 = vunpack.c.h.b16 %v40
  %v130 = vunpack.c.l.b16 %v41
  %v131 = vunpack.c.h.b16 %v41
  %v132 = vunpack.c.l.b16 %v42
  %v133 = vunpack.c.h.b16 %v42
  %v134 = vunpack.c.l.b16 %v43
  %v135 = vunpack.c.h.b16 %v43
  %v136 = vunpack.c.l.b16 %v44
  %v137 = vunpack.c.h.b16 %v44
  %v138 = vunpack.c.l.b16 %v45
  %v139 = vunpack.c.h.b16 %v45
  %v140 = vunpack.c.l.b16 %v46
  %v141 = vunpack.c.h.b16 %v46
  %v142 = vunpack.c.l.b16 %v47
  %v143 = vunpack.c.h.b16 %v47
  %v144 = vunpack.c.l.b16 %v48
  %v145 = vunpack.c.h.b16 %v48
  %v146 = vunpack.c.l.b16 %v49
  %v147 = vunpack.c.h.b16 %v49
  %v148 = vunpack.c.l.b16 %v50
  %v149 = vunpack.c.h.b16 %v50
  %v150 = vunpack.c.l.b16 %v51
  %v151 = vunpack.c.h.b16 %v51
  %v152 = vunpack.c.l.b16 %v52
  %v153 = vunpack.c.h.b16 %v52
  %v154 = vunpack.c.l.b16 %v53
  %v155 = vunpack.c.h.b16 %v53
  %v156 = vunpack.c.l.b16 %v54
  %v157 = vunpack.c.h.b16 %v54
  %v158 = vunpack.c.l.b16 %v55
  %v159 = vunpack.c.h.b16 %v55
  %v160 = vunpack.c.l.b16 %v56
  %v161 = vunpack.c.h.b16 %v56
  %v162 = vunpack.c.l.b16 %v57
  %v163 = vunpack.c.h.b16 %v57
  %v164 = vunpack.c.l.b16 %v58
  %v165 = vunpack.c.h.b16 %v58
  %v166 = vunpack.c.l.b16 %v59
  %v167 = vunpack.c.h.b16 %v59
  %v168 = vunpack.c.l.b16 %v60
  %v169 = vunpack.c.h.b16 %v60
  %v170 = vunpack.c.l.b16 %v61
  %v171 = vunpack.c.h.b16 %v61
  %v172 = vunpack.c.l.b16 %v62
  %v173 = vunpack.c.h.b16 %v62
  %v174 = vunpack.c.l.b16 %v63
  %v175 = vunpack.c.h.b16 %v63
  %v176 = vunpack.c.l.b16 %v64
  %v177 = vunpack.c.h.b16 %v64
  %v178 = vpack.c.b16 %v118, %v114
  %v179 = vpack.c.b16 %v119, %v115
  %v180 = vpack.c.b16 %v120, %v116
  %v181 = vpack.c.b16 %v121, %v117
  %v182 = vpack.c.b16 %v126, %v122
  %v183 = vpack.c.b16 %v127, %v123
  %v184 = vpack.c.b16 %v128, %v124
  %v185 = vpack.c.b16 %v129, %v125
  %v186 = vpack.c.b16 %v134, %v130
  %v187 = vpack.c.b16 %v135, %v131
  %v188 = vpack.c.b16 %v136, %v132
  %v189 = vpack.c.b16 %v137, %v133
  %v190 = vpack.c.b16 %v142, %v138
  %v191 = vpack.c.b16 %v143, %v139
  %v192 = vpack.c.b16 %v144, %v140
  %v193 = vpack.c.b16 %v145, %v141
  %v194 = vpack.c.b16 %v150, %v146
  %v195 = vpack.c.b16 %v151, %v147
  %v196 = vpack.c.b16 %v152, %v148
  %v197 = vpack.c.b16 %v153, %v149
  %v198 = vpack.c.b16 %v158, %v154
  %v199 = vpack.c.b16 %v159, %v155
  %v200 = vpack.c.b16 %v160, %v156
  %v201 = vpack.c.b16 %v161, %v157
  %v202 = vpack.c.b16 %v166, %v162
  %v203 = vpack.c.b16 %v167, %v163
  %v204 = vpack.c.b16 %v168, %v164
  %v205 = vpack.c.b16 %v169, %v165
  %v206 = vpack.c.b16 %v174, %v170
  %v207 = vpack.c.b16 %v175, %v171
  %v208 = vpack.c.b16 %v176, %v172
  %v209 = vpack.c.b16 %v177, %v173
  %242 = vmatprep.subr.bf16.mxu0 %v207
  %243 = vmatpush1.bf16.msra.mxu0 %v206
  %244 = vmatprep.subr.bf16.mxu0 %v203
  %245 = vmatpush1.bf16.msra.mxu0 %v202
  %246 = vmatprep.subr.bf16.mxu0 %v199
  %247 = vmatpush1.bf16.msra.mxu0 %v198
  %248 = vmatprep.subr.bf16.mxu0 %v195
  %249 = vmatpush1.bf16.msra.mxu0 %v194
  %250 = vmatprep.subr.bf16.mxu0 %v191
  %251 = vmatpush1.bf16.msra.mxu0 %v190
  %252 = vmatprep.subr.bf16.mxu0 %v187
  %253 = vmatpush1.bf16.msra.mxu0 %v186
  %254 = vmatprep.subr.bf16.mxu0 %v183
  %255 = vmatpush1.bf16.msra.mxu0 %v182
  %256 = vmatprep.subr.bf16.mxu0 %v179
  %257 = vmatpush1.bf16.msra.mxu0 %v178
  %258 = vmatprep.subr.bf16.mxu0 0
  %259 = vmatpush2.bf16.msra.mxu0 0
  %260 = vmatprep.subr.bf16.mxu0 0
  %261 = vmatpush2.bf16.msra.mxu0 0
  %262 = vmatprep.subr.bf16.mxu0 0
  %263 = vmatpush2.bf16.msra.mxu0 0
  %264 = vmatprep.subr.bf16.mxu0 0
  %265 = vmatpush2.bf16.msra.mxu0 0
  %266 = vmatprep.subr.bf16.mxu0 0
  %267 = vmatpush2.bf16.msra.mxu0 0
  %268 = vmatprep.subr.bf16.mxu0 0
  %269 = vmatpush2.bf16.msra.mxu0 0
  %270 = vmatprep.subr.bf16.mxu0 0
  %271 = vmatpush2.bf16.msra.mxu0 0
  %272 = vmatprep.subr.bf16.mxu0 0
  %273 = vmatpush2.bf16.msra.mxu0 0
  %274 = vmatprep.mubr.bf16.mxu0 0
  %275 = vmatmul.mubr.bf16.gmra.mxu0 %v67
  %v276 = vpop.f32.mrf.mxu0
  %v277 = vadd.f32 0.0, %v276
  %v278 = vpop.f32.mrf.mxu0
  %v279 = vadd.f32 0.0, %v278
  %v280 = vpop.f32.mrf.mxu0
  %v281 = vadd.f32 0.0, %v280
  %v282 = vpop.f32.mrf.mxu0
  %v283 = vadd.f32 0.0, %v282
  %284 = vdwg.mxu0
  %285 = vmatprep.subr.bf16.mxu0 %v209
  %286 = vmatpush1.bf16.msra.mxu0 %v208
  %287 = vmatprep.subr.bf16.mxu0 %v205
  %288 = vmatpush1.bf16.msra.mxu0 %v204
  %289 = vmatprep.subr.bf16.mxu0 %v201
  %290 = vmatpush1.bf16.msra.mxu0 %v200
  %291 = vmatprep.subr.bf16.mxu0 %v197
  %292 = vmatpush1.bf16.msra.mxu0 %v196
  %293 = vmatprep.subr.bf16.mxu0 %v193
  %294 = vmatpush1.bf16.msra.mxu0 %v192
  %295 = vmatprep.subr.bf16.mxu0 %v189
  %296 = vmatpush1.bf16.msra.mxu0 %v188
  %297 = vmatprep.subr.bf16.mxu0 %v185
  %298 = vmatpush1.bf16.msra.mxu0 %v184
  %299 = vmatprep.subr.bf16.mxu0 %v181
  %300 = vmatpush1.bf16.msra.mxu0 %v180
  %301 = vmatprep.subr.bf16.mxu0 0
  %302 = vmatpush2.bf16.msra.mxu0 0
  %303 = vmatprep.subr.bf16.mxu0 0
  %304 = vmatpush2.bf16.msra.mxu0 0
  %305 = vmatprep.subr.bf16.mxu0 0
  %306 = vmatpush2.bf16.msra.mxu0 0
  %307 = vmatprep.subr.bf16.mxu0 0
  %308 = vmatpush2.bf16.msra.mxu0 0
  %309 = vmatprep.subr.bf16.mxu0 0
  %310 = vmatpush2.bf16.msra.mxu0 0
  %311 = vmatprep.subr.bf16.mxu0 0
  %312 = vmatpush2.bf16.msra.mxu0 0
  %313 = vmatprep.subr.bf16.mxu0 0
  %314 = vmatpush2.bf16.msra.mxu0 0
  %315 = vmatprep.subr.bf16.mxu0 0
  %316 = vmatpush2.bf16.msra.mxu0 0
  %317 = vmatprep.mubr.bf16.mxu0 0
  %318 = vmatmul.mubr.bf16.gmra.mxu0 %v67
  %v319 = vpop.f32.mrf.mxu0
  %v320 = vadd.f32 0.0, %v319
  %v321 = vpop.f32.mrf.mxu0
  %v322 = vadd.f32 0.0, %v321
  %v323 = vpop.f32.mrf.mxu0
  %v324 = vadd.f32 0.0, %v323
  %v325 = vpop.f32.mrf.mxu0
  %v326 = vadd.f32 0.0, %v325
  %327 = vdwg.mxu0
  %v328 = vadd.f32 %v74, %v277
  %v329 = vadd.f32 %v75, %v279
  %v330 = vadd.f32 %v76, %v320
  %v331 = vadd.f32 %v77, %v322
  %v332 = vadd.f32 %v78, %v281
  %v333 = vadd.f32 %v79, %v283
  %v334 = vadd.f32 %v80, %v324
  %v335 = vadd.f32 %v81, %v326
  %v336 = vxor.u32 %v328, 2147483648
  %v337 = vxor.u32 %v332, 2147483648
  %v338 = vmul.f32 %v336, 1.442695
  %v339 = vpow.pop %v338
  %v340 = vmul.f32 %v337, 1.442695
  %v341 = vpow.pop %v340
  %v342 = vadd.f32 %v339, 1.0
  %v343 = vadd.f32 %v341, 1.0
  %v344 = vrcp.pop %v342
  %v345 = vmul.f32 1.0, %v344
  %v346 = vrcp.pop %v343
  %v347 = vmul.f32 1.0, %v346
  %v348 = vxor.u32 %v329, 2147483648
  %v349 = vxor.u32 %v333, 2147483648
  %v350 = vmul.f32 %v348, 1.442695
  %v351 = vpow.pop %v350
  %v352 = vmul.f32 %v349, 1.442695
  %v353 = vpow.pop %v352
  %v354 = vadd.f32 %v351, 1.0
  %v355 = vadd.f32 %v353, 1.0
  %v356 = vrcp.pop %v354
  %v357 = vmul.f32 1.0, %v356
  %v358 = vrcp.pop %v355
  %v359 = vmul.f32 1.0, %v358
  %v360 = vtanh.pop %v330
  %v361 = vtanh.pop %v334
  %v362 = vxor.u32 %v331, 2147483648
  %v363 = vxor.u32 %v335, 2147483648
  %v364 = vmul.f32 %v362, 1.442695
  %v365 = vpow.pop %v364
  %v366 = vmul.f32 %v363, 1.442695
  %v367 = vpow.pop %v366
  %v368 = vadd.f32 %v365, 1.0
  %v369 = vadd.f32 %v367, 1.0
  %v370 = vrcp.pop %v368
  %v371 = vmul.f32 1.0, %v370
  %v372 = vrcp.pop %v369
  %v373 = vmul.f32 1.0, %v372
  %v374 = vmul.f32 %v357, %v68
  %v375 = vmul.f32 %v359, %v69
  %v376 = vmul.f32 %v345, %v360
  %v377 = vmul.f32 %v347, %v361
  %v378 = vadd.f32 %v374, %v376
  %v379 = vadd.f32 %v375, %v377
  %v380 = vtanh.pop %v378
  %v381 = vtanh.pop %v379
  %v382 = vmul.f32 %v371, %v380
  %v383 = vmul.f32 %v373, %v381
  %v384 = vpack.c.bf16 %v383, %v382
  %v386 = vunpack.c.l.b16 %v384
  %v387 = vunpack.c.h.b16 %v384
  %v388 = vpack.c.b16 %v386, %v386
  %v389 = vpack.c.b16 %v387, %v387
  %392 = vst [vmem:[%s4] sm:$0xf] %v388
  %393 = vst [vmem:[%s4 + $0x4] sm:$0xf] %v389
  %s394 = scalar_lea.vmem %s0, 32
  %v395 = vld [vmem:[%s394] sm:$0xff]
  %v396 = vld [vmem:[%s394 + $0x8] sm:$0xff]
  %v397 = vld [vmem:[%s394 + $0x10] sm:$0xff]
  %v398 = vld [vmem:[%s394 + $0x18] sm:$0xff]
  %v399 = vunpack.c.l.bf16 %v395
  %v400 = vunpack.c.h.bf16 %v395
  %v401 = vunpack.c.l.bf16 %v396
  %v402 = vunpack.c.h.bf16 %v396
  %v403 = vunpack.c.l.bf16 %v397
  %v404 = vunpack.c.h.bf16 %v397
  %v405 = vunpack.c.l.bf16 %v398
  %v406 = vunpack.c.h.bf16 %v398
  %407 = vmatprep.subr.bf16.mxu0 %v207
  %408 = vmatpush1.bf16.msra.mxu0 %v206
  %409 = vmatprep.subr.bf16.mxu0 %v203
  %410 = vmatpush1.bf16.msra.mxu0 %v202
  %411 = vmatprep.subr.bf16.mxu0 %v199
  %412 = vmatpush1.bf16.msra.mxu0 %v198
  %413 = vmatprep.subr.bf16.mxu0 %v195
  %414 = vmatpush1.bf16.msra.mxu0 %v194
  %415 = vmatprep.subr.bf16.mxu0 %v191
  %416 = vmatpush1.bf16.msra.mxu0 %v190
  %417 = vmatprep.subr.bf16.mxu0 %v187
  %418 = vmatpush1.bf16.msra.mxu0 %v186
  %419 = vmatprep.subr.bf16.mxu0 %v183
  %420 = vmatpush1.bf16.msra.mxu0 %v182
  %421 = vmatprep.subr.bf16.mxu0 %v179
  %422 = vmatpush1.bf16.msra.mxu0 %v178
  %423 = vmatprep.subr.bf16.mxu0 0
  %424 = vmatpush2.bf16.msra.mxu0 0
  %425 = vmatprep.subr.bf16.mxu0 0
  %426 = vmatpush2.bf16.msra.mxu0 0
  %427 = vmatprep.subr.bf16.mxu0 0
  %428 = vmatpush2.bf16.msra.mxu0 0
  %429 = vmatprep.subr.bf16.mxu0 0
  %430 = vmatpush2.bf16.msra.mxu0 0
  %431 = vmatprep.subr.bf16.mxu0 0
  %432 = vmatpush2.bf16.msra.mxu0 0
  %433 = vmatprep.subr.bf16.mxu0 0
  %434 = vmatpush2.bf16.msra.mxu0 0
  %435 = vmatprep.subr.bf16.mxu0 0
  %436 = vmatpush2.bf16.msra.mxu0 0
  %437 = vmatprep.subr.bf16.mxu0 0
  %438 = vmatpush2.bf16.msra.mxu0 0
  %439 = vmatprep.mubr.bf16.mxu0 0
  %440 = vmatmul.mubr.bf16.gmra.mxu0 %v384
  %v441 = vpop.f32.mrf.mxu0
  %v442 = vadd.f32 0.0, %v441
  %v443 = vpop.f32.mrf.mxu0
  %v444 = vadd.f32 0.0, %v443
  %v445 = vpop.f32.mrf.mxu0
  %v446 = vadd.f32 0.0, %v445
  %v447 = vpop.f32.mrf.mxu0
  %v448 = vadd.f32 0.0, %v447
  %449 = vdwg.mxu0
  %450 = vmatprep.subr.bf16.mxu0 %v209
  %451 = vmatpush1.bf16.msra.mxu0 %v208
  %452 = vmatprep.subr.bf16.mxu0 %v205
  %453 = vmatpush1.bf16.msra.mxu0 %v204
  %454 = vmatprep.subr.bf16.mxu0 %v201
  %455 = vmatpush1.bf16.msra.mxu0 %v200
  %456 = vmatprep.subr.bf16.mxu0 %v197
  %457 = vmatpush1.bf16.msra.mxu0 %v196
  %458 = vmatprep.subr.bf16.mxu0 %v193
  %459 = vmatpush1.bf16.msra.mxu0 %v192
  %460 = vmatprep.subr.bf16.mxu0 %v189
  %461 = vmatpush1.bf16.msra.mxu0 %v188
  %462 = vmatprep.subr.bf16.mxu0 %v185
  %463 = vmatpush1.bf16.msra.mxu0 %v184
  %464 = vmatprep.subr.bf16.mxu0 %v181
  %465 = vmatpush1.bf16.msra.mxu0 %v180
  %466 = vmatprep.subr.bf16.mxu0 0
  %467 = vmatpush2.bf16.msra.mxu0 0
  %468 = vmatprep.subr.bf16.mxu0 0
  %469 = vmatpush2.bf16.msra.mxu0 0
  %470 = vmatprep.subr.bf16.mxu0 0
  %471 = vmatpush2.bf16.msra.mxu0 0
  %472 = vmatprep.subr.bf16.mxu0 0
  %473 = vmatpush2.bf16.msra.mxu0 0
  %474 = vmatprep.subr.bf16.mxu0 0
  %475 = vmatpush2.bf16.msra.mxu0 0
  %476 = vmatprep.subr.bf16.mxu0 0
  %477 = vmatpush2.bf16.msra.mxu0 0
  %478 = vmatprep.subr.bf16.mxu0 0
  %479 = vmatpush2.bf16.msra.mxu0 0
  %480 = vmatprep.subr.bf16.mxu0 0
  %481 = vmatpush2.bf16.msra.mxu0 0
  %482 = vmatprep.mubr.bf16.mxu0 0
  %483 = vmatmul.mubr.bf16.gmra.mxu0 %v384
  %v484 = vpop.f32.mrf.mxu0
  %v485 = vadd.f32 0.0, %v484
  %v486 = vpop.f32.mrf.mxu0
  %v487 = vadd.f32 0.0, %v486
  %v488 = vpop.f32.mrf.mxu0
  %v489 = vadd.f32 0.0, %v488
  %v490 = vpop.f32.mrf.mxu0
  %v491 = vadd.f32 0.0, %v490
  %492 = vdwg.mxu0
  %v493 = vadd.f32 %v399, %v442
  %v494 = vadd.f32 %v400, %v444
  %v495 = vadd.f32 %v401, %v485
  %v496 = vadd.f32 %v402, %v487
  %v497 = vadd.f32 %v403, %v446
  %v498 = vadd.f32 %v404, %v448
  %v499 = vadd.f32 %v405, %v489
  %v500 = vadd.f32 %v406, %v491
  %v501 = vxor.u32 %v493, 2147483648
  %v502 = vxor.u32 %v497, 2147483648
  %v503 = vmul.f32 %v501, 1.442695
  %v504 = vpow.pop %v503
  %v505 = vmul.f32 %v502, 1.442695
  %v506 = vpow.pop %v505
  %v507 = vadd.f32 %v504, 1.0
  %v508 = vadd.f32 %v506, 1.0
  %v509 = vrcp.pop %v507
  %v510 = vmul.f32 1.0, %v509
  %v511 = vrcp.pop %v508
  %v512 = vmul.f32 1.0, %v511
  %v513 = vxor.u32 %v494, 2147483648
  %v514 = vxor.u32 %v498, 2147483648
  %v515 = vmul.f32 %v513, 1.442695
  %v516 = vpow.pop %v515
  %v517 = vmul.f32 %v514, 1.442695
  %v518 = vpow.pop %v517
  %v519 = vadd.f32 %v516, 1.0
  %v520 = vadd.f32 %v518, 1.0
  %v521 = vrcp.pop %v519
  %v522 = vmul.f32 1.0, %v521
  %v523 = vrcp.pop %v520
  %v524 = vmul.f32 1.0, %v523
  %v525 = vtanh.pop %v495
  %v526 = vtanh.pop %v499
  %v527 = vxor.u32 %v496, 2147483648
  %v528 = vxor.u32 %v500, 2147483648
  %v529 = vmul.f32 %v527, 1.442695
  %v530 = vpow.pop %v529
  %v531 = vmul.f32 %v528, 1.442695
  %v532 = vpow.pop %v531
  %v533 = vadd.f32 %v530, 1.0
  %v534 = vadd.f32 %v532, 1.0
  %v535 = vrcp.pop %v533
  %v536 = vmul.f32 1.0, %v535
  %v537 = vrcp.pop %v534
  %v538 = vmul.f32 1.0, %v537
  %v539 = vmul.f32 %v522, %v378
  %v540 = vmul.f32 %v524, %v379
  %v541 = vmul.f32 %v510, %v525
  %v542 = vmul.f32 %v512, %v526
  %v543 = vadd.f32 %v539, %v541
  %v544 = vadd.f32 %v540, %v542
  %v545 = vtanh.pop %v543
  %v546 = vtanh.pop %v544
  %v547 = vmul.f32 %v536, %v545
  %v548 = vmul.f32 %v538, %v546
  %v549 = vpack.c.bf16 %v548, %v547
  %v551 = vunpack.c.l.b16 %v549
  %v552 = vunpack.c.h.b16 %v549
  %v553 = vpack.c.b16 %v551, %v551
  %v554 = vpack.c.b16 %v552, %v552
  %s557 = scalar_lea.vmem %s4, 8
  %558 = vst [vmem:[%s557] sm:$0xf] %v553
  %559 = vst [vmem:[%s557 + $0x4] sm:$0xf] %v554
  %s560 = scalar_lea.vmem %s0, 64
  %v561 = vld [vmem:[%s560] sm:$0xff]
  %v562 = vld [vmem:[%s560 + $0x8] sm:$0xff]
  %v563 = vld [vmem:[%s560 + $0x10] sm:$0xff]
  %v564 = vld [vmem:[%s560 + $0x18] sm:$0xff]
  %v565 = vunpack.c.l.bf16 %v561
  %v566 = vunpack.c.h.bf16 %v561
  %v567 = vunpack.c.l.bf16 %v562
  %v568 = vunpack.c.h.bf16 %v562
  %v569 = vunpack.c.l.bf16 %v563
  %v570 = vunpack.c.h.bf16 %v563
  %v571 = vunpack.c.l.bf16 %v564
  %v572 = vunpack.c.h.bf16 %v564
  %573 = vmatprep.subr.bf16.mxu0 %v207
  %574 = vmatpush1.bf16.msra.mxu0 %v206
  %575 = vmatprep.subr.bf16.mxu0 %v203
  %576 = vmatpush1.bf16.msra.mxu0 %v202
  %577 = vmatprep.subr.bf16.mxu0 %v199
  %578 = vmatpush1.bf16.msra.mxu0 %v198
  %579 = vmatprep.subr.bf16.mxu0 %v195
  %580 = vmatpush1.bf16.msra.mxu0 %v194
  %581 = vmatprep.subr.bf16.mxu0 %v191
  %582 = vmatpush1.bf16.msra.mxu0 %v190
  %583 = vmatprep.subr.bf16.mxu0 %v187
  %584 = vmatpush1.bf16.msra.mxu0 %v186
  %585 = vmatprep.subr.bf16.mxu0 %v183
  %586 = vmatpush1.bf16.msra.mxu0 %v182
  %587 = vmatprep.subr.bf16.mxu0 %v179
  %588 = vmatpush1.bf16.msra.mxu0 %v178
  %589 = vmatprep.subr.bf16.mxu0 0
  %590 = vmatpush2.bf16.msra.mxu0 0
  %591 = vmatprep.subr.bf16.mxu0 0
  %592 = vmatpush2.bf16.msra.mxu0 0
  %593 = vmatprep.subr.bf16.mxu0 0
  %594 = vmatpush2.bf16.msra.mxu0 0
  %595 = vmatprep.subr.bf16.mxu0 0
  %596 = vmatpush2.bf16.msra.mxu0 0
  %597 = vmatprep.subr.bf16.mxu0 0
  %598 = vmatpush2.bf16.msra.mxu0 0
  %599 = vmatprep.subr.bf16.mxu0 0
  %600 = vmatpush2.bf16.msra.mxu0 0
  %601 = vmatprep.subr.bf16.mxu0 0
  %602 = vmatpush2.bf16.msra.mxu0 0
  %603 = vmatprep.subr.bf16.mxu0 0
  %604 = vmatpush2.bf16.msra.mxu0 0
  %605 = vmatprep.mubr.bf16.mxu0 0
  %606 = vmatmul.mubr.bf16.gmra.mxu0 %v549
  %v607 = vpop.f32.mrf.mxu0
  %v608 = vadd.f32 0.0, %v607
  %v609 = vpop.f32.mrf.mxu0
  %v610 = vadd.f32 0.0, %v609
  %v611 = vpop.f32.mrf.mxu0
  %v612 = vadd.f32 0.0, %v611
  %v613 = vpop.f32.mrf.mxu0
  %v614 = vadd.f32 0.0, %v613
  %615 = vdwg.mxu0
  %616 = vmatprep.subr.bf16.mxu0 %v209
  %617 = vmatpush1.bf16.msra.mxu0 %v208
  %618 = vmatprep.subr.bf16.mxu0 %v205
  %619 = vmatpush1.bf16.msra.mxu0 %v204
  %620 = vmatprep.subr.bf16.mxu0 %v201
  %621 = vmatpush1.bf16.msra.mxu0 %v200
  %622 = vmatprep.subr.bf16.mxu0 %v197
  %623 = vmatpush1.bf16.msra.mxu0 %v196
  %624 = vmatprep.subr.bf16.mxu0 %v193
  %625 = vmatpush1.bf16.msra.mxu0 %v192
  %626 = vmatprep.subr.bf16.mxu0 %v189
  %627 = vmatpush1.bf16.msra.mxu0 %v188
  %628 = vmatprep.subr.bf16.mxu0 %v185
  %629 = vmatpush1.bf16.msra.mxu0 %v184
  %630 = vmatprep.subr.bf16.mxu0 %v181
  %631 = vmatpush1.bf16.msra.mxu0 %v180
  %632 = vmatprep.subr.bf16.mxu0 0
  %633 = vmatpush2.bf16.msra.mxu0 0
  %634 = vmatprep.subr.bf16.mxu0 0
  %635 = vmatpush2.bf16.msra.mxu0 0
  %636 = vmatprep.subr.bf16.mxu0 0
  %637 = vmatpush2.bf16.msra.mxu0 0
  %638 = vmatprep.subr.bf16.mxu0 0
  %639 = vmatpush2.bf16.msra.mxu0 0
  %640 = vmatprep.subr.bf16.mxu0 0
  %641 = vmatpush2.bf16.msra.mxu0 0
  %642 = vmatprep.subr.bf16.mxu0 0
  %643 = vmatpush2.bf16.msra.mxu0 0
  %644 = vmatprep.subr.bf16.mxu0 0
  %645 = vmatpush2.bf16.msra.mxu0 0
  %646 = vmatprep.subr.bf16.mxu0 0
  %647 = vmatpush2.bf16.msra.mxu0 0
  %648 = vmatprep.mubr.bf16.mxu0 0
  %649 = vmatmul.mubr.bf16.gmra.mxu0 %v549
  %v650 = vpop.f32.mrf.mxu0
  %v651 = vadd.f32 0.0, %v650
  %v652 = vpop.f32.mrf.mxu0
  %v653 = vadd.f32 0.0, %v652
  %v654 = vpop.f32.mrf.mxu0
  %v655 = vadd.f32 0.0, %v654
  %v656 = vpop.f32.mrf.mxu0
  %v657 = vadd.f32 0.0, %v656
  %658 = vdwg.mxu0
  %v659 = vadd.f32 %v565, %v608
  %v660 = vadd.f32 %v566, %v610
  %v661 = vadd.f32 %v567, %v651
  %v662 = vadd.f32 %v568, %v653
  %v663 = vadd.f32 %v569, %v612
  %v664 = vadd.f32 %v570, %v614
  %v665 = vadd.f32 %v571, %v655
  %v666 = vadd.f32 %v572, %v657
  %v667 = vxor.u32 %v659, 2147483648
  %v668 = vxor.u32 %v663, 2147483648
  %v669 = vmul.f32 %v667, 1.442695
  %v670 = vpow.pop %v669
  %v671 = vmul.f32 %v668, 1.442695
  %v672 = vpow.pop %v671
  %v673 = vadd.f32 %v670, 1.0
  %v674 = vadd.f32 %v672, 1.0
  %v675 = vrcp.pop %v673
  %v676 = vmul.f32 1.0, %v675
  %v677 = vrcp.pop %v674
  %v678 = vmul.f32 1.0, %v677
  %v679 = vxor.u32 %v660, 2147483648
  %v680 = vxor.u32 %v664, 2147483648
  %v681 = vmul.f32 %v679, 1.442695
  %v682 = vpow.pop %v681
  %v683 = vmul.f32 %v680, 1.442695
  %v684 = vpow.pop %v683
  %v685 = vadd.f32 %v682, 1.0
  %v686 = vadd.f32 %v684, 1.0
  %v687 = vrcp.pop %v685
  %v688 = vmul.f32 1.0, %v687
  %v689 = vrcp.pop %v686
  %v690 = vmul.f32 1.0, %v689
  %v691 = vtanh.pop %v661
  %v692 = vtanh.pop %v665
  %v693 = vxor.u32 %v662, 2147483648
  %v694 = vxor.u32 %v666, 2147483648
  %v695 = vmul.f32 %v693, 1.442695
  %v696 = vpow.pop %v695
  %v697 = vmul.f32 %v694, 1.442695
  %v698 = vpow.pop %v697
  %v699 = vadd.f32 %v696, 1.0
  %v700 = vadd.f32 %v698, 1.0
  %v701 = vrcp.pop %v699
  %v702 = vmul.f32 1.0, %v701
  %v703 = vrcp.pop %v700
  %v704 = vmul.f32 1.0, %v703
  %v705 = vmul.f32 %v688, %v543
  %v706 = vmul.f32 %v690, %v544
  %v707 = vmul.f32 %v676, %v691
  %v708 = vmul.f32 %v678, %v692
  %v709 = vadd.f32 %v705, %v707
  %v710 = vadd.f32 %v706, %v708
  %v711 = vtanh.pop %v709
  %v712 = vtanh.pop %v710
  %v713 = vmul.f32 %v702, %v711
  %v714 = vmul.f32 %v704, %v712
  %v715 = vpack.c.bf16 %v714, %v713
  %v717 = vunpack.c.l.b16 %v715
  %v718 = vunpack.c.h.b16 %v715
  %v719 = vpack.c.b16 %v717, %v717
  %v720 = vpack.c.b16 %v718, %v718
  %s723 = scalar_lea.vmem %s4, 16
  %724 = vst [vmem:[%s723] sm:$0xf] %v719
  %725 = vst [vmem:[%s723 + $0x4] sm:$0xf] %v720
  %s726 = scalar_lea.vmem %s0, 96
  %v727 = vld [vmem:[%s726] sm:$0xff]
  %v728 = vld [vmem:[%s726 + $0x8] sm:$0xff]
  %v729 = vld [vmem:[%s726 + $0x10] sm:$0xff]
  %v730 = vld [vmem:[%s726 + $0x18] sm:$0xff]
  %v731 = vunpack.c.l.bf16 %v727
  %v732 = vunpack.c.h.bf16 %v727
  %v733 = vunpack.c.l.bf16 %v728
  %v734 = vunpack.c.h.bf16 %v728
  %v735 = vunpack.c.l.bf16 %v729
  %v736 = vunpack.c.h.bf16 %v729
  %v737 = vunpack.c.l.bf16 %v730
  %v738 = vunpack.c.h.bf16 %v730
  %739 = vmatprep.subr.bf16.mxu0 %v207
  %740 = vmatpush1.bf16.msra.mxu0 %v206
  %741 = vmatprep.subr.bf16.mxu0 %v203
  %742 = vmatpush1.bf16.msra.mxu0 %v202
  %743 = vmatprep.subr.bf16.mxu0 %v199
  %744 = vmatpush1.bf16.msra.mxu0 %v198
  %745 = vmatprep.subr.bf16.mxu0 %v195
  %746 = vmatpush1.bf16.msra.mxu0 %v194
  %747 = vmatprep.subr.bf16.mxu0 %v191
  %748 = vmatpush1.bf16.msra.mxu0 %v190
  %749 = vmatprep.subr.bf16.mxu0 %v187
  %750 = vmatpush1.bf16.msra.mxu0 %v186
  %751 = vmatprep.subr.bf16.mxu0 %v183
  %752 = vmatpush1.bf16.msra.mxu0 %v182
  %753 = vmatprep.subr.bf16.mxu0 %v179
  %754 = vmatpush1.bf16.msra.mxu0 %v178
  %755 = vmatprep.subr.bf16.mxu0 0
  %756 = vmatpush2.bf16.msra.mxu0 0
  %757 = vmatprep.subr.bf16.mxu0 0
  %758 = vmatpush2.bf16.msra.mxu0 0
  %759 = vmatprep.subr.bf16.mxu0 0
  %760 = vmatpush2.bf16.msra.mxu0 0
  %761 = vmatprep.subr.bf16.mxu0 0
  %762 = vmatpush2.bf16.msra.mxu0 0
  %763 = vmatprep.subr.bf16.mxu0 0
  %764 = vmatpush2.bf16.msra.mxu0 0
  %765 = vmatprep.subr.bf16.mxu0 0
  %766 = vmatpush2.bf16.msra.mxu0 0
  %767 = vmatprep.subr.bf16.mxu0 0
  %768 = vmatpush2.bf16.msra.mxu0 0
  %769 = vmatprep.subr.bf16.mxu0 0
  %770 = vmatpush2.bf16.msra.mxu0 0
  %771 = vmatprep.mubr.bf16.mxu0 0
  %772 = vmatmul.mubr.bf16.gmra.mxu0 %v715
  %v773 = vpop.f32.mrf.mxu0
  %v774 = vadd.f32 0.0, %v773
  %v775 = vpop.f32.mrf.mxu0
  %v776 = vadd.f32 0.0, %v775
  %v777 = vpop.f32.mrf.mxu0
  %v778 = vadd.f32 0.0, %v777
  %v779 = vpop.f32.mrf.mxu0
  %v780 = vadd.f32 0.0, %v779
  %781 = vdwg.mxu0
  %782 = vmatprep.subr.bf16.mxu0 %v209
  %783 = vmatpush1.bf16.msra.mxu0 %v208
  %784 = vmatprep.subr.bf16.mxu0 %v205
  %785 = vmatpush1.bf16.msra.mxu0 %v204
  %786 = vmatprep.subr.bf16.mxu0 %v201
  %787 = vmatpush1.bf16.msra.mxu0 %v200
  %788 = vmatprep.subr.bf16.mxu0 %v197
  %789 = vmatpush1.bf16.msra.mxu0 %v196
  %790 = vmatprep.subr.bf16.mxu0 %v193
  %791 = vmatpush1.bf16.msra.mxu0 %v192
  %792 = vmatprep.subr.bf16.mxu0 %v189
  %793 = vmatpush1.bf16.msra.mxu0 %v188
  %794 = vmatprep.subr.bf16.mxu0 %v185
  %795 = vmatpush1.bf16.msra.mxu0 %v184
  %796 = vmatprep.subr.bf16.mxu0 %v181
  %797 = vmatpush1.bf16.msra.mxu0 %v180
  %798 = vmatprep.subr.bf16.mxu0 0
  %799 = vmatpush2.bf16.msra.mxu0 0
  %800 = vmatprep.subr.bf16.mxu0 0
  %801 = vmatpush2.bf16.msra.mxu0 0
  %802 = vmatprep.subr.bf16.mxu0 0
  %803 = vmatpush2.bf16.msra.mxu0 0
  %804 = vmatprep.subr.bf16.mxu0 0
  %805 = vmatpush2.bf16.msra.mxu0 0
  %806 = vmatprep.subr.bf16.mxu0 0
  %807 = vmatpush2.bf16.msra.mxu0 0
  %808 = vmatprep.subr.bf16.mxu0 0
  %809 = vmatpush2.bf16.msra.mxu0 0
  %810 = vmatprep.subr.bf16.mxu0 0
  %811 = vmatpush2.bf16.msra.mxu0 0
  %812 = vmatprep.subr.bf16.mxu0 0
  %813 = vmatpush2.bf16.msra.mxu0 0
  %814 = vmatprep.mubr.bf16.mxu0 0
  %815 = vmatmul.mubr.bf16.gmra.mxu0 %v715
  %v816 = vpop.f32.mrf.mxu0
  %v817 = vadd.f32 0.0, %v816
  %v818 = vpop.f32.mrf.mxu0
  %v819 = vadd.f32 0.0, %v818
  %v820 = vpop.f32.mrf.mxu0
  %v821 = vadd.f32 0.0, %v820
  %v822 = vpop.f32.mrf.mxu0
  %v823 = vadd.f32 0.0, %v822
  %824 = vdwg.mxu0
  %v825 = vadd.f32 %v731, %v774
  %v826 = vadd.f32 %v732, %v776
  %v827 = vadd.f32 %v733, %v817
  %v828 = vadd.f32 %v734, %v819
  %v829 = vadd.f32 %v735, %v778
  %v830 = vadd.f32 %v736, %v780
  %v831 = vadd.f32 %v737, %v821
  %v832 = vadd.f32 %v738, %v823
  %v833 = vxor.u32 %v825, 2147483648
  %v834 = vxor.u32 %v829, 2147483648
  %v835 = vmul.f32 %v833, 1.442695
  %v836 = vpow.pop %v835
  %v837 = vmul.f32 %v834, 1.442695
  %v838 = vpow.pop %v837
  %v839 = vadd.f32 %v836, 1.0
  %v840 = vadd.f32 %v838, 1.0
  %v841 = vrcp.pop %v839
  %v842 = vmul.f32 1.0, %v841
  %v843 = vrcp.pop %v840
  %v844 = vmul.f32 1.0, %v843
  %v845 = vxor.u32 %v826, 2147483648
  %v846 = vxor.u32 %v830, 2147483648
  %v847 = vmul.f32 %v845, 1.442695
  %v848 = vpow.pop %v847
  %v849 = vmul.f32 %v846, 1.442695
  %v850 = vpow.pop %v849
  %v851 = vadd.f32 %v848, 1.0
  %v852 = vadd.f32 %v850, 1.0
  %v853 = vrcp.pop %v851
  %v854 = vmul.f32 1.0, %v853
  %v855 = vrcp.pop %v852
  %v856 = vmul.f32 1.0, %v855
  %v857 = vtanh.pop %v827
  %v858 = vtanh.pop %v831
  %v859 = vxor.u32 %v828, 2147483648
  %v860 = vxor.u32 %v832, 2147483648
  %v861 = vmul.f32 %v859, 1.442695
  %v862 = vpow.pop %v861
  %v863 = vmul.f32 %v860, 1.442695
  %v864 = vpow.pop %v863
  %v865 = vadd.f32 %v862, 1.0
  %v866 = vadd.f32 %v864, 1.0
  %v867 = vrcp.pop %v865
  %v868 = vmul.f32 1.0, %v867
  %v869 = vrcp.pop %v866
  %v870 = vmul.f32 1.0, %v869
  %v871 = vmul.f32 %v854, %v709
  %v872 = vmul.f32 %v856, %v710
  %v873 = vmul.f32 %v842, %v857
  %v874 = vmul.f32 %v844, %v858
  %v875 = vadd.f32 %v871, %v873
  %v876 = vadd.f32 %v872, %v874
  %v877 = vtanh.pop %v875
  %v878 = vtanh.pop %v876
  %v879 = vmul.f32 %v868, %v877
  %v880 = vmul.f32 %v870, %v878
  %v881 = vpack.c.bf16 %v880, %v879
  %v883 = vunpack.c.l.b16 %v881
  %v884 = vunpack.c.h.b16 %v881
  %v885 = vpack.c.b16 %v883, %v883
  %v886 = vpack.c.b16 %v884, %v884
  %s889 = scalar_lea.vmem %s4, 24
  %890 = vst [vmem:[%s889] sm:$0xf] %v885
  %891 = vst [vmem:[%s889 + $0x4] sm:$0xf] %v886
  %s892 = scalar_lea.vmem %s0, 128
  %v893 = vld [vmem:[%s892] sm:$0xff]
  %v894 = vld [vmem:[%s892 + $0x8] sm:$0xff]
  %v895 = vld [vmem:[%s892 + $0x10] sm:$0xff]
  %v896 = vld [vmem:[%s892 + $0x18] sm:$0xff]
  %v897 = vunpack.c.l.bf16 %v893
  %v898 = vunpack.c.h.bf16 %v893
  %v899 = vunpack.c.l.bf16 %v894
  %v900 = vunpack.c.h.bf16 %v894
  %v901 = vunpack.c.l.bf16 %v895
  %v902 = vunpack.c.h.bf16 %v895
  %v903 = vunpack.c.l.bf16 %v896
  %v904 = vunpack.c.h.bf16 %v896
  %905 = vmatprep.subr.bf16.mxu0 %v207
  %906 = vmatpush1.bf16.msra.mxu0 %v206
  %907 = vmatprep.subr.bf16.mxu0 %v203
  %908 = vmatpush1.bf16.msra.mxu0 %v202
  %909 = vmatprep.subr.bf16.mxu0 %v199
  %910 = vmatpush1.bf16.msra.mxu0 %v198
  %911 = vmatprep.subr.bf16.mxu0 %v195
  %912 = vmatpush1.bf16.msra.mxu0 %v194
  %913 = vmatprep.subr.bf16.mxu0 %v191
  %914 = vmatpush1.bf16.msra.mxu0 %v190
  %915 = vmatprep.subr.bf16.mxu0 %v187
  %916 = vmatpush1.bf16.msra.mxu0 %v186
  %917 = vmatprep.subr.bf16.mxu0 %v183
  %918 = vmatpush1.bf16.msra.mxu0 %v182
  %919 = vmatprep.subr.bf16.mxu0 %v179
  %920 = vmatpush1.bf16.msra.mxu0 %v178
  %921 = vmatprep.subr.bf16.mxu0 0
  %922 = vmatpush2.bf16.msra.mxu0 0
  %923 = vmatprep.subr.bf16.mxu0 0
  %924 = vmatpush2.bf16.msra.mxu0 0
  %925 = vmatprep.subr.bf16.mxu0 0
  %926 = vmatpush2.bf16.msra.mxu0 0
  %927 = vmatprep.subr.bf16.mxu0 0
  %928 = vmatpush2.bf16.msra.mxu0 0
  %929 = vmatprep.subr.bf16.mxu0 0
  %930 = vmatpush2.bf16.msra.mxu0 0
  %931 = vmatprep.subr.bf16.mxu0 0
  %932 = vmatpush2.bf16.msra.mxu0 0
  %933 = vmatprep.subr.bf16.mxu0 0
  %934 = vmatpush2.bf16.msra.mxu0 0
  %935 = vmatprep.subr.bf16.mxu0 0
  %936 = vmatpush2.bf16.msra.mxu0 0
  %937 = vmatprep.mubr.bf16.mxu0 0
  %938 = vmatmul.mubr.bf16.gmra.mxu0 %v881
  %v939 = vpop.f32.mrf.mxu0
  %v940 = vadd.f32 0.0, %v939
  %v941 = vpop.f32.mrf.mxu0
  %v942 = vadd.f32 0.0, %v941
  %v943 = vpop.f32.mrf.mxu0
  %v944 = vadd.f32 0.0, %v943
  %v945 = vpop.f32.mrf.mxu0
  %v946 = vadd.f32 0.0, %v945
  %947 = vdwg.mxu0
  %948 = vmatprep.subr.bf16.mxu0 %v209
  %949 = vmatpush1.bf16.msra.mxu0 %v208
  %950 = vmatprep.subr.bf16.mxu0 %v205
  %951 = vmatpush1.bf16.msra.mxu0 %v204
  %952 = vmatprep.subr.bf16.mxu0 %v201
  %953 = vmatpush1.bf16.msra.mxu0 %v200
  %954 = vmatprep.subr.bf16.mxu0 %v197
  %955 = vmatpush1.bf16.msra.mxu0 %v196
  %956 = vmatprep.subr.bf16.mxu0 %v193
  %957 = vmatpush1.bf16.msra.mxu0 %v192
  %958 = vmatprep.subr.bf16.mxu0 %v189
  %959 = vmatpush1.bf16.msra.mxu0 %v188
  %960 = vmatprep.subr.bf16.mxu0 %v185
  %961 = vmatpush1.bf16.msra.mxu0 %v184
  %962 = vmatprep.subr.bf16.mxu0 %v181
  %963 = vmatpush1.bf16.msra.mxu0 %v180
  %964 = vmatprep.subr.bf16.mxu0 0
  %965 = vmatpush2.bf16.msra.mxu0 0
  %966 = vmatprep.subr.bf16.mxu0 0
  %967 = vmatpush2.bf16.msra.mxu0 0
  %968 = vmatprep.subr.bf16.mxu0 0
  %969 = vmatpush2.bf16.msra.mxu0 0
  %970 = vmatprep.subr.bf16.mxu0 0
  %971 = vmatpush2.bf16.msra.mxu0 0
  %972 = vmatprep.subr.bf16.mxu0 0
  %973 = vmatpush2.bf16.msra.mxu0 0
  %974 = vmatprep.subr.bf16.mxu0 0
  %975 = vmatpush2.bf16.msra.mxu0 0
  %976 = vmatprep.subr.bf16.mxu0 0
  %977 = vmatpush2.bf16.msra.mxu0 0
  %978 = vmatprep.subr.bf16.mxu0 0
  %979 = vmatpush2.bf16.msra.mxu0 0
  %980 = vmatprep.mubr.bf16.mxu0 0
  %981 = vmatmul.mubr.bf16.gmra.mxu0 %v881
  %v982 = vpop.f32.mrf.mxu0
  %v983 = vadd.f32 0.0, %v982
  %v984 = vpop.f32.mrf.mxu0
  %v985 = vadd.f32 0.0, %v984
  %v986 = vpop.f32.mrf.mxu0
  %v987 = vadd.f32 0.0, %v986
  %v988 = vpop.f32.mrf.mxu0
  %v989 = vadd.f32 0.0, %v988
  %990 = vdwg.mxu0
  %v991 = vadd.f32 %v897, %v940
  %v992 = vadd.f32 %v898, %v942
  %v993 = vadd.f32 %v899, %v983
  %v994 = vadd.f32 %v900, %v985
  %v995 = vadd.f32 %v901, %v944
  %v996 = vadd.f32 %v902, %v946
  %v997 = vadd.f32 %v903, %v987
  %v998 = vadd.f32 %v904, %v989
  %v999 = vxor.u32 %v991, 2147483648
  %v1000 = vxor.u32 %v995, 2147483648
  %v1001 = vmul.f32 %v999, 1.442695
  %v1002 = vpow.pop %v1001
  %v1003 = vmul.f32 %v1000, 1.442695
  %v1004 = vpow.pop %v1003
  %v1005 = vadd.f32 %v1002, 1.0
  %v1006 = vadd.f32 %v1004, 1.0
  %v1007 = vrcp.pop %v1005
  %v1008 = vmul.f32 1.0, %v1007
  %v1009 = vrcp.pop %v1006
  %v1010 = vmul.f32 1.0, %v1009
  %v1011 = vxor.u32 %v992, 2147483648
  %v1012 = vxor.u32 %v996, 2147483648
  %v1013 = vmul.f32 %v1011, 1.442695
  %v1014 = vpow.pop %v1013
  %v1015 = vmul.f32 %v1012, 1.442695
  %v1016 = vpow.pop %v1015
  %v1017 = vadd.f32 %v1014, 1.0
  %v1018 = vadd.f32 %v1016, 1.0
  %v1019 = vrcp.pop %v1017
  %v1020 = vmul.f32 1.0, %v1019
  %v1021 = vrcp.pop %v1018
  %v1022 = vmul.f32 1.0, %v1021
  %v1023 = vtanh.pop %v993
  %v1024 = vtanh.pop %v997
  %v1025 = vxor.u32 %v994, 2147483648
  %v1026 = vxor.u32 %v998, 2147483648
  %v1027 = vmul.f32 %v1025, 1.442695
  %v1028 = vpow.pop %v1027
  %v1029 = vmul.f32 %v1026, 1.442695
  %v1030 = vpow.pop %v1029
  %v1031 = vadd.f32 %v1028, 1.0
  %v1032 = vadd.f32 %v1030, 1.0
  %v1033 = vrcp.pop %v1031
  %v1034 = vmul.f32 1.0, %v1033
  %v1035 = vrcp.pop %v1032
  %v1036 = vmul.f32 1.0, %v1035
  %v1037 = vmul.f32 %v1020, %v875
  %v1038 = vmul.f32 %v1022, %v876
  %v1039 = vmul.f32 %v1008, %v1023
  %v1040 = vmul.f32 %v1010, %v1024
  %v1041 = vadd.f32 %v1037, %v1039
  %v1042 = vadd.f32 %v1038, %v1040
  %v1043 = vtanh.pop %v1041
  %v1044 = vtanh.pop %v1042
  %v1045 = vmul.f32 %v1034, %v1043
  %v1046 = vmul.f32 %v1036, %v1044
  %v1047 = vpack.c.bf16 %v1046, %v1045
  %v1049 = vunpack.c.l.b16 %v1047
  %v1050 = vunpack.c.h.b16 %v1047
  %v1051 = vpack.c.b16 %v1049, %v1049
  %v1052 = vpack.c.b16 %v1050, %v1050
  %s1055 = scalar_lea.vmem %s4, 32
  %1056 = vst [vmem:[%s1055] sm:$0xf] %v1051
  %1057 = vst [vmem:[%s1055 + $0x4] sm:$0xf] %v1052
  %s1058 = scalar_lea.vmem %s0, 160
  %v1059 = vld [vmem:[%s1058] sm:$0xff]
  %v1060 = vld [vmem:[%s1058 + $0x8] sm:$0xff]
  %v1061 = vld [vmem:[%s1058 + $0x10] sm:$0xff]
  %v1062 = vld [vmem:[%s1058 + $0x18] sm:$0xff]
  %v1063 = vunpack.c.l.bf16 %v1059
  %v1064 = vunpack.c.h.bf16 %v1059
  %v1065 = vunpack.c.l.bf16 %v1060
  %v1066 = vunpack.c.h.bf16 %v1060
  %v1067 = vunpack.c.l.bf16 %v1061
  %v1068 = vunpack.c.h.bf16 %v1061
  %v1069 = vunpack.c.l.bf16 %v1062
  %v1070 = vunpack.c.h.bf16 %v1062
  %1071 = vmatprep.subr.bf16.mxu0 %v207
  %1072 = vmatpush1.bf16.msra.mxu0 %v206
  %1073 = vmatprep.subr.bf16.mxu0 %v203
  %1074 = vmatpush1.bf16.msra.mxu0 %v202
  %1075 = vmatprep.subr.bf16.mxu0 %v199
  %1076 = vmatpush1.bf16.msra.mxu0 %v198
  %1077 = vmatprep.subr.bf16.mxu0 %v195
  %1078 = vmatpush1.bf16.msra.mxu0 %v194
  %1079 = vmatprep.subr.bf16.mxu0 %v191
  %1080 = vmatpush1.bf16.msra.mxu0 %v190
  %1081 = vmatprep.subr.bf16.mxu0 %v187
  %1082 = vmatpush1.bf16.msra.mxu0 %v186
  %1083 = vmatprep.subr.bf16.mxu0 %v183
  %1084 = vmatpush1.bf16.msra.mxu0 %v182
  %1085 = vmatprep.subr.bf16.mxu0 %v179
  %1086 = vmatpush1.bf16.msra.mxu0 %v178
  %1087 = vmatprep.subr.bf16.mxu0 0
  %1088 = vmatpush2.bf16.msra.mxu0 0
  %1089 = vmatprep.subr.bf16.mxu0 0
  %1090 = vmatpush2.bf16.msra.mxu0 0
  %1091 = vmatprep.subr.bf16.mxu0 0
  %1092 = vmatpush2.bf16.msra.mxu0 0
  %1093 = vmatprep.subr.bf16.mxu0 0
  %1094 = vmatpush2.bf16.msra.mxu0 0
  %1095 = vmatprep.subr.bf16.mxu0 0
  %1096 = vmatpush2.bf16.msra.mxu0 0
  %1097 = vmatprep.subr.bf16.mxu0 0
  %1098 = vmatpush2.bf16.msra.mxu0 0
  %1099 = vmatprep.subr.bf16.mxu0 0
  %1100 = vmatpush2.bf16.msra.mxu0 0
  %1101 = vmatprep.subr.bf16.mxu0 0
  %1102 = vmatpush2.bf16.msra.mxu0 0
  %1103 = vmatprep.mubr.bf16.mxu0 0
  %1104 = vmatmul.mubr.bf16.gmra.mxu0 %v1047
  %v1105 = vpop.f32.mrf.mxu0
  %v1106 = vadd.f32 0.0, %v1105
  %v1107 = vpop.f32.mrf.mxu0
  %v1108 = vadd.f32 0.0, %v1107
  %v1109 = vpop.f32.mrf.mxu0
  %v1110 = vadd.f32 0.0, %v1109
  %v1111 = vpop.f32.mrf.mxu0
  %v1112 = vadd.f32 0.0, %v1111
  %1113 = vdwg.mxu0
  %1114 = vmatprep.subr.bf16.mxu0 %v209
  %1115 = vmatpush1.bf16.msra.mxu0 %v208
  %1116 = vmatprep.subr.bf16.mxu0 %v205
  %1117 = vmatpush1.bf16.msra.mxu0 %v204
  %1118 = vmatprep.subr.bf16.mxu0 %v201
  %1119 = vmatpush1.bf16.msra.mxu0 %v200
  %1120 = vmatprep.subr.bf16.mxu0 %v197
  %1121 = vmatpush1.bf16.msra.mxu0 %v196
  %1122 = vmatprep.subr.bf16.mxu0 %v193
  %1123 = vmatpush1.bf16.msra.mxu0 %v192
  %1124 = vmatprep.subr.bf16.mxu0 %v189
  %1125 = vmatpush1.bf16.msra.mxu0 %v188
  %1126 = vmatprep.subr.bf16.mxu0 %v185
  %1127 = vmatpush1.bf16.msra.mxu0 %v184
  %1128 = vmatprep.subr.bf16.mxu0 %v181
  %1129 = vmatpush1.bf16.msra.mxu0 %v180
  %1130 = vmatprep.subr.bf16.mxu0 0
  %1131 = vmatpush2.bf16.msra.mxu0 0
  %1132 = vmatprep.subr.bf16.mxu0 0
  %1133 = vmatpush2.bf16.msra.mxu0 0
  %1134 = vmatprep.subr.bf16.mxu0 0
  %1135 = vmatpush2.bf16.msra.mxu0 0
  %1136 = vmatprep.subr.bf16.mxu0 0
  %1137 = vmatpush2.bf16.msra.mxu0 0
  %1138 = vmatprep.subr.bf16.mxu0 0
  %1139 = vmatpush2.bf16.msra.mxu0 0
  %1140 = vmatprep.subr.bf16.mxu0 0
  %1141 = vmatpush2.bf16.msra.mxu0 0
  %1142 = vmatprep.subr.bf16.mxu0 0
  %1143 = vmatpush2.bf16.msra.mxu0 0
  %1144 = vmatprep.subr.bf16.mxu0 0
  %1145 = vmatpush2.bf16.msra.mxu0 0
  %1146 = vmatprep.mubr.bf16.mxu0 0
  %1147 = vmatmul.mubr.bf16.gmra.mxu0 %v1047
  %v1148 = vpop.f32.mrf.mxu0
  %v1149 = vadd.f32 0.0, %v1148
  %v1150 = vpop.f32.mrf.mxu0
  %v1151 = vadd.f32 0.0, %v1150
  %v1152 = vpop.f32.mrf.mxu0
  %v1153 = vadd.f32 0.0, %v1152
  %v1154 = vpop.f32.mrf.mxu0
  %v1155 = vadd.f32 0.0, %v1154
  %1156 = vdwg.mxu0
  %v1157 = vadd.f32 %v1063, %v1106
  %v1158 = vadd.f32 %v1064, %v1108
  %v1159 = vadd.f32 %v1065, %v1149
  %v1160 = vadd.f32 %v1066, %v1151
  %v1161 = vadd.f32 %v1067, %v1110
  %v1162 = vadd.f32 %v1068, %v1112
  %v1163 = vadd.f32 %v1069, %v1153
  %v1164 = vadd.f32 %v1070, %v1155
  %v1165 = vxor.u32 %v1157, 2147483648
  %v1166 = vxor.u32 %v1161, 2147483648
  %v1167 = vmul.f32 %v1165, 1.442695
  %v1168 = vpow.pop %v1167
  %v1169 = vmul.f32 %v1166, 1.442695
  %v1170 = vpow.pop %v1169
  %v1171 = vadd.f32 %v1168, 1.0
  %v1172 = vadd.f32 %v1170, 1.0
  %v1173 = vrcp.pop %v1171
  %v1174 = vmul.f32 1.0, %v1173
  %v1175 = vrcp.pop %v1172
  %v1176 = vmul.f32 1.0, %v1175
  %v1177 = vxor.u32 %v1158, 2147483648
  %v1178 = vxor.u32 %v1162, 2147483648
  %v1179 = vmul.f32 %v1177, 1.442695
  %v1180 = vpow.pop %v1179
  %v1181 = vmul.f32 %v1178, 1.442695
  %v1182 = vpow.pop %v1181
  %v1183 = vadd.f32 %v1180, 1.0
  %v1184 = vadd.f32 %v1182, 1.0
  %v1185 = vrcp.pop %v1183
  %v1186 = vmul.f32 1.0, %v1185
  %v1187 = vrcp.pop %v1184
  %v1188 = vmul.f32 1.0, %v1187
  %v1189 = vtanh.pop %v1159
  %v1190 = vtanh.pop %v1163
  %v1191 = vxor.u32 %v1160, 2147483648
  %v1192 = vxor.u32 %v1164, 2147483648
  %v1193 = vmul.f32 %v1191, 1.442695
  %v1194 = vpow.pop %v1193
  %v1195 = vmul.f32 %v1192, 1.442695
  %v1196 = vpow.pop %v1195
  %v1197 = vadd.f32 %v1194, 1.0
  %v1198 = vadd.f32 %v1196, 1.0
  %v1199 = vrcp.pop %v1197
  %v1200 = vmul.f32 1.0, %v1199
  %v1201 = vrcp.pop %v1198
  %v1202 = vmul.f32 1.0, %v1201
  %v1203 = vmul.f32 %v1186, %v1041
  %v1204 = vmul.f32 %v1188, %v1042
  %v1205 = vmul.f32 %v1174, %v1189
  %v1206 = vmul.f32 %v1176, %v1190
  %v1207 = vadd.f32 %v1203, %v1205
  %v1208 = vadd.f32 %v1204, %v1206
  %v1209 = vtanh.pop %v1207
  %v1210 = vtanh.pop %v1208
  %v1211 = vmul.f32 %v1200, %v1209
  %v1212 = vmul.f32 %v1202, %v1210
  %v1213 = vpack.c.bf16 %v1212, %v1211
  %v1215 = vunpack.c.l.b16 %v1213
  %v1216 = vunpack.c.h.b16 %v1213
  %v1217 = vpack.c.b16 %v1215, %v1215
  %v1218 = vpack.c.b16 %v1216, %v1216
  %s1221 = scalar_lea.vmem %s4, 40
  %1222 = vst [vmem:[%s1221] sm:$0xf] %v1217
  %1223 = vst [vmem:[%s1221 + $0x4] sm:$0xf] %v1218
  %s1224 = scalar_lea.vmem %s0, 192
  %v1225 = vld [vmem:[%s1224] sm:$0xff]
  %v1226 = vld [vmem:[%s1224 + $0x8] sm:$0xff]
  %v1227 = vld [vmem:[%s1224 + $0x10] sm:$0xff]
  %v1228 = vld [vmem:[%s1224 + $0x18] sm:$0xff]
  %v1229 = vunpack.c.l.bf16 %v1225
  %v1230 = vunpack.c.h.bf16 %v1225
  %v1231 = vunpack.c.l.bf16 %v1226
  %v1232 = vunpack.c.h.bf16 %v1226
  %v1233 = vunpack.c.l.bf16 %v1227
  %v1234 = vunpack.c.h.bf16 %v1227
  %v1235 = vunpack.c.l.bf16 %v1228
  %v1236 = vunpack.c.h.bf16 %v1228
  %1237 = vmatprep.subr.bf16.mxu0 %v207
  %1238 = vmatpush1.bf16.msra.mxu0 %v206
  %1239 = vmatprep.subr.bf16.mxu0 %v203
  %1240 = vmatpush1.bf16.msra.mxu0 %v202
  %1241 = vmatprep.subr.bf16.mxu0 %v199
  %1242 = vmatpush1.bf16.msra.mxu0 %v198
  %1243 = vmatprep.subr.bf16.mxu0 %v195
  %1244 = vmatpush1.bf16.msra.mxu0 %v194
  %1245 = vmatprep.subr.bf16.mxu0 %v191
  %1246 = vmatpush1.bf16.msra.mxu0 %v190
  %1247 = vmatprep.subr.bf16.mxu0 %v187
  %1248 = vmatpush1.bf16.msra.mxu0 %v186
  %1249 = vmatprep.subr.bf16.mxu0 %v183
  %1250 = vmatpush1.bf16.msra.mxu0 %v182
  %1251 = vmatprep.subr.bf16.mxu0 %v179
  %1252 = vmatpush1.bf16.msra.mxu0 %v178
  %1253 = vmatprep.subr.bf16.mxu0 0
  %1254 = vmatpush2.bf16.msra.mxu0 0
  %1255 = vmatprep.subr.bf16.mxu0 0
  %1256 = vmatpush2.bf16.msra.mxu0 0
  %1257 = vmatprep.subr.bf16.mxu0 0
  %1258 = vmatpush2.bf16.msra.mxu0 0
  %1259 = vmatprep.subr.bf16.mxu0 0
  %1260 = vmatpush2.bf16.msra.mxu0 0
  %1261 = vmatprep.subr.bf16.mxu0 0
  %1262 = vmatpush2.bf16.msra.mxu0 0
  %1263 = vmatprep.subr.bf16.mxu0 0
  %1264 = vmatpush2.bf16.msra.mxu0 0
  %1265 = vmatprep.subr.bf16.mxu0 0
  %1266 = vmatpush2.bf16.msra.mxu0 0
  %1267 = vmatprep.subr.bf16.mxu0 0
  %1268 = vmatpush2.bf16.msra.mxu0 0
  %1269 = vmatprep.mubr.bf16.mxu0 0
  %1270 = vmatmul.mubr.bf16.gmra.mxu0 %v1213
  %v1271 = vpop.f32.mrf.mxu0
  %v1272 = vadd.f32 0.0, %v1271
  %v1273 = vpop.f32.mrf.mxu0
  %v1274 = vadd.f32 0.0, %v1273
  %v1275 = vpop.f32.mrf.mxu0
  %v1276 = vadd.f32 0.0, %v1275
  %v1277 = vpop.f32.mrf.mxu0
  %v1278 = vadd.f32 0.0, %v1277
  %1279 = vdwg.mxu0
  %1280 = vmatprep.subr.bf16.mxu0 %v209
  %1281 = vmatpush1.bf16.msra.mxu0 %v208
  %1282 = vmatprep.subr.bf16.mxu0 %v205
  %1283 = vmatpush1.bf16.msra.mxu0 %v204
  %1284 = vmatprep.subr.bf16.mxu0 %v201
  %1285 = vmatpush1.bf16.msra.mxu0 %v200
  %1286 = vmatprep.subr.bf16.mxu0 %v197
  %1287 = vmatpush1.bf16.msra.mxu0 %v196
  %1288 = vmatprep.subr.bf16.mxu0 %v193
  %1289 = vmatpush1.bf16.msra.mxu0 %v192
  %1290 = vmatprep.subr.bf16.mxu0 %v189
  %1291 = vmatpush1.bf16.msra.mxu0 %v188
  %1292 = vmatprep.subr.bf16.mxu0 %v185
  %1293 = vmatpush1.bf16.msra.mxu0 %v184
  %1294 = vmatprep.subr.bf16.mxu0 %v181
  %1295 = vmatpush1.bf16.msra.mxu0 %v180
  %1296 = vmatprep.subr.bf16.mxu0 0
  %1297 = vmatpush2.bf16.msra.mxu0 0
  %1298 = vmatprep.subr.bf16.mxu0 0
  %1299 = vmatpush2.bf16.msra.mxu0 0
  %1300 = vmatprep.subr.bf16.mxu0 0
  %1301 = vmatpush2.bf16.msra.mxu0 0
  %1302 = vmatprep.subr.bf16.mxu0 0
  %1303 = vmatpush2.bf16.msra.mxu0 0
  %1304 = vmatprep.subr.bf16.mxu0 0
  %1305 = vmatpush2.bf16.msra.mxu0 0
  %1306 = vmatprep.subr.bf16.mxu0 0
  %1307 = vmatpush2.bf16.msra.mxu0 0
  %1308 = vmatprep.subr.bf16.mxu0 0
  %1309 = vmatpush2.bf16.msra.mxu0 0
  %1310 = vmatprep.subr.bf16.mxu0 0
  %1311 = vmatpush2.bf16.msra.mxu0 0
  %1312 = vmatprep.mubr.bf16.mxu0 0
  %1313 = vmatmul.mubr.bf16.gmra.mxu0 %v1213
  %v1314 = vpop.f32.mrf.mxu0
  %v1315 = vadd.f32 0.0, %v1314
  %v1316 = vpop.f32.mrf.mxu0
  %v1317 = vadd.f32 0.0, %v1316
  %v1318 = vpop.f32.mrf.mxu0
  %v1319 = vadd.f32 0.0, %v1318
  %v1320 = vpop.f32.mrf.mxu0
  %v1321 = vadd.f32 0.0, %v1320
  %1322 = vdwg.mxu0
  %v1323 = vadd.f32 %v1229, %v1272
  %v1324 = vadd.f32 %v1230, %v1274
  %v1325 = vadd.f32 %v1231, %v1315
  %v1326 = vadd.f32 %v1232, %v1317
  %v1327 = vadd.f32 %v1233, %v1276
  %v1328 = vadd.f32 %v1234, %v1278
  %v1329 = vadd.f32 %v1235, %v1319
  %v1330 = vadd.f32 %v1236, %v1321
  %v1331 = vxor.u32 %v1323, 2147483648
  %v1332 = vxor.u32 %v1327, 2147483648
  %v1333 = vmul.f32 %v1331, 1.442695
  %v1334 = vpow.pop %v1333
  %v1335 = vmul.f32 %v1332, 1.442695
  %v1336 = vpow.pop %v1335
  %v1337 = vadd.f32 %v1334, 1.0
  %v1338 = vadd.f32 %v1336, 1.0
  %v1339 = vrcp.pop %v1337
  %v1340 = vmul.f32 1.0, %v1339
  %v1341 = vrcp.pop %v1338
  %v1342 = vmul.f32 1.0, %v1341
  %v1343 = vxor.u32 %v1324, 2147483648
  %v1344 = vxor.u32 %v1328, 2147483648
  %v1345 = vmul.f32 %v1343, 1.442695
  %v1346 = vpow.pop %v1345
  %v1347 = vmul.f32 %v1344, 1.442695
  %v1348 = vpow.pop %v1347
  %v1349 = vadd.f32 %v1346, 1.0
  %v1350 = vadd.f32 %v1348, 1.0
  %v1351 = vrcp.pop %v1349
  %v1352 = vmul.f32 1.0, %v1351
  %v1353 = vrcp.pop %v1350
  %v1354 = vmul.f32 1.0, %v1353
  %v1355 = vtanh.pop %v1325
  %v1356 = vtanh.pop %v1329
  %v1357 = vxor.u32 %v1326, 2147483648
  %v1358 = vxor.u32 %v1330, 2147483648
  %v1359 = vmul.f32 %v1357, 1.442695
  %v1360 = vpow.pop %v1359
  %v1361 = vmul.f32 %v1358, 1.442695
  %v1362 = vpow.pop %v1361
  %v1363 = vadd.f32 %v1360, 1.0
  %v1364 = vadd.f32 %v1362, 1.0
  %v1365 = vrcp.pop %v1363
  %v1366 = vmul.f32 1.0, %v1365
  %v1367 = vrcp.pop %v1364
  %v1368 = vmul.f32 1.0, %v1367
  %v1369 = vmul.f32 %v1352, %v1207
  %v1370 = vmul.f32 %v1354, %v1208
  %v1371 = vmul.f32 %v1340, %v1355
  %v1372 = vmul.f32 %v1342, %v1356
  %v1373 = vadd.f32 %v1369, %v1371
  %v1374 = vadd.f32 %v1370, %v1372
  %v1375 = vtanh.pop %v1373
  %v1376 = vtanh.pop %v1374
  %v1377 = vmul.f32 %v1366, %v1375
  %v1378 = vmul.f32 %v1368, %v1376
  %v1379 = vpack.c.bf16 %v1378, %v1377
  %v1381 = vunpack.c.l.b16 %v1379
  %v1382 = vunpack.c.h.b16 %v1379
  %v1383 = vpack.c.b16 %v1381, %v1381
  %v1384 = vpack.c.b16 %v1382, %v1382
  %s1387 = scalar_lea.vmem %s4, 48
  %1388 = vst [vmem:[%s1387] sm:$0xf] %v1383
  %1389 = vst [vmem:[%s1387 + $0x4] sm:$0xf] %v1384
  %s1390 = scalar_lea.vmem %s0, 224
  %v1391 = vld [vmem:[%s1390] sm:$0xff]
  %v1392 = vld [vmem:[%s1390 + $0x8] sm:$0xff]
  %v1393 = vld [vmem:[%s1390 + $0x10] sm:$0xff]
  %v1394 = vld [vmem:[%s1390 + $0x18] sm:$0xff]
  %v1395 = vunpack.c.l.bf16 %v1391
  %v1396 = vunpack.c.h.bf16 %v1391
  %v1397 = vunpack.c.l.bf16 %v1392
  %v1398 = vunpack.c.h.bf16 %v1392
  %v1399 = vunpack.c.l.bf16 %v1393
  %v1400 = vunpack.c.h.bf16 %v1393
  %v1401 = vunpack.c.l.bf16 %v1394
  %v1402 = vunpack.c.h.bf16 %v1394
  %1403 = vmatprep.subr.bf16.mxu0 %v207
  %1404 = vmatpush1.bf16.msra.mxu0 %v206
  %1405 = vmatprep.subr.bf16.mxu0 %v203
  %1406 = vmatpush1.bf16.msra.mxu0 %v202
  %1407 = vmatprep.subr.bf16.mxu0 %v199
  %1408 = vmatpush1.bf16.msra.mxu0 %v198
  %1409 = vmatprep.subr.bf16.mxu0 %v195
  %1410 = vmatpush1.bf16.msra.mxu0 %v194
  %1411 = vmatprep.subr.bf16.mxu0 %v191
  %1412 = vmatpush1.bf16.msra.mxu0 %v190
  %1413 = vmatprep.subr.bf16.mxu0 %v187
  %1414 = vmatpush1.bf16.msra.mxu0 %v186
  %1415 = vmatprep.subr.bf16.mxu0 %v183
  %1416 = vmatpush1.bf16.msra.mxu0 %v182
  %1417 = vmatprep.subr.bf16.mxu0 %v179
  %1418 = vmatpush1.bf16.msra.mxu0 %v178
  %1419 = vmatprep.subr.bf16.mxu0 0
  %1420 = vmatpush2.bf16.msra.mxu0 0
  %1421 = vmatprep.subr.bf16.mxu0 0
  %1422 = vmatpush2.bf16.msra.mxu0 0
  %1423 = vmatprep.subr.bf16.mxu0 0
  %1424 = vmatpush2.bf16.msra.mxu0 0
  %1425 = vmatprep.subr.bf16.mxu0 0
  %1426 = vmatpush2.bf16.msra.mxu0 0
  %1427 = vmatprep.subr.bf16.mxu0 0
  %1428 = vmatpush2.bf16.msra.mxu0 0
  %1429 = vmatprep.subr.bf16.mxu0 0
  %1430 = vmatpush2.bf16.msra.mxu0 0
  %1431 = vmatprep.subr.bf16.mxu0 0
  %1432 = vmatpush2.bf16.msra.mxu0 0
  %1433 = vmatprep.subr.bf16.mxu0 0
  %1434 = vmatpush2.bf16.msra.mxu0 0
  %1435 = vmatprep.mubr.bf16.mxu0 0
  %1436 = vmatmul.mubr.bf16.gmra.mxu0 %v1379
  %v1437 = vpop.f32.mrf.mxu0
  %v1438 = vadd.f32 0.0, %v1437
  %v1439 = vpop.f32.mrf.mxu0
  %v1440 = vadd.f32 0.0, %v1439
  %v1441 = vpop.f32.mrf.mxu0
  %v1442 = vadd.f32 0.0, %v1441
  %v1443 = vpop.f32.mrf.mxu0
  %v1444 = vadd.f32 0.0, %v1443
  %1445 = vdwg.mxu0
  %1446 = vmatprep.subr.bf16.mxu0 %v209
  %1447 = vmatpush1.bf16.msra.mxu0 %v208
  %1448 = vmatprep.subr.bf16.mxu0 %v205
  %1449 = vmatpush1.bf16.msra.mxu0 %v204
  %1450 = vmatprep.subr.bf16.mxu0 %v201
  %1451 = vmatpush1.bf16.msra.mxu0 %v200
  %1452 = vmatprep.subr.bf16.mxu0 %v197
  %1453 = vmatpush1.bf16.msra.mxu0 %v196
  %1454 = vmatprep.subr.bf16.mxu0 %v193
  %1455 = vmatpush1.bf16.msra.mxu0 %v192
  %1456 = vmatprep.subr.bf16.mxu0 %v189
  %1457 = vmatpush1.bf16.msra.mxu0 %v188
  %1458 = vmatprep.subr.bf16.mxu0 %v185
  %1459 = vmatpush1.bf16.msra.mxu0 %v184
  %1460 = vmatprep.subr.bf16.mxu0 %v181
  %1461 = vmatpush1.bf16.msra.mxu0 %v180
  %1462 = vmatprep.subr.bf16.mxu0 0
  %1463 = vmatpush2.bf16.msra.mxu0 0
  %1464 = vmatprep.subr.bf16.mxu0 0
  %1465 = vmatpush2.bf16.msra.mxu0 0
  %1466 = vmatprep.subr.bf16.mxu0 0
  %1467 = vmatpush2.bf16.msra.mxu0 0
  %1468 = vmatprep.subr.bf16.mxu0 0
  %1469 = vmatpush2.bf16.msra.mxu0 0
  %1470 = vmatprep.subr.bf16.mxu0 0
  %1471 = vmatpush2.bf16.msra.mxu0 0
  %1472 = vmatprep.subr.bf16.mxu0 0
  %1473 = vmatpush2.bf16.msra.mxu0 0
  %1474 = vmatprep.subr.bf16.mxu0 0
  %1475 = vmatpush2.bf16.msra.mxu0 0
  %1476 = vmatprep.subr.bf16.mxu0 0
  %1477 = vmatpush2.bf16.msra.mxu0 0
  %1478 = vmatprep.mubr.bf16.mxu0 0
  %1479 = vmatmul.mubr.bf16.gmra.mxu0 %v1379
  %v1480 = vpop.f32.mrf.mxu0
  %v1481 = vadd.f32 0.0, %v1480
  %v1482 = vpop.f32.mrf.mxu0
  %v1483 = vadd.f32 0.0, %v1482
  %v1484 = vpop.f32.mrf.mxu0
  %v1485 = vadd.f32 0.0, %v1484
  %v1486 = vpop.f32.mrf.mxu0
  %v1487 = vadd.f32 0.0, %v1486
  %1488 = vdwg.mxu0
  %v1489 = vadd.f32 %v1395, %v1438
  %v1490 = vadd.f32 %v1396, %v1440
  %v1491 = vadd.f32 %v1397, %v1481
  %v1492 = vadd.f32 %v1398, %v1483
  %v1493 = vadd.f32 %v1399, %v1442
  %v1494 = vadd.f32 %v1400, %v1444
  %v1495 = vadd.f32 %v1401, %v1485
  %v1496 = vadd.f32 %v1402, %v1487
  %v1497 = vxor.u32 %v1489, 2147483648
  %v1498 = vxor.u32 %v1493, 2147483648
  %v1499 = vmul.f32 %v1497, 1.442695
  %v1500 = vpow.pop %v1499
  %v1501 = vmul.f32 %v1498, 1.442695
  %v1502 = vpow.pop %v1501
  %v1503 = vadd.f32 %v1500, 1.0
  %v1504 = vadd.f32 %v1502, 1.0
  %v1505 = vrcp.pop %v1503
  %v1506 = vmul.f32 1.0, %v1505
  %v1507 = vrcp.pop %v1504
  %v1508 = vmul.f32 1.0, %v1507
  %v1509 = vxor.u32 %v1490, 2147483648
  %v1510 = vxor.u32 %v1494, 2147483648
  %v1511 = vmul.f32 %v1509, 1.442695
  %v1512 = vpow.pop %v1511
  %v1513 = vmul.f32 %v1510, 1.442695
  %v1514 = vpow.pop %v1513
  %v1515 = vadd.f32 %v1512, 1.0
  %v1516 = vadd.f32 %v1514, 1.0
  %v1517 = vrcp.pop %v1515
  %v1518 = vmul.f32 1.0, %v1517
  %v1519 = vrcp.pop %v1516
  %v1520 = vmul.f32 1.0, %v1519
  %v1521 = vtanh.pop %v1491
  %v1522 = vtanh.pop %v1495
  %v1523 = vxor.u32 %v1492, 2147483648
  %v1524 = vxor.u32 %v1496, 2147483648
  %v1525 = vmul.f32 %v1523, 1.442695
  %v1526 = vpow.pop %v1525
  %v1527 = vmul.f32 %v1524, 1.442695
  %v1528 = vpow.pop %v1527
  %v1529 = vadd.f32 %v1526, 1.0
  %v1530 = vadd.f32 %v1528, 1.0
  %v1531 = vrcp.pop %v1529
  %v1532 = vmul.f32 1.0, %v1531
  %v1533 = vrcp.pop %v1530
  %v1534 = vmul.f32 1.0, %v1533
  %v1535 = vmul.f32 %v1518, %v1373
  %v1536 = vmul.f32 %v1520, %v1374
  %v1537 = vmul.f32 %v1506, %v1521
  %v1538 = vmul.f32 %v1508, %v1522
  %v1539 = vadd.f32 %v1535, %v1537
  %v1540 = vadd.f32 %v1536, %v1538
  %v1541 = vtanh.pop %v1539
  %v1542 = vtanh.pop %v1540
  %v1543 = vmul.f32 %v1532, %v1541
  %v1544 = vmul.f32 %v1534, %v1542
  %v1545 = vpack.c.bf16 %v1544, %v1543
  %v1547 = vunpack.c.l.b16 %v1545
  %v1548 = vunpack.c.h.b16 %v1545
  %v1549 = vpack.c.b16 %v1547, %v1547
  %v1550 = vpack.c.b16 %v1548, %v1548
  %s1553 = scalar_lea.vmem %s4, 56
  %1554 = vst [vmem:[%s1553] sm:$0xf] %v1549
  %1555 = vst [vmem:[%s1553 + $0x4] sm:$0xf] %v1550
  %v1556 = vunpack.c.l.bf16 %v1545
  %v1557 = vunpack.c.h.bf16 %v1545
  %1558 = vst [vmem:[%s5] sm:$0xff] %v1556
  %1559 = vst [vmem:[%s5 + $0x8] sm:$0xff] %v1557
  %1560 = vst [vmem:[%s6] sm:$0xff] %v1539
  %1561 = vst [vmem:[%s6 + $0x8] sm:$0xff] %v1540
  // Predicated region
  $region22: #{rnn_model_forward.4} parent=0 // pred_check
    _
  $region23: #{rnn_model_forward.4} parent=0 // pred_check_branch
    %1563 = sbr.rel (0) target = $region25
  $region24: #{rnn_model_forward.4} parent=0 // pred_region
    _
  $region25: #{rnn_model_forward.4} parent=0 // pred_fallthru
    _
  // Predicated region
  $region26: #{rnn_model_forward.4} parent=0 // pred_check
    _
  $region27: #{rnn_model_forward.4} parent=0 // pred_check_branch
    %1565 = sbr.rel (0) target = $region29
  $region28: #{rnn_model_forward.4} parent=0 // pred_region
    _
  $region29: #{rnn_model_forward.4} parent=0 // pred_fallthru
    _
  // Predicated region
  $region30: #{rnn_model_forward.4} parent=0 // pred_check
    _
  $region31: #{rnn_model_forward.4} parent=0 // pred_check_branch
    %1567 = sbr.rel (0) target = $region33
  $region32: #{rnn_model_forward.4} parent=0 // pred_region
    _
  $region33: #{rnn_model_forward.4} parent=0 // pred_fallthru
    _
  // Predicated region
  $region34: #{rnn_model_forward.4} parent=0 // pred_check
    _
  $region35: #{rnn_model_forward.4} parent=0 // pred_check_branch
    %1569 = sbr.rel (0) target = $region37
  $region36: #{rnn_model_forward.4} parent=0 // pred_region
    _
  $region37: #{rnn_model_forward.4} parent=0 // pred_fallthru
    _
  // Predicated region
  $region38: #{rnn_model_forward.4} parent=0 // pred_check
    _
  $region39: #{rnn_model_forward.4} parent=0 // pred_check_branch
    %1571 = sbr.rel (0) target = $region41
  $region40: #{rnn_model_forward.4} parent=0 // pred_region
    _
  $region41: #{rnn_model_forward.4} parent=0 // pred_fallthru
    _
  // Predicated region
  $region42: #{rnn_model_forward.4} parent=0 // pred_check
    _
  $region43: #{rnn_model_forward.4} parent=0 // pred_check_branch
    %1573 = sbr.rel (0) target = $region45
  $region44: #{rnn_model_forward.4} parent=0 // pred_region
    _
  $region45: #{rnn_model_forward.4} parent=0 // pred_fallthru
    _

</llo_original>
